<compile_context>
chip_gen: v5e
topology: v5e:2x2
jax: 0.10.0
libtpu: 0.0.40
codegen_flags: <defaults>
</compile_context>

<pallas_src>
import functools

import jax
import jax.numpy as jnp
from jax.experimental import pallas as pl
from jax.experimental.pallas import tpu as pltpu

NEG_INF = -1e30
SLOPE = 0.2  # LeakyReLU(0.2) used throughout dgllife PAGTN


def _lrelu(x):
    return jnp.where(x >= 0, x, SLOPE * x)


def _f32_dot(a, b):
    return jnp.dot(a, b, preferred_element_type=jnp.float32)


# --------------------------------------------------------------------------
# Fused kernel: input proj + depth PAGTN layers + readout, per graph block
# --------------------------------------------------------------------------

def fused_pagtn_kernel(x_ref, e_ref, adj_ref, mask_ref,
                       w_top_ref, b_inp_ref,
                       w5_ref, b5_ref, we_ref, be_ref, wdot_ref,
                       wao_h_ref, bao_ref, wout_ref, bout_ref,
                       o_ref, *, hoist_edges):
    GB, N, Fin = x_ref.shape          # graphs per grid step, nodes, atom feats
    Fe = e_ref.shape[2]
    H = b_inp_ref.shape[1]
    depth = w5_ref.shape[0]
    node_out = wao_h_ref.shape[1]
    n_tasks = wout_ref.shape[1]

    x = x_ref[...].reshape(GB * N, Fin)           # all graphs in one matmul
    ef = e_ref[...].reshape(GB * N * N, Fe)
    adj = adj_ref[...]                            # (GB, N, N)

    # One wide matmul: input projection AND the x-part of the atom_out readout.
    p_top = _f32_dot(x, w_top_ref[...])           # (GB*N, H + node_out)
    ai = _lrelu(p_top[:, :H] + b_inp_ref[...])    # residual source of every layer
    hf_x = p_top[:, H:]                           # reused in the readout
    h = ai

    # Layer-invariant edge projection for ALL layers at once (hoisted out of
    # the depth loop); falls back to per-layer matmuls when too big for VMEM.
    if hoist_edges:
        pe_all = _f32_dot(ef, we_ref[...]) + be_ref[...]      # (GB*N*N, 2H*D)

    # TODO(synk): for molecules with N >> 64 (esp. on v7x's 64 MiB VMEM) the
    # (GB, N, N, H) intermediates below should be tiled over the destination
    # axis v and optionally kept in bf16 on v6e/v7x; at these sizes all are
    # KB-scale so full-N f32 is fine.
    for d in range(depth):                        # small static depth -> unrolled
        w5, b5 = w5_ref[d], b5_ref[d]             # (H, 5H), (1, 5H)

        # one wide matmul for the five H->H projections, then slice
        p5 = _f32_dot(h, w5) + b5                 # (GB*N, 5H)
        hs = p5[:, 0 * H:1 * H].reshape(GB, N, H)     # attn source term
        hd = p5[:, 1 * H:2 * H].reshape(GB, N, H)     # attn dest term
        ms = p5[:, 2 * H:3 * H].reshape(GB, N, H)     # msg source term
        md = p5[:, 3 * H:4 * H].reshape(GB, N, H)     # msg dest term
        hwn = p5[:, 4 * H:5 * H]                      # (GB*N, H) self/wn term

        if hoist_edges:
            pe = pe_all[:, d * 2 * H:(d + 1) * 2 * H]            # (GB*N*N, 2H)
        else:
            pe = (_f32_dot(ef, we_ref[:, d * 2 * H:(d + 1) * 2 * H])
                  + be_ref[:, d * 2 * H:(d + 1) * 2 * H])
        he = pe[:, :H].reshape(GB, N, N, H)
        me = pe[:, H:2 * H].reshape(GB, N, N, H)

        # ---- attention scores (u = source axis 1, v = dest axis 2) ---------
        s = _lrelu(hs[:, :, None, :] + hd[:, None, :, :] + he)   # (GB,u,v,H)
        # lane reduce on VPU/XLU; a (.,H)x(H,1) matmul would waste the MXU
        score = jnp.sum(s * wdot_ref[d], axis=-1)                # (GB, N, N)
        # NOTE: attn_dot bias (a per-layer constant on every edge score)
        # cancels exactly in the edge softmax and is therefore omitted.

        # edge_softmax over incoming edges (axis u) of each destination v
        score = jnp.where(adj > 0, score, NEG_INF)
        smax = jnp.max(score, axis=1, keepdims=True)
        ex = jnp.exp(score - smax) * adj
        denom = jnp.sum(ex, axis=1, keepdims=True)
        alpha = ex / jnp.maximum(denom, 1e-20)    # guard: no-in-edge -> 0

        # ---- messages -------------------------------------------------------
        m = _lrelu(ms[:, :, None, :] + md[:, None, :, :] + me)   # (GB,u,v,H)
        agg = jnp.sum(alpha[..., None] * m, axis=1)              # (GB, v, H)

        attn_h = _lrelu(agg.reshape(GB * N, H) + hwn)            # PAGTNLayer out
        h = jax.nn.relu(attn_h + ai)                             # GNN residual

    # ---- readout: atom_out(concat) + masked sum pool + prediction linear ----
    hf = _lrelu(hf_x + _f32_dot(h, wao_h_ref[...]) + bao_ref[...])  # (GB*N, node_out)
    mask = mask_ref[...]                                            # (GB, N, 1)
    gsum = jnp.sum(hf.reshape(GB, N, node_out) * mask, axis=1)      # (GB, node_out)
    out = _f32_dot(gsum, wout_ref[...]) + bout_ref[...]             # (GB, n_tasks)
    o_ref[...] = out.reshape(1, 1, GB * n_tasks)                    # lane-dense slab


# --------------------------------------------------------------------------
# Heuristics
# --------------------------------------------------------------------------

def _pick_graph_block(batch, n_nodes, n_edge_feats, hidden, depth):
    """Graphs packed per grid step.

    * Fill the MXU row dim: target GB*N >= 256 rows for the node-side matmuls.
    * Respect a VMEM budget for the live (GB, N, N, *) intermediates.
    * Only keep >=2 grid steps (v7x megacore sharding) when each step carries
      non-trivial work; otherwise one fat step wins on every chip.
    """
    per_graph = (n_nodes * n_nodes) * (2 * n_edge_feats        # edge input (dbl buf)
                                       + 2 * hidden * depth    # hoisted edge proj
                                       + 10 * hidden) * 4      # live NxNxH tensors
    vmem_budget = 20 << 20
    gb_cap = max(1, vmem_budget // max(per_graph, 1))
    gb_fill = max(1, -(-256 // n_nodes))                       # ceil(256 / N)
    gb = max(1, min(batch, gb_fill, gb_cap))
    steps = -(-batch // gb)
    if steps > 1 and gb * n_nodes * n_nodes * hidden < (1 << 21):
        gb = max(1, min(batch, gb_cap))                        # pack everything
    return gb


def _estimate_vmem_bytes(GB, N, Fin, Fe, H, node_out, depth, weight_bytes, hoist):
    f = 4
    io = 2 * (GB * N * Fin + GB * N * N * Fe + GB * N * N + GB * N) * f
    inter = GB * N * (H + node_out) + GB * N * 5 * H + GB * N * node_out
    inter += 10 * GB * N * N * H + 4 * GB * N * N
    if hoist:
        inter += GB * N * N * 2 * H * depth
    return io + 2 * weight_bytes + inter * f


def _vmem_limit_bytes(estimate):
    # ~75% of physical VMEM: ~96 MiB on v5e/v6e (128 MiB), ~48 MiB on v7x (64 MiB).
    try:
        cap = int(pltpu.get_tpu_info().vmem_capacity_bytes)
    except Exception:
        cap = 64 << 20
    hi = (cap * 3) // 4
    return int(min(max(int(estimate * 1.5), 32 << 20), hi))


# --------------------------------------------------------------------------
# Weight packing
# --------------------------------------------------------------------------

_PACKED_WEIGHT_NAMES = ("w_top", "b_inp", "w5", "b5", "we", "be", "wdot",
                        "w_ao_h", "b_ao", "w_out", "b_out")


def pack_params(params):
    """Stack per-layer weights along depth and merge projections."""
    def stack(key):
        return jnp.stack([lp[key] for lp in params["layers"]], axis=0)

    w5 = jnp.concatenate([stack("w_as"), stack("w_ad"), stack("w_ms"),
                          stack("w_md"), stack("w_wn")], axis=-1)     # (D, H, 5H)
    b5 = jnp.concatenate([stack("b_as"), stack("b_ad"), stack("b_ms"),
                          stack("b_md"), stack("b_wn")], axis=-1)     # (D, 1, 5H)
    # Edge projections for ALL layers side by side: layer d -> cols [2H*d, 2H*(d+1))
    we = jnp.concatenate(
        [jnp.concatenate([lp["w_ae"], lp["w_me"]], axis=-1) for lp in params["layers"]],
        axis=-1)                                                      # (Fe, 2H*D)
    be = jnp.concatenate(
        [jnp.concatenate([lp["b_ae"], lp["b_me"]], axis=-1) for lp in params["layers"]],
        axis=-1)                                                      # (1, 2H*D)
    wdot = stack("w_dot")                                             # (D, 1, H)
    # b_dot is intentionally not packed: it cancels in the edge softmax.
    # Input projection and the x-part of the readout share one matmul:
    w_top = jnp.concatenate([params["w_inp"], params["w_ao_x"]], axis=-1)  # (Fin, H+node_out)
    return {
        "w_top": w_top, "b_inp": params["b_inp"],
        "w5": w5, "b5": b5, "we": we, "be": be, "wdot": wdot,
        "w_ao_h": params["w_ao_h"], "b_ao": params["b_ao"],
        "w_out": params["w_out"], "b_out": params["b_out"],
    }


# --------------------------------------------------------------------------
# Wrapper (pallas_call plumbing)
# --------------------------------------------------------------------------

def pagtn_forward(node_feats, edge_feats, adj, node_mask, params):
    """Full Pagtn forward (regression mode): returns (B, n_tasks)."""
    packed = pack_params(params)
    B, N, Fin = node_feats.shape
    Fe = edge_feats.shape[-1]
    H = packed["b_inp"].shape[1]
    node_out = packed["w_ao_h"].shape[1]
    n_tasks = packed["w_out"].shape[1]
    depth = packed["w5"].shape[0]

    GB = _pick_graph_block(B, N, Fe, H, depth)
    num_blocks = -(-B // GB)
    B_pad = num_blocks * GB

    e_flat = edge_feats.reshape(B, N * N, Fe)
    if B_pad != B:
        pad = B_pad - B
        node_feats = jnp.pad(node_feats, ((0, pad), (0, 0), (0, 0)))
        e_flat = jnp.pad(e_flat, ((0, pad), (0, 0), (0, 0)))
        adj = jnp.pad(adj, ((0, pad), (0, 0), (0, 0)))
        node_mask = jnp.pad(node_mask, ((0, pad), (0, 0), (0, 0)))

    weights = [packed[k] for k in _PACKED_WEIGHT_NAMES]
    weight_bytes = sum(int(w.size) * 4 for w in weights)

    hoist_edges = (GB * N * N * 2 * H * depth * 4) <= (16 << 20)
    vmem_limit = _vmem_limit_bytes(_estimate_vmem_bytes(
        GB, N, Fin, Fe, H, node_out, depth, weight_bytes, hoist_edges))

    def blk(trailing):
        nd = len(trailing)
        return pl.BlockSpec((GB,) + trailing, lambda i, _nd=nd: (i,) + (0,) * _nd)

    def full(arr):
        nd = arr.ndim
        # NOTE: grid-invariant weights; Mosaic keeps constant-index copies
        # around across steps (and the grid here is typically 1-2 steps).
        return pl.BlockSpec(arr.shape, lambda i, _nd=nd: (0,) * _nd)

    kernel = functools.partial(fused_pagtn_kernel, hoist_edges=hoist_edges)

    out = pl.pallas_call(
        kernel,
        grid=(num_blocks,),
        in_specs=[blk((N, Fin)), blk((N * N, Fe)), blk((N, N)), blk((N, 1))]
                 + [full(w) for w in weights],
        out_specs=pl.BlockSpec((1, 1, GB * n_tasks), lambda i: (i, 0, 0)),
        out_shape=jax.ShapeDtypeStruct((num_blocks, 1, GB * n_tasks), jnp.float32),
        compiler_params=pltpu.CompilerParams(
            dimension_semantics=("parallel",),   # independent graphs -> 2 TCs on v7x
            vmem_limit_bytes=vmem_limit),
    )(node_feats, e_flat, adj, node_mask, *weights)
    return out.reshape(B_pad, n_tasks)[:B]
    # TODO(synk): classification-mode softmax branch not implemented (mode='regression').


# --------------------------------------------------------------------------
# Deterministic parameter init (shapes implied by PAGTNPredictor.__init__)
# --------------------------------------------------------------------------

def init_params(key, Fin, Fe, H, node_out, n_tasks, depth):
    def nrm(k, shape):
        return jax.random.normal(k, shape, dtype=jnp.float32) * 0.1

    keys = jax.random.split(key, 6 + depth)
    params = {
        "w_inp": nrm(keys[0], (Fin, H)), "b_inp": nrm(keys[1], (1, H)),
        "w_ao_x": nrm(keys[2], (Fin, node_out)),      # atom_out weight, x part
        "w_ao_h": nrm(keys[3], (H, node_out)),        # atom_out weight, h part
        "b_ao": nrm(keys[4], (1, node_out)),
        "w_out": nrm(keys[5], (node_out, n_tasks)),
        "b_out": jnp.zeros((1, n_tasks), jnp.float32),
        "layers": [],
    }
    for d in range(depth):
        lk = jax.random.split(keys[6 + d], 16)
        params["layers"].append({
            "w_as": nrm(lk[0], (H, H)), "b_as": nrm(lk[1], (1, H)),
            "w_ad": nrm(lk[2], (H, H)), "b_ad": nrm(lk[3], (1, H)),
            "w_ae": nrm(lk[4], (Fe, H)), "b_ae": nrm(lk[5], (1, H)),
            "w_dot": nrm(lk[6], (1, H)), "b_dot": nrm(lk[7], (1, 1)),
            "w_ms": nrm(lk[8], (H, H)), "b_ms": nrm(lk[9], (1, H)),
            "w_md": nrm(lk[10], (H, H)), "b_md": nrm(lk[11], (1, H)),
            "w_me": nrm(lk[12], (Fe, H)), "b_me": nrm(lk[13], (1, H)),
            "w_wn": nrm(lk[14], (H, H)), "b_wn": nrm(lk[15], (1, H)),
        })
    return params


# --------------------------------------------------------------------------
# Pure-JAX reference (dense formulation of the same math) for a sanity check
# --------------------------------------------------------------------------

def reference_forward(node_feats, edge_feats, adj, node_mask, params):
    ai = _lrelu(node_feats @ params["w_inp"] + params["b_inp"])
    h = ai
    for lp in params["layers"]:
        hs = h @ lp["w_as"] + lp["b_as"]
        hd = h @ lp["w_ad"] + lp["b_ad"]
        he = edge_feats @ lp["w_ae"] + lp["b_ae"]
        s = _lrelu(hs[:, :, None, :] + hd[:, None, :, :] + he)
        score = jnp.sum(s * lp["w_dot"][0], axis=-1) + lp["b_dot"][0, 0]
        score = jnp.where(adj > 0, score, NEG_INF)
        ex = jnp.exp(score - score.max(axis=1, keepdims=True)) * adj
        alpha = ex / ex.sum(axis=1, keepdims=True)
        ms = h @ lp["w_ms"] + lp["b_ms"]
        md = h @ lp["w_md"] + lp["b_md"]
        me = edge_feats @ lp["w_me"] + lp["b_me"]
        m = _lrelu(ms[:, :, None, :] + md[:, None, :, :] + me)
        agg = jnp.sum(alpha[..., None] * m, axis=1)
        attn_h = _lrelu(agg + h @ lp["w_wn"] + lp["b_wn"])
        h = jax.nn.relu(attn_h + ai)
    hf = _lrelu(node_feats @ params["w_ao_x"] + h @ params["w_ao_h"] + params["b_ao"])
    gf = jnp.sum(hf * node_mask, axis=1)
    return gf @ params["w_out"] + params["b_out"]


# --------------------------------------------------------------------------

if __name__ == "__main__":
    key = jax.random.PRNGKey(0)
    B, N = 2, 8                     # 2 molecules, 8 atoms each (dense-batched)
    Fin, Fe = 94, 42                # number_atom_features, number_bond_features
    H, node_out = 32, 256           # hidden_features, output_node_features
    n_tasks, depth = 1, 5           # regression, num_layers=5, num_heads=1

    k1, k2, k3 = jax.random.split(key, 3)
    node_feats = jax.random.normal(k1, (B, N, Fin), dtype=jnp.float32) * 0.5
    edge_feats = jax.random.normal(k2, (B, N, N, Fe), dtype=jnp.float32) * 0.5
    # Path-augmented graphs are (near) complete: all pairs connected, no self loop.
    adj = jnp.tile((1.0 - jnp.eye(N, dtype=jnp.float32))[None], (B, 1, 1))
    node_mask = jnp.ones((B, N, 1), dtype=jnp.float32)

    params = init_params(k3, Fin, Fe, H, node_out, n_tasks, depth)

    preds = pagtn_forward(node_feats, edge_feats, adj, node_mask, params)
    preds = jax.block_until_ready(preds)
    assert preds.shape == (B, n_tasks)

    ref = reference_forward(node_feats, edge_feats, adj, node_mask, params)
    # default (bf16-pass) MXU precision on both sides -> loose-ish tolerance
    assert jnp.allclose(preds, ref, rtol=5e-2, atol=1e-1)

    print("KERNEL_OK")
</pallas_src>

<mosaic_0001>
module attributes {stable_mosaic.version = 11 : i64} {
  func.func @fused_pagtn_kernel(%arg0: i32, %arg1: memref<2x8x94xf32, #tpu.memory_space<vmem>>, %arg2: memref<2x64x42xf32, #tpu.memory_space<vmem>>, %arg3: memref<2x8x8xf32, #tpu.memory_space<vmem>>, %arg4: memref<2x8x1xf32, #tpu.memory_space<vmem>>, %arg5: memref<94x288xf32, #tpu.memory_space<vmem>>, %arg6: memref<1x32xf32, #tpu.memory_space<vmem>>, %arg7: memref<5x32x160xf32, #tpu.memory_space<vmem>>, %arg8: memref<5x1x160xf32, #tpu.memory_space<vmem>>, %arg9: memref<42x320xf32, #tpu.memory_space<vmem>>, %arg10: memref<1x320xf32, #tpu.memory_space<vmem>>, %arg11: memref<5x1x32xf32, #tpu.memory_space<vmem>>, %arg12: memref<32x256xf32, #tpu.memory_space<vmem>>, %arg13: memref<1x256xf32, #tpu.memory_space<vmem>>, %arg14: memref<256x1xf32, #tpu.memory_space<vmem>>, %arg15: memref<1x1xf32, #tpu.memory_space<vmem>>, %arg16: memref<1x1x2xf32, #tpu.memory_space<vmem>>) attributes {dimension_semantics = [#tpu.dimension_semantics<parallel>], iteration_bounds = array<i64: 1>, scalar_prefetch = 0 : i64, scratch_operands = 0 : i64, tpu.core_type = #tpu.core_type<tc>, window_params = [{transform_indices = @transform_0, window_bounds = array<i64: 2, 8, 94>}, {transform_indices = @transform_1, window_bounds = array<i64: 2, 64, 42>}, {transform_indices = @transform_2, window_bounds = array<i64: 2, 8, 8>}, {transform_indices = @transform_3, window_bounds = array<i64: 2, 8, 1>}, {pipeline_mode = #tpu.pipeline_mode<synchronous>, transform_indices = @transform_4, window_bounds = array<i64: 94, 288>}, {pipeline_mode = #tpu.pipeline_mode<synchronous>, transform_indices = @transform_5, window_bounds = array<i64: 1, 32>}, {pipeline_mode = #tpu.pipeline_mode<synchronous>, transform_indices = @transform_6, window_bounds = array<i64: 5, 32, 160>}, {pipeline_mode = #tpu.pipeline_mode<synchronous>, transform_indices = @transform_7, window_bounds = array<i64: 5, 1, 160>}, {pipeline_mode = #tpu.pipeline_mode<synchronous>, transform_indices = @transform_8, window_bounds = array<i64: 42, 320>}, {pipeline_mode = #tpu.pipeline_mode<synchronous>, transform_indices = @transform_9, window_bounds = array<i64: 1, 320>}, {pipeline_mode = #tpu.pipeline_mode<synchronous>, transform_indices = @transform_10, window_bounds = array<i64: 5, 1, 32>}, {pipeline_mode = #tpu.pipeline_mode<synchronous>, transform_indices = @transform_11, window_bounds = array<i64: 32, 256>}, {pipeline_mode = #tpu.pipeline_mode<synchronous>, transform_indices = @transform_12, window_bounds = array<i64: 1, 256>}, {pipeline_mode = #tpu.pipeline_mode<synchronous>, transform_indices = @transform_13, window_bounds = array<i64: 256, 1>}, {pipeline_mode = #tpu.pipeline_mode<synchronous>, transform_indices = @transform_14, window_bounds = array<i64: 1, 1>}, {transform_indices = @transform_15, window_bounds = array<i64: 1, 1, 2>}]} {
    %c0 = arith.constant 0 : index
    %c0_0 = arith.constant 0 : index
    %c0_1 = arith.constant 0 : index
    %0 = vector.load %arg1[%c0, %c0_0, %c0_1] : memref<2x8x94xf32, #tpu.memory_space<vmem>>, vector<2x8x94xf32>
    %1 = vector.shape_cast %0 : vector<2x8x94xf32> to vector<16x94xf32>
    %c0_2 = arith.constant 0 : index
    %c0_3 = arith.constant 0 : index
    %c0_4 = arith.constant 0 : index
    %2 = vector.load %arg2[%c0_2, %c0_3, %c0_4] : memref<2x64x42xf32, #tpu.memory_space<vmem>>, vector<2x64x42xf32>
    %3 = vector.shape_cast %2 : vector<2x64x42xf32> to vector<128x42xf32>
    %c0_5 = arith.constant 0 : index
    %c0_6 = arith.constant 0 : index
    %c0_7 = arith.constant 0 : index
    %4 = vector.load %arg3[%c0_5, %c0_6, %c0_7] : memref<2x8x8xf32, #tpu.memory_space<vmem>>, vector<2x8x8xf32>
    %c0_8 = arith.constant 0 : index
    %c0_9 = arith.constant 0 : index
    %5 = vector.load %arg5[%c0_8, %c0_9] : memref<94x288xf32, #tpu.memory_space<vmem>>, vector<94x288xf32>
    %cst = arith.constant dense<0.000000e+00> : vector<16x288xf32>
    %6 = tpu.matmul %1, %5, %cst {dimension_numbers = #tpu.dot_dimension_numbers<[1], [0], [0], [1], [0, 0, 1, 1], [], []>} : vector<16x94xf32>, vector<94x288xf32>, vector<16x288xf32> -> vector<16x288xf32>
    %7 = vector.extract_strided_slice %6 {offsets = [0, 0], sizes = [16, 32], strides = [1, 1]} : vector<16x288xf32> to vector<16x32xf32>
    %c0_10 = arith.constant 0 : index
    %c0_11 = arith.constant 0 : index
    %8 = vector.load %arg6[%c0_10, %c0_11] : memref<1x32xf32, #tpu.memory_space<vmem>>, vector<1x32xf32>
    %9 = vector.broadcast %8 : vector<1x32xf32> to vector<16x32xf32>
    %10 = arith.addf %7, %9 : vector<16x32xf32>
    %cst_12 = arith.constant 0.000000e+00 : f32
    %11 = vector.broadcast %cst_12 : f32 to vector<16x32xf32>
    %12 = arith.cmpf oge, %10, %11 : vector<16x32xf32>
    %cst_13 = arith.constant 2.000000e-01 : f32
    %13 = vector.broadcast %cst_13 : f32 to vector<16x32xf32>
    %14 = arith.mulf %13, %10 : vector<16x32xf32>
    %15 = arith.select %12, %10, %14 : vector<16x32xi1>, vector<16x32xf32>
    %16 = vector.extract_strided_slice %6 {offsets = [0, 32], sizes = [16, 256], strides = [1, 1]} : vector<16x288xf32> to vector<16x256xf32>
    %c0_14 = arith.constant 0 : index
    %c0_15 = arith.constant 0 : index
    %17 = vector.load %arg9[%c0_14, %c0_15] : memref<42x320xf32, #tpu.memory_space<vmem>>, vector<42x320xf32>
    %cst_16 = arith.constant dense<0.000000e+00> : vector<128x320xf32>
    %18 = tpu.matmul %3, %17, %cst_16 {dimension_numbers = #tpu.dot_dimension_numbers<[1], [0], [0], [1], [0, 0, 1, 1], [], []>} : vector<128x42xf32>, vector<42x320xf32>, vector<128x320xf32> -> vector<128x320xf32>
    %c0_17 = arith.constant 0 : index
    %c0_18 = arith.constant 0 : index
    %19 = vector.load %arg10[%c0_17, %c0_18] : memref<1x320xf32, #tpu.memory_space<vmem>>, vector<1x320xf32>
    %20 = vector.broadcast %19 : vector<1x320xf32> to vector<128x320xf32>
    %21 = arith.addf %18, %20 : vector<128x320xf32>
    %c0_19 = arith.constant 0 : index
    %c0_20 = arith.constant 0 : index
    %c0_21 = arith.constant 0 : index
    %22 = vector.load %arg7[%c0_19, %c0_20, %c0_21] : memref<5x32x160xf32, #tpu.memory_space<vmem>>, vector<1x32x160xf32>
    %23 = vector.shape_cast %22 : vector<1x32x160xf32> to vector<32x160xf32>
    %c0_22 = arith.constant 0 : index
    %c0_23 = arith.constant 0 : index
    %c0_24 = arith.constant 0 : index
    %24 = vector.load %arg8[%c0_22, %c0_23, %c0_24] : memref<5x1x160xf32, #tpu.memory_space<vmem>>, vector<1x1x160xf32>
    %25 = vector.shape_cast %24 : vector<1x1x160xf32> to vector<1x160xf32>
    %cst_25 = arith.constant dense<0.000000e+00> : vector<16x160xf32>
    %26 = tpu.matmul %15, %23, %cst_25 {dimension_numbers = #tpu.dot_dimension_numbers<[1], [0], [0], [1], [0, 0, 1, 1], [], []>} : vector<16x32xf32>, vector<32x160xf32>, vector<16x160xf32> -> vector<16x160xf32>
    %27 = vector.broadcast %25 : vector<1x160xf32> to vector<16x160xf32>
    %28 = arith.addf %26, %27 : vector<16x160xf32>
    %29 = vector.extract_strided_slice %28 {offsets = [0, 0], sizes = [16, 32], strides = [1, 1]} : vector<16x160xf32> to vector<16x32xf32>
    %30 = vector.shape_cast %29 : vector<16x32xf32> to vector<2x8x32xf32>
    %31 = vector.extract_strided_slice %28 {offsets = [0, 32], sizes = [16, 32], strides = [1, 1]} : vector<16x160xf32> to vector<16x32xf32>
    %32 = vector.shape_cast %31 : vector<16x32xf32> to vector<2x8x32xf32>
    %33 = vector.extract_strided_slice %28 {offsets = [0, 64], sizes = [16, 32], strides = [1, 1]} : vector<16x160xf32> to vector<16x32xf32>
    %34 = vector.shape_cast %33 : vector<16x32xf32> to vector<2x8x32xf32>
    %35 = vector.extract_strided_slice %28 {offsets = [0, 96], sizes = [16, 32], strides = [1, 1]} : vector<16x160xf32> to vector<16x32xf32>
    %36 = vector.shape_cast %35 : vector<16x32xf32> to vector<2x8x32xf32>
    %37 = vector.extract_strided_slice %28 {offsets = [0, 128], sizes = [16, 32], strides = [1, 1]} : vector<16x160xf32> to vector<16x32xf32>
    %38 = vector.extract_strided_slice %21 {offsets = [0, 0], sizes = [128, 64], strides = [1, 1]} : vector<128x320xf32> to vector<128x64xf32>
    %39 = vector.extract_strided_slice %38 {offsets = [0, 0], sizes = [128, 32], strides = [1, 1]} : vector<128x64xf32> to vector<128x32xf32>
    %40 = vector.shape_cast %39 : vector<128x32xf32> to vector<2x8x8x32xf32>
    %41 = vector.extract_strided_slice %38 {offsets = [0, 32], sizes = [128, 32], strides = [1, 1]} : vector<128x64xf32> to vector<128x32xf32>
    %42 = vector.shape_cast %41 : vector<128x32xf32> to vector<2x8x8x32xf32>
    %43 = vector.shape_cast %30 : vector<2x8x32xf32> to vector<2x8x1x32xf32>
    %44 = vector.shape_cast %32 : vector<2x8x32xf32> to vector<2x1x8x32xf32>
    %45 = vector.broadcast %43 : vector<2x8x1x32xf32> to vector<2x8x8x32xf32>
    %46 = vector.broadcast %44 : vector<2x1x8x32xf32> to vector<2x8x8x32xf32>
    %47 = arith.addf %45, %46 : vector<2x8x8x32xf32>
    %48 = arith.addf %47, %40 : vector<2x8x8x32xf32>
    %cst_26 = arith.constant 0.000000e+00 : f32
    %49 = vector.broadcast %cst_26 : f32 to vector<2x8x8x32xf32>
    %50 = arith.cmpf oge, %48, %49 : vector<2x8x8x32xf32>
    %cst_27 = arith.constant 2.000000e-01 : f32
    %51 = vector.broadcast %cst_27 : f32 to vector<2x8x8x32xf32>
    %52 = arith.mulf %51, %48 : vector<2x8x8x32xf32>
    %53 = arith.select %50, %48, %52 : vector<2x8x8x32xi1>, vector<2x8x8x32xf32>
    %c0_28 = arith.constant 0 : index
    %c0_29 = arith.constant 0 : index
    %c0_30 = arith.constant 0 : index
    %54 = vector.load %arg11[%c0_28, %c0_29, %c0_30] : memref<5x1x32xf32, #tpu.memory_space<vmem>>, vector<1x1x32xf32>
    %55 = vector.shape_cast %54 : vector<1x1x32xf32> to vector<1x32xf32>
    %56 = vector.shape_cast %55 : vector<1x32xf32> to vector<1x1x1x32xf32>
    %57 = vector.broadcast %56 : vector<1x1x1x32xf32> to vector<2x8x8x32xf32>
    %58 = arith.mulf %53, %57 : vector<2x8x8x32xf32>
    %cst_31 = arith.constant dense<0.000000e+00> : vector<2x8x8xf32>
    %59 = vector.multi_reduction <add>, %58, %cst_31 [3] : vector<2x8x8x32xf32> to vector<2x8x8xf32>
    %cst_32 = arith.constant 0.000000e+00 : f32
    %60 = vector.broadcast %cst_32 : f32 to vector<2x8x8xf32>
    %61 = arith.cmpf ogt, %4, %60 : vector<2x8x8xf32>
    %cst_33 = arith.constant -1.000000e+30 : f32
    %62 = vector.broadcast %cst_33 : f32 to vector<2x8x8xf32>
    %63 = arith.select %61, %59, %62 : vector<2x8x8xi1>, vector<2x8x8xf32>
    %cst_34 = arith.constant dense<0xFF800000> : vector<2x8xf32>
    %64 = vector.multi_reduction <maximumf>, %63, %cst_34 [1] : vector<2x8x8xf32> to vector<2x8xf32>
    %65 = vector.shape_cast %64 : vector<2x8xf32> to vector<2x1x8xf32>
    %66 = vector.broadcast %65 : vector<2x1x8xf32> to vector<2x8x8xf32>
    %67 = arith.subf %63, %66 : vector<2x8x8xf32>
    %68 = math.exp %67 : vector<2x8x8xf32>
    %69 = arith.mulf %68, %4 : vector<2x8x8xf32>
    %cst_35 = arith.constant dense<0.000000e+00> : vector<2x8xf32>
    %70 = vector.multi_reduction <add>, %69, %cst_35 [1] : vector<2x8x8xf32> to vector<2x8xf32>
    %71 = vector.shape_cast %70 : vector<2x8xf32> to vector<2x1x8xf32>
    %cst_36 = arith.constant 9.99999968E-21 : f32
    %72 = vector.broadcast %cst_36 : f32 to vector<2x1x8xf32>
    %73 = arith.maximumf %71, %72 : vector<2x1x8xf32>
    %74 = vector.broadcast %73 : vector<2x1x8xf32> to vector<2x8x8xf32>
    %75 = arith.divf %69, %74 : vector<2x8x8xf32>
    %76 = vector.shape_cast %34 : vector<2x8x32xf32> to vector<2x8x1x32xf32>
    %77 = vector.shape_cast %36 : vector<2x8x32xf32> to vector<2x1x8x32xf32>
    %78 = vector.broadcast %76 : vector<2x8x1x32xf32> to vector<2x8x8x32xf32>
    %79 = vector.broadcast %77 : vector<2x1x8x32xf32> to vector<2x8x8x32xf32>
    %80 = arith.addf %78, %79 : vector<2x8x8x32xf32>
    %81 = arith.addf %80, %42 : vector<2x8x8x32xf32>
    %cst_37 = arith.constant 0.000000e+00 : f32
    %82 = vector.broadcast %cst_37 : f32 to vector<2x8x8x32xf32>
    %83 = arith.cmpf oge, %81, %82 : vector<2x8x8x32xf32>
    %cst_38 = arith.constant 2.000000e-01 : f32
    %84 = vector.broadcast %cst_38 : f32 to vector<2x8x8x32xf32>
    %85 = arith.mulf %84, %81 : vector<2x8x8x32xf32>
    %86 = arith.select %83, %81, %85 : vector<2x8x8x32xi1>, vector<2x8x8x32xf32>
    %87 = vector.shape_cast %75 : vector<2x8x8xf32> to vector<2x8x8x1xf32>
    %88 = vector.broadcast %87 : vector<2x8x8x1xf32> to vector<2x8x8x32xf32>
    %89 = arith.mulf %88, %86 : vector<2x8x8x32xf32>
    %cst_39 = arith.constant dense<0.000000e+00> : vector<2x8x32xf32>
    %90 = vector.multi_reduction <add>, %89, %cst_39 [1] : vector<2x8x8x32xf32> to vector<2x8x32xf32>
    %91 = vector.shape_cast %90 : vector<2x8x32xf32> to vector<16x32xf32>
    %92 = arith.addf %91, %37 : vector<16x32xf32>
    %cst_40 = arith.constant 0.000000e+00 : f32
    %93 = vector.broadcast %cst_40 : f32 to vector<16x32xf32>
    %94 = arith.cmpf oge, %92, %93 : vector<16x32xf32>
    %cst_41 = arith.constant 2.000000e-01 : f32
    %95 = vector.broadcast %cst_41 : f32 to vector<16x32xf32>
    %96 = arith.mulf %95, %92 : vector<16x32xf32>
    %97 = arith.select %94, %92, %96 : vector<16x32xi1>, vector<16x32xf32>
    %98 = arith.addf %97, %15 : vector<16x32xf32>
    %cst_42 = arith.constant 0.000000e+00 : f32
    %99 = vector.broadcast %cst_42 : f32 to vector<16x32xf32>
    %100 = arith.maximumf %98, %99 : vector<16x32xf32>
    %c1 = arith.constant 1 : index
    %c0_43 = arith.constant 0 : index
    %c0_44 = arith.constant 0 : index
    %101 = vector.load %arg7[%c1, %c0_43, %c0_44] : memref<5x32x160xf32, #tpu.memory_space<vmem>>, vector<1x32x160xf32>
    %102 = vector.shape_cast %101 : vector<1x32x160xf32> to vector<32x160xf32>
    %c1_45 = arith.constant 1 : index
    %c0_46 = arith.constant 0 : index
    %c0_47 = arith.constant 0 : index
    %103 = vector.load %arg8[%c1_45, %c0_46, %c0_47] : memref<5x1x160xf32, #tpu.memory_space<vmem>>, vector<1x1x160xf32>
    %104 = vector.shape_cast %103 : vector<1x1x160xf32> to vector<1x160xf32>
    %cst_48 = arith.constant dense<0.000000e+00> : vector<16x160xf32>
    %105 = tpu.matmul %100, %102, %cst_48 {dimension_numbers = #tpu.dot_dimension_numbers<[1], [0], [0], [1], [0, 0, 1, 1], [], []>} : vector<16x32xf32>, vector<32x160xf32>, vector<16x160xf32> -> vector<16x160xf32>
    %106 = vector.broadcast %104 : vector<1x160xf32> to vector<16x160xf32>
    %107 = arith.addf %105, %106 : vector<16x160xf32>
    %108 = vector.extract_strided_slice %107 {offsets = [0, 0], sizes = [16, 32], strides = [1, 1]} : vector<16x160xf32> to vector<16x32xf32>
    %109 = vector.shape_cast %108 : vector<16x32xf32> to vector<2x8x32xf32>
    %110 = vector.extract_strided_slice %107 {offsets = [0, 32], sizes = [16, 32], strides = [1, 1]} : vector<16x160xf32> to vector<16x32xf32>
    %111 = vector.shape_cast %110 : vector<16x32xf32> to vector<2x8x32xf32>
    %112 = vector.extract_strided_slice %107 {offsets = [0, 64], sizes = [16, 32], strides = [1, 1]} : vector<16x160xf32> to vector<16x32xf32>
    %113 = vector.shape_cast %112 : vector<16x32xf32> to vector<2x8x32xf32>
    %114 = vector.extract_strided_slice %107 {offsets = [0, 96], sizes = [16, 32], strides = [1, 1]} : vector<16x160xf32> to vector<16x32xf32>
    %115 = vector.shape_cast %114 : vector<16x32xf32> to vector<2x8x32xf32>
    %116 = vector.extract_strided_slice %107 {offsets = [0, 128], sizes = [16, 32], strides = [1, 1]} : vector<16x160xf32> to vector<16x32xf32>
    %117 = vector.extract_strided_slice %21 {offsets = [0, 64], sizes = [128, 64], strides = [1, 1]} : vector<128x320xf32> to vector<128x64xf32>
    %118 = vector.extract_strided_slice %117 {offsets = [0, 0], sizes = [128, 32], strides = [1, 1]} : vector<128x64xf32> to vector<128x32xf32>
    %119 = vector.shape_cast %118 : vector<128x32xf32> to vector<2x8x8x32xf32>
    %120 = vector.extract_strided_slice %117 {offsets = [0, 32], sizes = [128, 32], strides = [1, 1]} : vector<128x64xf32> to vector<128x32xf32>
    %121 = vector.shape_cast %120 : vector<128x32xf32> to vector<2x8x8x32xf32>
    %122 = vector.shape_cast %109 : vector<2x8x32xf32> to vector<2x8x1x32xf32>
    %123 = vector.shape_cast %111 : vector<2x8x32xf32> to vector<2x1x8x32xf32>
    %124 = vector.broadcast %122 : vector<2x8x1x32xf32> to vector<2x8x8x32xf32>
    %125 = vector.broadcast %123 : vector<2x1x8x32xf32> to vector<2x8x8x32xf32>
    %126 = arith.addf %124, %125 : vector<2x8x8x32xf32>
    %127 = arith.addf %126, %119 : vector<2x8x8x32xf32>
    %cst_49 = arith.constant 0.000000e+00 : f32
    %128 = vector.broadcast %cst_49 : f32 to vector<2x8x8x32xf32>
    %129 = arith.cmpf oge, %127, %128 : vector<2x8x8x32xf32>
    %cst_50 = arith.constant 2.000000e-01 : f32
    %130 = vector.broadcast %cst_50 : f32 to vector<2x8x8x32xf32>
    %131 = arith.mulf %130, %127 : vector<2x8x8x32xf32>
    %132 = arith.select %129, %127, %131 : vector<2x8x8x32xi1>, vector<2x8x8x32xf32>
    %c1_51 = arith.constant 1 : index
    %c0_52 = arith.constant 0 : index
    %c0_53 = arith.constant 0 : index
    %133 = vector.load %arg11[%c1_51, %c0_52, %c0_53] : memref<5x1x32xf32, #tpu.memory_space<vmem>>, vector<1x1x32xf32>
    %134 = vector.shape_cast %133 : vector<1x1x32xf32> to vector<1x32xf32>
    %135 = vector.shape_cast %134 : vector<1x32xf32> to vector<1x1x1x32xf32>
    %136 = vector.broadcast %135 : vector<1x1x1x32xf32> to vector<2x8x8x32xf32>
    %137 = arith.mulf %132, %136 : vector<2x8x8x32xf32>
    %cst_54 = arith.constant dense<0.000000e+00> : vector<2x8x8xf32>
    %138 = vector.multi_reduction <add>, %137, %cst_54 [3] : vector<2x8x8x32xf32> to vector<2x8x8xf32>
    %cst_55 = arith.constant 0.000000e+00 : f32
    %139 = vector.broadcast %cst_55 : f32 to vector<2x8x8xf32>
    %140 = arith.cmpf ogt, %4, %139 : vector<2x8x8xf32>
    %cst_56 = arith.constant -1.000000e+30 : f32
    %141 = vector.broadcast %cst_56 : f32 to vector<2x8x8xf32>
    %142 = arith.select %140, %138, %141 : vector<2x8x8xi1>, vector<2x8x8xf32>
    %cst_57 = arith.constant dense<0xFF800000> : vector<2x8xf32>
    %143 = vector.multi_reduction <maximumf>, %142, %cst_57 [1] : vector<2x8x8xf32> to vector<2x8xf32>
    %144 = vector.shape_cast %143 : vector<2x8xf32> to vector<2x1x8xf32>
    %145 = vector.broadcast %144 : vector<2x1x8xf32> to vector<2x8x8xf32>
    %146 = arith.subf %142, %145 : vector<2x8x8xf32>
    %147 = math.exp %146 : vector<2x8x8xf32>
    %148 = arith.mulf %147, %4 : vector<2x8x8xf32>
    %cst_58 = arith.constant dense<0.000000e+00> : vector<2x8xf32>
    %149 = vector.multi_reduction <add>, %148, %cst_58 [1] : vector<2x8x8xf32> to vector<2x8xf32>
    %150 = vector.shape_cast %149 : vector<2x8xf32> to vector<2x1x8xf32>
    %cst_59 = arith.constant 9.99999968E-21 : f32
    %151 = vector.broadcast %cst_59 : f32 to vector<2x1x8xf32>
    %152 = arith.maximumf %150, %151 : vector<2x1x8xf32>
    %153 = vector.broadcast %152 : vector<2x1x8xf32> to vector<2x8x8xf32>
    %154 = arith.divf %148, %153 : vector<2x8x8xf32>
    %155 = vector.shape_cast %113 : vector<2x8x32xf32> to vector<2x8x1x32xf32>
    %156 = vector.shape_cast %115 : vector<2x8x32xf32> to vector<2x1x8x32xf32>
    %157 = vector.broadcast %155 : vector<2x8x1x32xf32> to vector<2x8x8x32xf32>
    %158 = vector.broadcast %156 : vector<2x1x8x32xf32> to vector<2x8x8x32xf32>
    %159 = arith.addf %157, %158 : vector<2x8x8x32xf32>
    %160 = arith.addf %159, %121 : vector<2x8x8x32xf32>
    %cst_60 = arith.constant 0.000000e+00 : f32
    %161 = vector.broadcast %cst_60 : f32 to vector<2x8x8x32xf32>
    %162 = arith.cmpf oge, %160, %161 : vector<2x8x8x32xf32>
    %cst_61 = arith.constant 2.000000e-01 : f32
    %163 = vector.broadcast %cst_61 : f32 to vector<2x8x8x32xf32>
    %164 = arith.mulf %163, %160 : vector<2x8x8x32xf32>
    %165 = arith.select %162, %160, %164 : vector<2x8x8x32xi1>, vector<2x8x8x32xf32>
    %166 = vector.shape_cast %154 : vector<2x8x8xf32> to vector<2x8x8x1xf32>
    %167 = vector.broadcast %166 : vector<2x8x8x1xf32> to vector<2x8x8x32xf32>
    %168 = arith.mulf %167, %165 : vector<2x8x8x32xf32>
    %cst_62 = arith.constant dense<0.000000e+00> : vector<2x8x32xf32>
    %169 = vector.multi_reduction <add>, %168, %cst_62 [1] : vector<2x8x8x32xf32> to vector<2x8x32xf32>
    %170 = vector.shape_cast %169 : vector<2x8x32xf32> to vector<16x32xf32>
    %171 = arith.addf %170, %116 : vector<16x32xf32>
    %cst_63 = arith.constant 0.000000e+00 : f32
    %172 = vector.broadcast %cst_63 : f32 to vector<16x32xf32>
    %173 = arith.cmpf oge, %171, %172 : vector<16x32xf32>
    %cst_64 = arith.constant 2.000000e-01 : f32
    %174 = vector.broadcast %cst_64 : f32 to vector<16x32xf32>
    %175 = arith.mulf %174, %171 : vector<16x32xf32>
    %176 = arith.select %173, %171, %175 : vector<16x32xi1>, vector<16x32xf32>
    %177 = arith.addf %176, %15 : vector<16x32xf32>
    %cst_65 = arith.constant 0.000000e+00 : f32
    %178 = vector.broadcast %cst_65 : f32 to vector<16x32xf32>
    %179 = arith.maximumf %177, %178 : vector<16x32xf32>
    %c2 = arith.constant 2 : index
    %c0_66 = arith.constant 0 : index
    %c0_67 = arith.constant 0 : index
    %180 = vector.load %arg7[%c2, %c0_66, %c0_67] : memref<5x32x160xf32, #tpu.memory_space<vmem>>, vector<1x32x160xf32>
    %181 = vector.shape_cast %180 : vector<1x32x160xf32> to vector<32x160xf32>
    %c2_68 = arith.constant 2 : index
    %c0_69 = arith.constant 0 : index
    %c0_70 = arith.constant 0 : index
    %182 = vector.load %arg8[%c2_68, %c0_69, %c0_70] : memref<5x1x160xf32, #tpu.memory_space<vmem>>, vector<1x1x160xf32>
    %183 = vector.shape_cast %182 : vector<1x1x160xf32> to vector<1x160xf32>
    %cst_71 = arith.constant dense<0.000000e+00> : vector<16x160xf32>
    %184 = tpu.matmul %179, %181, %cst_71 {dimension_numbers = #tpu.dot_dimension_numbers<[1], [0], [0], [1], [0, 0, 1, 1], [], []>} : vector<16x32xf32>, vector<32x160xf32>, vector<16x160xf32> -> vector<16x160xf32>
    %185 = vector.broadcast %183 : vector<1x160xf32> to vector<16x160xf32>
    %186 = arith.addf %184, %185 : vector<16x160xf32>
    %187 = vector.extract_strided_slice %186 {offsets = [0, 0], sizes = [16, 32], strides = [1, 1]} : vector<16x160xf32> to vector<16x32xf32>
    %188 = vector.shape_cast %187 : vector<16x32xf32> to vector<2x8x32xf32>
    %189 = vector.extract_strided_slice %186 {offsets = [0, 32], sizes = [16, 32], strides = [1, 1]} : vector<16x160xf32> to vector<16x32xf32>
    %190 = vector.shape_cast %189 : vector<16x32xf32> to vector<2x8x32xf32>
    %191 = vector.extract_strided_slice %186 {offsets = [0, 64], sizes = [16, 32], strides = [1, 1]} : vector<16x160xf32> to vector<16x32xf32>
    %192 = vector.shape_cast %191 : vector<16x32xf32> to vector<2x8x32xf32>
    %193 = vector.extract_strided_slice %186 {offsets = [0, 96], sizes = [16, 32], strides = [1, 1]} : vector<16x160xf32> to vector<16x32xf32>
    %194 = vector.shape_cast %193 : vector<16x32xf32> to vector<2x8x32xf32>
    %195 = vector.extract_strided_slice %186 {offsets = [0, 128], sizes = [16, 32], strides = [1, 1]} : vector<16x160xf32> to vector<16x32xf32>
    %196 = vector.extract_strided_slice %21 {offsets = [0, 128], sizes = [128, 64], strides = [1, 1]} : vector<128x320xf32> to vector<128x64xf32>
    %197 = vector.extract_strided_slice %196 {offsets = [0, 0], sizes = [128, 32], strides = [1, 1]} : vector<128x64xf32> to vector<128x32xf32>
    %198 = vector.shape_cast %197 : vector<128x32xf32> to vector<2x8x8x32xf32>
    %199 = vector.extract_strided_slice %196 {offsets = [0, 32], sizes = [128, 32], strides = [1, 1]} : vector<128x64xf32> to vector<128x32xf32>
    %200 = vector.shape_cast %199 : vector<128x32xf32> to vector<2x8x8x32xf32>
    %201 = vector.shape_cast %188 : vector<2x8x32xf32> to vector<2x8x1x32xf32>
    %202 = vector.shape_cast %190 : vector<2x8x32xf32> to vector<2x1x8x32xf32>
    %203 = vector.broadcast %201 : vector<2x8x1x32xf32> to vector<2x8x8x32xf32>
    %204 = vector.broadcast %202 : vector<2x1x8x32xf32> to vector<2x8x8x32xf32>
    %205 = arith.addf %203, %204 : vector<2x8x8x32xf32>
    %206 = arith.addf %205, %198 : vector<2x8x8x32xf32>
    %cst_72 = arith.constant 0.000000e+00 : f32
    %207 = vector.broadcast %cst_72 : f32 to vector<2x8x8x32xf32>
    %208 = arith.cmpf oge, %206, %207 : vector<2x8x8x32xf32>
    %cst_73 = arith.constant 2.000000e-01 : f32
    %209 = vector.broadcast %cst_73 : f32 to vector<2x8x8x32xf32>
    %210 = arith.mulf %209, %206 : vector<2x8x8x32xf32>
    %211 = arith.select %208, %206, %210 : vector<2x8x8x32xi1>, vector<2x8x8x32xf32>
    %c2_74 = arith.constant 2 : index
    %c0_75 = arith.constant 0 : index
    %c0_76 = arith.constant 0 : index
    %212 = vector.load %arg11[%c2_74, %c0_75, %c0_76] : memref<5x1x32xf32, #tpu.memory_space<vmem>>, vector<1x1x32xf32>
    %213 = vector.shape_cast %212 : vector<1x1x32xf32> to vector<1x32xf32>
    %214 = vector.shape_cast %213 : vector<1x32xf32> to vector<1x1x1x32xf32>
    %215 = vector.broadcast %214 : vector<1x1x1x32xf32> to vector<2x8x8x32xf32>
    %216 = arith.mulf %211, %215 : vector<2x8x8x32xf32>
    %cst_77 = arith.constant dense<0.000000e+00> : vector<2x8x8xf32>
    %217 = vector.multi_reduction <add>, %216, %cst_77 [3] : vector<2x8x8x32xf32> to vector<2x8x8xf32>
    %cst_78 = arith.constant 0.000000e+00 : f32
    %218 = vector.broadcast %cst_78 : f32 to vector<2x8x8xf32>
    %219 = arith.cmpf ogt, %4, %218 : vector<2x8x8xf32>
    %cst_79 = arith.constant -1.000000e+30 : f32
    %220 = vector.broadcast %cst_79 : f32 to vector<2x8x8xf32>
    %221 = arith.select %219, %217, %220 : vector<2x8x8xi1>, vector<2x8x8xf32>
    %cst_80 = arith.constant dense<0xFF800000> : vector<2x8xf32>
    %222 = vector.multi_reduction <maximumf>, %221, %cst_80 [1] : vector<2x8x8xf32> to vector<2x8xf32>
    %223 = vector.shape_cast %222 : vector<2x8xf32> to vector<2x1x8xf32>
    %224 = vector.broadcast %223 : vector<2x1x8xf32> to vector<2x8x8xf32>
    %225 = arith.subf %221, %224 : vector<2x8x8xf32>
    %226 = math.exp %225 : vector<2x8x8xf32>
    %227 = arith.mulf %226, %4 : vector<2x8x8xf32>
    %cst_81 = arith.constant dense<0.000000e+00> : vector<2x8xf32>
    %228 = vector.multi_reduction <add>, %227, %cst_81 [1] : vector<2x8x8xf32> to vector<2x8xf32>
    %229 = vector.shape_cast %228 : vector<2x8xf32> to vector<2x1x8xf32>
    %cst_82 = arith.constant 9.99999968E-21 : f32
    %230 = vector.broadcast %cst_82 : f32 to vector<2x1x8xf32>
    %231 = arith.maximumf %229, %230 : vector<2x1x8xf32>
    %232 = vector.broadcast %231 : vector<2x1x8xf32> to vector<2x8x8xf32>
    %233 = arith.divf %227, %232 : vector<2x8x8xf32>
    %234 = vector.shape_cast %192 : vector<2x8x32xf32> to vector<2x8x1x32xf32>
    %235 = vector.shape_cast %194 : vector<2x8x32xf32> to vector<2x1x8x32xf32>
    %236 = vector.broadcast %234 : vector<2x8x1x32xf32> to vector<2x8x8x32xf32>
    %237 = vector.broadcast %235 : vector<2x1x8x32xf32> to vector<2x8x8x32xf32>
    %238 = arith.addf %236, %237 : vector<2x8x8x32xf32>
    %239 = arith.addf %238, %200 : vector<2x8x8x32xf32>
    %cst_83 = arith.constant 0.000000e+00 : f32
    %240 = vector.broadcast %cst_83 : f32 to vector<2x8x8x32xf32>
    %241 = arith.cmpf oge, %239, %240 : vector<2x8x8x32xf32>
    %cst_84 = arith.constant 2.000000e-01 : f32
    %242 = vector.broadcast %cst_84 : f32 to vector<2x8x8x32xf32>
    %243 = arith.mulf %242, %239 : vector<2x8x8x32xf32>
    %244 = arith.select %241, %239, %243 : vector<2x8x8x32xi1>, vector<2x8x8x32xf32>
    %245 = vector.shape_cast %233 : vector<2x8x8xf32> to vector<2x8x8x1xf32>
    %246 = vector.broadcast %245 : vector<2x8x8x1xf32> to vector<2x8x8x32xf32>
    %247 = arith.mulf %246, %244 : vector<2x8x8x32xf32>
    %cst_85 = arith.constant dense<0.000000e+00> : vector<2x8x32xf32>
    %248 = vector.multi_reduction <add>, %247, %cst_85 [1] : vector<2x8x8x32xf32> to vector<2x8x32xf32>
    %249 = vector.shape_cast %248 : vector<2x8x32xf32> to vector<16x32xf32>
    %250 = arith.addf %249, %195 : vector<16x32xf32>
    %cst_86 = arith.constant 0.000000e+00 : f32
    %251 = vector.broadcast %cst_86 : f32 to vector<16x32xf32>
    %252 = arith.cmpf oge, %250, %251 : vector<16x32xf32>
    %cst_87 = arith.constant 2.000000e-01 : f32
    %253 = vector.broadcast %cst_87 : f32 to vector<16x32xf32>
    %254 = arith.mulf %253, %250 : vector<16x32xf32>
    %255 = arith.select %252, %250, %254 : vector<16x32xi1>, vector<16x32xf32>
    %256 = arith.addf %255, %15 : vector<16x32xf32>
    %cst_88 = arith.constant 0.000000e+00 : f32
    %257 = vector.broadcast %cst_88 : f32 to vector<16x32xf32>
    %258 = arith.maximumf %256, %257 : vector<16x32xf32>
    %c3 = arith.constant 3 : index
    %c0_89 = arith.constant 0 : index
    %c0_90 = arith.constant 0 : index
    %259 = vector.load %arg7[%c3, %c0_89, %c0_90] : memref<5x32x160xf32, #tpu.memory_space<vmem>>, vector<1x32x160xf32>
    %260 = vector.shape_cast %259 : vector<1x32x160xf32> to vector<32x160xf32>
    %c3_91 = arith.constant 3 : index
    %c0_92 = arith.constant 0 : index
    %c0_93 = arith.constant 0 : index
    %261 = vector.load %arg8[%c3_91, %c0_92, %c0_93] : memref<5x1x160xf32, #tpu.memory_space<vmem>>, vector<1x1x160xf32>
    %262 = vector.shape_cast %261 : vector<1x1x160xf32> to vector<1x160xf32>
    %cst_94 = arith.constant dense<0.000000e+00> : vector<16x160xf32>
    %263 = tpu.matmul %258, %260, %cst_94 {dimension_numbers = #tpu.dot_dimension_numbers<[1], [0], [0], [1], [0, 0, 1, 1], [], []>} : vector<16x32xf32>, vector<32x160xf32>, vector<16x160xf32> -> vector<16x160xf32>
    %264 = vector.broadcast %262 : vector<1x160xf32> to vector<16x160xf32>
    %265 = arith.addf %263, %264 : vector<16x160xf32>
    %266 = vector.extract_strided_slice %265 {offsets = [0, 0], sizes = [16, 32], strides = [1, 1]} : vector<16x160xf32> to vector<16x32xf32>
    %267 = vector.shape_cast %266 : vector<16x32xf32> to vector<2x8x32xf32>
    %268 = vector.extract_strided_slice %265 {offsets = [0, 32], sizes = [16, 32], strides = [1, 1]} : vector<16x160xf32> to vector<16x32xf32>
    %269 = vector.shape_cast %268 : vector<16x32xf32> to vector<2x8x32xf32>
    %270 = vector.extract_strided_slice %265 {offsets = [0, 64], sizes = [16, 32], strides = [1, 1]} : vector<16x160xf32> to vector<16x32xf32>
    %271 = vector.shape_cast %270 : vector<16x32xf32> to vector<2x8x32xf32>
    %272 = vector.extract_strided_slice %265 {offsets = [0, 96], sizes = [16, 32], strides = [1, 1]} : vector<16x160xf32> to vector<16x32xf32>
    %273 = vector.shape_cast %272 : vector<16x32xf32> to vector<2x8x32xf32>
    %274 = vector.extract_strided_slice %265 {offsets = [0, 128], sizes = [16, 32], strides = [1, 1]} : vector<16x160xf32> to vector<16x32xf32>
    %275 = vector.extract_strided_slice %21 {offsets = [0, 192], sizes = [128, 64], strides = [1, 1]} : vector<128x320xf32> to vector<128x64xf32>
    %276 = vector.extract_strided_slice %275 {offsets = [0, 0], sizes = [128, 32], strides = [1, 1]} : vector<128x64xf32> to vector<128x32xf32>
    %277 = vector.shape_cast %276 : vector<128x32xf32> to vector<2x8x8x32xf32>
    %278 = vector.extract_strided_slice %275 {offsets = [0, 32], sizes = [128, 32], strides = [1, 1]} : vector<128x64xf32> to vector<128x32xf32>
    %279 = vector.shape_cast %278 : vector<128x32xf32> to vector<2x8x8x32xf32>
    %280 = vector.shape_cast %267 : vector<2x8x32xf32> to vector<2x8x1x32xf32>
    %281 = vector.shape_cast %269 : vector<2x8x32xf32> to vector<2x1x8x32xf32>
    %282 = vector.broadcast %280 : vector<2x8x1x32xf32> to vector<2x8x8x32xf32>
    %283 = vector.broadcast %281 : vector<2x1x8x32xf32> to vector<2x8x8x32xf32>
    %284 = arith.addf %282, %283 : vector<2x8x8x32xf32>
    %285 = arith.addf %284, %277 : vector<2x8x8x32xf32>
    %cst_95 = arith.constant 0.000000e+00 : f32
    %286 = vector.broadcast %cst_95 : f32 to vector<2x8x8x32xf32>
    %287 = arith.cmpf oge, %285, %286 : vector<2x8x8x32xf32>
    %cst_96 = arith.constant 2.000000e-01 : f32
    %288 = vector.broadcast %cst_96 : f32 to vector<2x8x8x32xf32>
    %289 = arith.mulf %288, %285 : vector<2x8x8x32xf32>
    %290 = arith.select %287, %285, %289 : vector<2x8x8x32xi1>, vector<2x8x8x32xf32>
    %c3_97 = arith.constant 3 : index
    %c0_98 = arith.constant 0 : index
    %c0_99 = arith.constant 0 : index
    %291 = vector.load %arg11[%c3_97, %c0_98, %c0_99] : memref<5x1x32xf32, #tpu.memory_space<vmem>>, vector<1x1x32xf32>
    %292 = vector.shape_cast %291 : vector<1x1x32xf32> to vector<1x32xf32>
    %293 = vector.shape_cast %292 : vector<1x32xf32> to vector<1x1x1x32xf32>
    %294 = vector.broadcast %293 : vector<1x1x1x32xf32> to vector<2x8x8x32xf32>
    %295 = arith.mulf %290, %294 : vector<2x8x8x32xf32>
    %cst_100 = arith.constant dense<0.000000e+00> : vector<2x8x8xf32>
    %296 = vector.multi_reduction <add>, %295, %cst_100 [3] : vector<2x8x8x32xf32> to vector<2x8x8xf32>
    %cst_101 = arith.constant 0.000000e+00 : f32
    %297 = vector.broadcast %cst_101 : f32 to vector<2x8x8xf32>
    %298 = arith.cmpf ogt, %4, %297 : vector<2x8x8xf32>
    %cst_102 = arith.constant -1.000000e+30 : f32
    %299 = vector.broadcast %cst_102 : f32 to vector<2x8x8xf32>
    %300 = arith.select %298, %296, %299 : vector<2x8x8xi1>, vector<2x8x8xf32>
    %cst_103 = arith.constant dense<0xFF800000> : vector<2x8xf32>
    %301 = vector.multi_reduction <maximumf>, %300, %cst_103 [1] : vector<2x8x8xf32> to vector<2x8xf32>
    %302 = vector.shape_cast %301 : vector<2x8xf32> to vector<2x1x8xf32>
    %303 = vector.broadcast %302 : vector<2x1x8xf32> to vector<2x8x8xf32>
    %304 = arith.subf %300, %303 : vector<2x8x8xf32>
    %305 = math.exp %304 : vector<2x8x8xf32>
    %306 = arith.mulf %305, %4 : vector<2x8x8xf32>
    %cst_104 = arith.constant dense<0.000000e+00> : vector<2x8xf32>
    %307 = vector.multi_reduction <add>, %306, %cst_104 [1] : vector<2x8x8xf32> to vector<2x8xf32>
    %308 = vector.shape_cast %307 : vector<2x8xf32> to vector<2x1x8xf32>
    %cst_105 = arith.constant 9.99999968E-21 : f32
    %309 = vector.broadcast %cst_105 : f32 to vector<2x1x8xf32>
    %310 = arith.maximumf %308, %309 : vector<2x1x8xf32>
    %311 = vector.broadcast %310 : vector<2x1x8xf32> to vector<2x8x8xf32>
    %312 = arith.divf %306, %311 : vector<2x8x8xf32>
    %313 = vector.shape_cast %271 : vector<2x8x32xf32> to vector<2x8x1x32xf32>
    %314 = vector.shape_cast %273 : vector<2x8x32xf32> to vector<2x1x8x32xf32>
    %315 = vector.broadcast %313 : vector<2x8x1x32xf32> to vector<2x8x8x32xf32>
    %316 = vector.broadcast %314 : vector<2x1x8x32xf32> to vector<2x8x8x32xf32>
    %317 = arith.addf %315, %316 : vector<2x8x8x32xf32>
    %318 = arith.addf %317, %279 : vector<2x8x8x32xf32>
    %cst_106 = arith.constant 0.000000e+00 : f32
    %319 = vector.broadcast %cst_106 : f32 to vector<2x8x8x32xf32>
    %320 = arith.cmpf oge, %318, %319 : vector<2x8x8x32xf32>
    %cst_107 = arith.constant 2.000000e-01 : f32
    %321 = vector.broadcast %cst_107 : f32 to vector<2x8x8x32xf32>
    %322 = arith.mulf %321, %318 : vector<2x8x8x32xf32>
    %323 = arith.select %320, %318, %322 : vector<2x8x8x32xi1>, vector<2x8x8x32xf32>
    %324 = vector.shape_cast %312 : vector<2x8x8xf32> to vector<2x8x8x1xf32>
    %325 = vector.broadcast %324 : vector<2x8x8x1xf32> to vector<2x8x8x32xf32>
    %326 = arith.mulf %325, %323 : vector<2x8x8x32xf32>
    %cst_108 = arith.constant dense<0.000000e+00> : vector<2x8x32xf32>
    %327 = vector.multi_reduction <add>, %326, %cst_108 [1] : vector<2x8x8x32xf32> to vector<2x8x32xf32>
    %328 = vector.shape_cast %327 : vector<2x8x32xf32> to vector<16x32xf32>
    %329 = arith.addf %328, %274 : vector<16x32xf32>
    %cst_109 = arith.constant 0.000000e+00 : f32
    %330 = vector.broadcast %cst_109 : f32 to vector<16x32xf32>
    %331 = arith.cmpf oge, %329, %330 : vector<16x32xf32>
    %cst_110 = arith.constant 2.000000e-01 : f32
    %332 = vector.broadcast %cst_110 : f32 to vector<16x32xf32>
    %333 = arith.mulf %332, %329 : vector<16x32xf32>
    %334 = arith.select %331, %329, %333 : vector<16x32xi1>, vector<16x32xf32>
    %335 = arith.addf %334, %15 : vector<16x32xf32>
    %cst_111 = arith.constant 0.000000e+00 : f32
    %336 = vector.broadcast %cst_111 : f32 to vector<16x32xf32>
    %337 = arith.maximumf %335, %336 : vector<16x32xf32>
    %c4 = arith.constant 4 : index
    %c0_112 = arith.constant 0 : index
    %c0_113 = arith.constant 0 : index
    %338 = vector.load %arg7[%c4, %c0_112, %c0_113] : memref<5x32x160xf32, #tpu.memory_space<vmem>>, vector<1x32x160xf32>
    %339 = vector.shape_cast %338 : vector<1x32x160xf32> to vector<32x160xf32>
    %c4_114 = arith.constant 4 : index
    %c0_115 = arith.constant 0 : index
    %c0_116 = arith.constant 0 : index
    %340 = vector.load %arg8[%c4_114, %c0_115, %c0_116] : memref<5x1x160xf32, #tpu.memory_space<vmem>>, vector<1x1x160xf32>
    %341 = vector.shape_cast %340 : vector<1x1x160xf32> to vector<1x160xf32>
    %cst_117 = arith.constant dense<0.000000e+00> : vector<16x160xf32>
    %342 = tpu.matmul %337, %339, %cst_117 {dimension_numbers = #tpu.dot_dimension_numbers<[1], [0], [0], [1], [0, 0, 1, 1], [], []>} : vector<16x32xf32>, vector<32x160xf32>, vector<16x160xf32> -> vector<16x160xf32>
    %343 = vector.broadcast %341 : vector<1x160xf32> to vector<16x160xf32>
    %344 = arith.addf %342, %343 : vector<16x160xf32>
    %345 = vector.extract_strided_slice %344 {offsets = [0, 0], sizes = [16, 32], strides = [1, 1]} : vector<16x160xf32> to vector<16x32xf32>
    %346 = vector.shape_cast %345 : vector<16x32xf32> to vector<2x8x32xf32>
    %347 = vector.extract_strided_slice %344 {offsets = [0, 32], sizes = [16, 32], strides = [1, 1]} : vector<16x160xf32> to vector<16x32xf32>
    %348 = vector.shape_cast %347 : vector<16x32xf32> to vector<2x8x32xf32>
    %349 = vector.extract_strided_slice %344 {offsets = [0, 64], sizes = [16, 32], strides = [1, 1]} : vector<16x160xf32> to vector<16x32xf32>
    %350 = vector.shape_cast %349 : vector<16x32xf32> to vector<2x8x32xf32>
    %351 = vector.extract_strided_slice %344 {offsets = [0, 96], sizes = [16, 32], strides = [1, 1]} : vector<16x160xf32> to vector<16x32xf32>
    %352 = vector.shape_cast %351 : vector<16x32xf32> to vector<2x8x32xf32>
    %353 = vector.extract_strided_slice %344 {offsets = [0, 128], sizes = [16, 32], strides = [1, 1]} : vector<16x160xf32> to vector<16x32xf32>
    %354 = vector.extract_strided_slice %21 {offsets = [0, 256], sizes = [128, 64], strides = [1, 1]} : vector<128x320xf32> to vector<128x64xf32>
    %355 = vector.extract_strided_slice %354 {offsets = [0, 0], sizes = [128, 32], strides = [1, 1]} : vector<128x64xf32> to vector<128x32xf32>
    %356 = vector.shape_cast %355 : vector<128x32xf32> to vector<2x8x8x32xf32>
    %357 = vector.extract_strided_slice %354 {offsets = [0, 32], sizes = [128, 32], strides = [1, 1]} : vector<128x64xf32> to vector<128x32xf32>
    %358 = vector.shape_cast %357 : vector<128x32xf32> to vector<2x8x8x32xf32>
    %359 = vector.shape_cast %346 : vector<2x8x32xf32> to vector<2x8x1x32xf32>
    %360 = vector.shape_cast %348 : vector<2x8x32xf32> to vector<2x1x8x32xf32>
    %361 = vector.broadcast %359 : vector<2x8x1x32xf32> to vector<2x8x8x32xf32>
    %362 = vector.broadcast %360 : vector<2x1x8x32xf32> to vector<2x8x8x32xf32>
    %363 = arith.addf %361, %362 : vector<2x8x8x32xf32>
    %364 = arith.addf %363, %356 : vector<2x8x8x32xf32>
    %cst_118 = arith.constant 0.000000e+00 : f32
    %365 = vector.broadcast %cst_118 : f32 to vector<2x8x8x32xf32>
    %366 = arith.cmpf oge, %364, %365 : vector<2x8x8x32xf32>
    %cst_119 = arith.constant 2.000000e-01 : f32
    %367 = vector.broadcast %cst_119 : f32 to vector<2x8x8x32xf32>
    %368 = arith.mulf %367, %364 : vector<2x8x8x32xf32>
    %369 = arith.select %366, %364, %368 : vector<2x8x8x32xi1>, vector<2x8x8x32xf32>
    %c4_120 = arith.constant 4 : index
    %c0_121 = arith.constant 0 : index
    %c0_122 = arith.constant 0 : index
    %370 = vector.load %arg11[%c4_120, %c0_121, %c0_122] : memref<5x1x32xf32, #tpu.memory_space<vmem>>, vector<1x1x32xf32>
    %371 = vector.shape_cast %370 : vector<1x1x32xf32> to vector<1x32xf32>
    %372 = vector.shape_cast %371 : vector<1x32xf32> to vector<1x1x1x32xf32>
    %373 = vector.broadcast %372 : vector<1x1x1x32xf32> to vector<2x8x8x32xf32>
    %374 = arith.mulf %369, %373 : vector<2x8x8x32xf32>
    %cst_123 = arith.constant dense<0.000000e+00> : vector<2x8x8xf32>
    %375 = vector.multi_reduction <add>, %374, %cst_123 [3] : vector<2x8x8x32xf32> to vector<2x8x8xf32>
    %cst_124 = arith.constant 0.000000e+00 : f32
    %376 = vector.broadcast %cst_124 : f32 to vector<2x8x8xf32>
    %377 = arith.cmpf ogt, %4, %376 : vector<2x8x8xf32>
    %cst_125 = arith.constant -1.000000e+30 : f32
    %378 = vector.broadcast %cst_125 : f32 to vector<2x8x8xf32>
    %379 = arith.select %377, %375, %378 : vector<2x8x8xi1>, vector<2x8x8xf32>
    %cst_126 = arith.constant dense<0xFF800000> : vector<2x8xf32>
    %380 = vector.multi_reduction <maximumf>, %379, %cst_126 [1] : vector<2x8x8xf32> to vector<2x8xf32>
    %381 = vector.shape_cast %380 : vector<2x8xf32> to vector<2x1x8xf32>
    %382 = vector.broadcast %381 : vector<2x1x8xf32> to vector<2x8x8xf32>
    %383 = arith.subf %379, %382 : vector<2x8x8xf32>
    %384 = math.exp %383 : vector<2x8x8xf32>
    %385 = arith.mulf %384, %4 : vector<2x8x8xf32>
    %cst_127 = arith.constant dense<0.000000e+00> : vector<2x8xf32>
    %386 = vector.multi_reduction <add>, %385, %cst_127 [1] : vector<2x8x8xf32> to vector<2x8xf32>
    %387 = vector.shape_cast %386 : vector<2x8xf32> to vector<2x1x8xf32>
    %cst_128 = arith.constant 9.99999968E-21 : f32
    %388 = vector.broadcast %cst_128 : f32 to vector<2x1x8xf32>
    %389 = arith.maximumf %387, %388 : vector<2x1x8xf32>
    %390 = vector.broadcast %389 : vector<2x1x8xf32> to vector<2x8x8xf32>
    %391 = arith.divf %385, %390 : vector<2x8x8xf32>
    %392 = vector.shape_cast %350 : vector<2x8x32xf32> to vector<2x8x1x32xf32>
    %393 = vector.shape_cast %352 : vector<2x8x32xf32> to vector<2x1x8x32xf32>
    %394 = vector.broadcast %392 : vector<2x8x1x32xf32> to vector<2x8x8x32xf32>
    %395 = vector.broadcast %393 : vector<2x1x8x32xf32> to vector<2x8x8x32xf32>
    %396 = arith.addf %394, %395 : vector<2x8x8x32xf32>
    %397 = arith.addf %396, %358 : vector<2x8x8x32xf32>
    %cst_129 = arith.constant 0.000000e+00 : f32
    %398 = vector.broadcast %cst_129 : f32 to vector<2x8x8x32xf32>
    %399 = arith.cmpf oge, %397, %398 : vector<2x8x8x32xf32>
    %cst_130 = arith.constant 2.000000e-01 : f32
    %400 = vector.broadcast %cst_130 : f32 to vector<2x8x8x32xf32>
    %401 = arith.mulf %400, %397 : vector<2x8x8x32xf32>
    %402 = arith.select %399, %397, %401 : vector<2x8x8x32xi1>, vector<2x8x8x32xf32>
    %403 = vector.shape_cast %391 : vector<2x8x8xf32> to vector<2x8x8x1xf32>
    %404 = vector.broadcast %403 : vector<2x8x8x1xf32> to vector<2x8x8x32xf32>
    %405 = arith.mulf %404, %402 : vector<2x8x8x32xf32>
    %cst_131 = arith.constant dense<0.000000e+00> : vector<2x8x32xf32>
    %406 = vector.multi_reduction <add>, %405, %cst_131 [1] : vector<2x8x8x32xf32> to vector<2x8x32xf32>
    %407 = vector.shape_cast %406 : vector<2x8x32xf32> to vector<16x32xf32>
    %408 = arith.addf %407, %353 : vector<16x32xf32>
    %cst_132 = arith.constant 0.000000e+00 : f32
    %409 = vector.broadcast %cst_132 : f32 to vector<16x32xf32>
    %410 = arith.cmpf oge, %408, %409 : vector<16x32xf32>
    %cst_133 = arith.constant 2.000000e-01 : f32
    %411 = vector.broadcast %cst_133 : f32 to vector<16x32xf32>
    %412 = arith.mulf %411, %408 : vector<16x32xf32>
    %413 = arith.select %410, %408, %412 : vector<16x32xi1>, vector<16x32xf32>
    %414 = arith.addf %413, %15 : vector<16x32xf32>
    %cst_134 = arith.constant 0.000000e+00 : f32
    %415 = vector.broadcast %cst_134 : f32 to vector<16x32xf32>
    %416 = arith.maximumf %414, %415 : vector<16x32xf32>
    %c0_135 = arith.constant 0 : index
    %c0_136 = arith.constant 0 : index
    %417 = vector.load %arg12[%c0_135, %c0_136] : memref<32x256xf32, #tpu.memory_space<vmem>>, vector<32x256xf32>
    %cst_137 = arith.constant dense<0.000000e+00> : vector<16x256xf32>
    %418 = tpu.matmul %416, %417, %cst_137 {dimension_numbers = #tpu.dot_dimension_numbers<[1], [0], [0], [1], [0, 0, 1, 1], [], []>} : vector<16x32xf32>, vector<32x256xf32>, vector<16x256xf32> -> vector<16x256xf32>
    %419 = arith.addf %16, %418 : vector<16x256xf32>
    %c0_138 = arith.constant 0 : index
    %c0_139 = arith.constant 0 : index
    %420 = vector.load %arg13[%c0_138, %c0_139] : memref<1x256xf32, #tpu.memory_space<vmem>>, vector<1x256xf32>
    %421 = vector.broadcast %420 : vector<1x256xf32> to vector<16x256xf32>
    %422 = arith.addf %419, %421 : vector<16x256xf32>
    %cst_140 = arith.constant 0.000000e+00 : f32
    %423 = vector.broadcast %cst_140 : f32 to vector<16x256xf32>
    %424 = arith.cmpf oge, %422, %423 : vector<16x256xf32>
    %cst_141 = arith.constant 2.000000e-01 : f32
    %425 = vector.broadcast %cst_141 : f32 to vector<16x256xf32>
    %426 = arith.mulf %425, %422 : vector<16x256xf32>
    %427 = arith.select %424, %422, %426 : vector<16x256xi1>, vector<16x256xf32>
    %c0_142 = arith.constant 0 : index
    %c0_143 = arith.constant 0 : index
    %c0_144 = arith.constant 0 : index
    %428 = vector.load %arg4[%c0_142, %c0_143, %c0_144] : memref<2x8x1xf32, #tpu.memory_space<vmem>>, vector<2x8x1xf32>
    %429 = vector.shape_cast %427 : vector<16x256xf32> to vector<2x8x256xf32>
    %430 = vector.broadcast %428 : vector<2x8x1xf32> to vector<2x8x256xf32>
    %431 = arith.mulf %429, %430 : vector<2x8x256xf32>
    %cst_145 = arith.constant dense<0.000000e+00> : vector<2x256xf32>
    %432 = vector.multi_reduction <add>, %431, %cst_145 [1] : vector<2x8x256xf32> to vector<2x256xf32>
    %c0_146 = arith.constant 0 : index
    %c0_147 = arith.constant 0 : index
    %433 = vector.load %arg14[%c0_146, %c0_147] : memref<256x1xf32, #tpu.memory_space<vmem>>, vector<256x1xf32>
    %cst_148 = arith.constant dense<0.000000e+00> : vector<2x1xf32>
    %434 = tpu.matmul %432, %433, %cst_148 {dimension_numbers = #tpu.dot_dimension_numbers<[1], [0], [0], [1], [0, 0, 1, 1], [], []>} : vector<2x256xf32>, vector<256x1xf32>, vector<2x1xf32> -> vector<2x1xf32>
    %c0_149 = arith.constant 0 : index
    %c0_150 = arith.constant 0 : index
    %435 = vector.load %arg15[%c0_149, %c0_150] : memref<1x1xf32, #tpu.memory_space<vmem>>, vector<1x1xf32>
    %436 = vector.broadcast %435 : vector<1x1xf32> to vector<2x1xf32>
    %437 = arith.addf %434, %436 : vector<2x1xf32>
    %438 = vector.shape_cast %437 : vector<2x1xf32> to vector<1x1x2xf32>
    %c0_151 = arith.constant 0 : index
    %c0_152 = arith.constant 0 : index
    %c0_153 = arith.constant 0 : index
    %439 = vector.load %arg16[%c0_151, %c0_152, %c0_153] : memref<1x1x2xf32, #tpu.memory_space<vmem>>, vector<1x1x2xf32>
    tpu.vector_store %arg16[%c0_151, %c0_152, %c0_153], %438 {strides = array<i32>} : memref<1x1x2xf32, #tpu.memory_space<vmem>>, vector<1x1x2xf32>,
    return
  }
  func.func @transform_0(%arg0: i32) -> (i32, i32, i32) {
    %c0_i32 = arith.constant 0 : i32
    %c0_i32_0 = arith.constant 0 : i32
    %c0_i32_1 = arith.constant 0 : i32
    return %arg0, %c0_i32, %c0_i32_0 : i32, i32, i32
  }
  func.func @transform_1(%arg0: i32) -> (i32, i32, i32) {
    %c0_i32 = arith.constant 0 : i32
    %c0_i32_0 = arith.constant 0 : i32
    %c0_i32_1 = arith.constant 0 : i32
    return %arg0, %c0_i32, %c0_i32_0 : i32, i32, i32
  }
  func.func @transform_2(%arg0: i32) -> (i32, i32, i32) {
    %c0_i32 = arith.constant 0 : i32
    %c0_i32_0 = arith.constant 0 : i32
    %c0_i32_1 = arith.constant 0 : i32
    return %arg0, %c0_i32, %c0_i32_0 : i32, i32, i32
  }
  func.func @transform_3(%arg0: i32) -> (i32, i32, i32) {
    %c0_i32 = arith.constant 0 : i32
    %c0_i32_0 = arith.constant 0 : i32
    %c0_i32_1 = arith.constant 0 : i32
    return %arg0, %c0_i32, %c0_i32_0 : i32, i32, i32
  }
  func.func @transform_4(%arg0: i32) -> (i32, i32) {
    %c0_i32 = arith.constant 0 : i32
    %c0_i32_0 = arith.constant 0 : i32
    %c0_i32_1 = arith.constant 0 : i32
    return %c0_i32, %c0_i32_0 : i32, i32
  }
  func.func @transform_5(%arg0: i32) -> (i32, i32) {
    %c0_i32 = arith.constant 0 : i32
    %c0_i32_0 = arith.constant 0 : i32
    %c0_i32_1 = arith.constant 0 : i32
    return %c0_i32, %c0_i32_0 : i32, i32
  }
  func.func @transform_6(%arg0: i32) -> (i32, i32, i32) {
    %c0_i32 = arith.constant 0 : i32
    %c0_i32_0 = arith.constant 0 : i32
    %c0_i32_1 = arith.constant 0 : i32
    %c0_i32_2 = arith.constant 0 : i32
    return %c0_i32, %c0_i32_0, %c0_i32_1 : i32, i32, i32
  }
  func.func @transform_7(%arg0: i32) -> (i32, i32, i32) {
    %c0_i32 = arith.constant 0 : i32
    %c0_i32_0 = arith.constant 0 : i32
    %c0_i32_1 = arith.constant 0 : i32
    %c0_i32_2 = arith.constant 0 : i32
    return %c0_i32, %c0_i32_0, %c0_i32_1 : i32, i32, i32
  }
  func.func @transform_8(%arg0: i32) -> (i32, i32) {
    %c0_i32 = arith.constant 0 : i32
    %c0_i32_0 = arith.constant 0 : i32
    %c0_i32_1 = arith.constant 0 : i32
    return %c0_i32, %c0_i32_0 : i32, i32
  }
  func.func @transform_9(%arg0: i32) -> (i32, i32) {
    %c0_i32 = arith.constant 0 : i32
    %c0_i32_0 = arith.constant 0 : i32
    %c0_i32_1 = arith.constant 0 : i32
    return %c0_i32, %c0_i32_0 : i32, i32
  }
  func.func @transform_10(%arg0: i32) -> (i32, i32, i32) {
    %c0_i32 = arith.constant 0 : i32
    %c0_i32_0 = arith.constant 0 : i32
    %c0_i32_1 = arith.constant 0 : i32
    %c0_i32_2 = arith.constant 0 : i32
    return %c0_i32, %c0_i32_0, %c0_i32_1 : i32, i32, i32
  }
  func.func @transform_11(%arg0: i32) -> (i32, i32) {
    %c0_i32 = arith.constant 0 : i32
    %c0_i32_0 = arith.constant 0 : i32
    %c0_i32_1 = arith.constant 0 : i32
    return %c0_i32, %c0_i32_0 : i32, i32
  }
  func.func @transform_12(%arg0: i32) -> (i32, i32) {
    %c0_i32 = arith.constant 0 : i32
    %c0_i32_0 = arith.constant 0 : i32
    %c0_i32_1 = arith.constant 0 : i32
    return %c0_i32, %c0_i32_0 : i32, i32
  }
  func.func @transform_13(%arg0: i32) -> (i32, i32) {
    %c0_i32 = arith.constant 0 : i32
    %c0_i32_0 = arith.constant 0 : i32
    %c0_i32_1 = arith.constant 0 : i32
    return %c0_i32, %c0_i32_0 : i32, i32
  }
  func.func @transform_14(%arg0: i32) -> (i32, i32) {
    %c0_i32 = arith.constant 0 : i32
    %c0_i32_0 = arith.constant 0 : i32
    %c0_i32_1 = arith.constant 0 : i32
    return %c0_i32, %c0_i32_0 : i32, i32
  }
  func.func @transform_15(%arg0: i32) -> (i32, i32, i32) {
    %c0_i32 = arith.constant 0 : i32
    %c0_i32_0 = arith.constant 0 : i32
    %c0_i32_1 = arith.constant 0 : i32
    return %arg0, %c0_i32, %c0_i32_0 : i32, i32, i32
  }
}

</mosaic_0001>

<llo_original>
// kernel: tpu_custom_call.1
$region0: #{tpu_custom_call.1}
  #allocation0 [shape = 'u32[]', space=smem, size = 0x4, offset = 0x4, fixed_abs, tag = 'smem constant byte address 0x4 - core index']
  #allocation1 [shape = 'u32[72,128]{1,0:T(1,128)}', space=vmem, size = 0x9000, scoped, tag = 'internal scratch']
  #allocation2 [shape = 'f32[1,1]{1,0:T(1,128)S(1)}', space=vmem, size = 0x200, scoped, tag = 'scoped memory for tpu_custom_call.1']
  %s0 = inlined_call_operand.vmem [shape: f32[2,8,94], index: 0, kind: input, shape index: {}]
  %s1 = inlined_call_operand.vmem [shape: f32[2,64,42], index: 1, kind: input, shape index: {}]
  %s2 = inlined_call_operand.hbm [shape: f32[2,8,8], index: 2, kind: input, shape index: {}]
  %s3 = inlined_call_operand.vmem [shape: f32[2,8,1], index: 3, kind: input, shape index: {}]
  %s4 = inlined_call_operand.hbm [shape: f32[94,288], index: 4, kind: input, shape index: {}]
  %s5 = inlined_call_operand.vmem [shape: f32[1,32], index: 5, kind: input, shape index: {}]
  %s6 = inlined_call_operand.vmem [shape: f32[5,32,160], index: 6, kind: input, shape index: {}]
  %s7 = inlined_call_operand.hbm [shape: f32[5,1,160], index: 7, kind: input, shape index: {}]
  %s8 = inlined_call_operand.vmem [shape: f32[42,320], index: 8, kind: input, shape index: {}]
  %s9 = inlined_call_operand.vmem [shape: f32[1,320], index: 9, kind: input, shape index: {}]
  %s10 = inlined_call_operand.vmem [shape: f32[5,1,32], index: 10, kind: input, shape index: {}]
  %s11 = inlined_call_operand.hbm [shape: f32[32,256], index: 11, kind: input, shape index: {}]
  %s12 = inlined_call_operand.vmem [shape: f32[1,256], index: 12, kind: input, shape index: {}]
  %s13 = inlined_call_operand.vmem [shape: f32[256,1], index: 13, kind: input, shape index: {}]
  %s14 = inlined_call_operand.<no memory space> [shape: f32[1,1], index: 14, kind: input, shape index: {}]
  %s15 = inlined_call_operand.hbm [shape: f32[1,1,2], index: 15, kind: output, shape index: {}]
  %s16 = sld [smem:[#allocation0]]
  $region86: #{tpu_custom_call.1} parent=0
    _
  %s18 = ssub.s32 1, %s16
  %s19 = scalar_select 0, %s18, %s16
  %v20 = vstv %s14
  %21 = vst [vmem:[#allocation2] sm:$0x1] %v20
  $region1: #{tpu_custom_call.1} parent=0
    #allocation3 [shape = 'u8[8192]{0}', space=vmem, size = 0x2000, scoped, tag = 'input window, operand 2, single buffered']
    #allocation4 [shape = 's32[1]{0}', space=sflag, size = 0x4, scoped, tag = 'scoped memory for tpu_custom_call.1']
    #allocation5 [shape = 's32[1]{0}', space=sflag, size = 0x4, scoped, tag = 'scoped memory for tpu_custom_call.1']
    #allocation6 [shape = 'u8[147456]{0}', space=vmem, size = 0x24000, scoped, tag = 'input window, operand 4, single buffered']
    #allocation7 [shape = 's32[1]{0}', space=sflag, size = 0x4, scoped, tag = 'scoped memory for tpu_custom_call.1']
    #allocation8 [shape = 'u8[5120]{0}', space=vmem, size = 0x1400, scoped, tag = 'input window, operand 7, single buffered']
    #allocation9 [shape = 'u8[32768]{0}', space=vmem, size = 0x8000, scoped, tag = 'input window, operand 11, single buffered']
    #allocation10 [shape = 's32[1]{0}', space=sflag, size = 0x4, scoped, tag = 'scoped memory for tpu_custom_call.1']
    #allocation11 [shape = 'u8[512]{0}', space=vmem, size = 0x400, scoped, tag = 'output window, operand 0, single buffered']
    %22 = vsyncpa [#allocation4], 0
    %23 = vsyncpa [#allocation7], 0
    %24 = vsyncpa [#allocation10], 0
    %25 = vsyncpa [#allocation5], 0
    // Predicated region
    $region2: #{tpu_custom_call.1} parent=1 // pred_check
      _
    $region3: #{tpu_custom_call.1} parent=1 // pred_check_branch
      %27 = sbr.rel (0) target = $region5
    $region4: #{tpu_custom_call.1} parent=1 // pred_region
      _
    $region5: #{tpu_custom_call.1} parent=1 // pred_fallthru
      _
    // Predicated region
    $region6: #{tpu_custom_call.1} parent=1 // pred_check
      _
    $region7: #{tpu_custom_call.1} parent=1 // pred_check_branch
      %29 = sbr.rel (0) target = $region9
    $region8: #{tpu_custom_call.1} parent=1 // pred_region
      _
    $region9: #{tpu_custom_call.1} parent=1 // pred_fallthru
      _
    // Predicated region
    $region10: #{tpu_custom_call.1} parent=1 // pred_check
      _
    $region11: #{tpu_custom_call.1} parent=1 // pred_check_branch
      %31 = sbr.rel (0) target = $region13
    $region12: #{tpu_custom_call.1} parent=1 // pred_region
      %33 = vsyncadd [#allocation4], 0
      %s34 = sshll.u32 %s2, 4
      %s35 = int_to_ptr.hbm [resolvable:$true] %s34
      %s36 = sshll.u32 [#allocation3], 4
      %s37 = int_to_ptr.vmem [resolvable:$true] %s36
      %42 = dma.hbm_to_vmem [thread:$0]  %s35, 256, %s37, [#allocation4], 128, 128, 8
    $region13: #{tpu_custom_call.1} parent=1 // pred_fallthru
      _
    // Predicated region
    $region14: #{tpu_custom_call.1} parent=1 // pred_check
      _
    $region15: #{tpu_custom_call.1} parent=1 // pred_check_branch
      %44 = sbr.rel (0) target = $region17
    $region16: #{tpu_custom_call.1} parent=1 // pred_region
      _
    $region17: #{tpu_custom_call.1} parent=1 // pred_fallthru
      _
    // Predicated region
    $region18: #{tpu_custom_call.1} parent=1 // pred_check
      _
    $region19: #{tpu_custom_call.1} parent=1 // pred_check_branch
      %46 = sbr.rel (0) target = $region21
    $region20: #{tpu_custom_call.1} parent=1 // pred_region
      %48 = vsyncadd [#allocation7], 0
      %s49 = sshll.u32 %s4, 4
      %s50 = int_to_ptr.hbm [resolvable:$true] %s49
      %s51 = sshll.u32 [#allocation6], 4
      %s52 = int_to_ptr.vmem [resolvable:$true] %s51
      %57 = dma.hbm_to_vmem [thread:$0]  %s50, 4608, %s52, [#allocation7], 384, 384, 24
    $region21: #{tpu_custom_call.1} parent=1 // pred_fallthru
      _
    // Predicated region
    $region22: #{tpu_custom_call.1} parent=1 // pred_check
      _
    $region23: #{tpu_custom_call.1} parent=1 // pred_check_branch
      %59 = sbr.rel (0) target = $region25
    $region24: #{tpu_custom_call.1} parent=1 // pred_region
      _
    $region25: #{tpu_custom_call.1} parent=1 // pred_fallthru
      _
    // Predicated region
    $region26: #{tpu_custom_call.1} parent=1 // pred_check
      _
    $region27: #{tpu_custom_call.1} parent=1 // pred_check_branch
      %61 = sbr.rel (0) target = $region29
    $region28: #{tpu_custom_call.1} parent=1 // pred_region
      _
    $region29: #{tpu_custom_call.1} parent=1 // pred_fallthru
      _
    // Predicated region
    $region30: #{tpu_custom_call.1} parent=1 // pred_check
      _
    $region31: #{tpu_custom_call.1} parent=1 // pred_check_branch
      %63 = sbr.rel (0) target = $region33
    $region32: #{tpu_custom_call.1} parent=1 // pred_region
      %65 = vsyncadd [#allocation7], 0
      %s66 = sshll.u32 %s7, 4
      %s67 = int_to_ptr.hbm [resolvable:$true] %s66
      %s68 = sshll.u32 [#allocation8], 4
      %s69 = int_to_ptr.vmem [resolvable:$true] %s68
      %74 = dma.hbm_to_vmem [thread:$0]  %s67, 160, %s69, [#allocation7], 32, 32, 2
    $region33: #{tpu_custom_call.1} parent=1 // pred_fallthru
      _
    // Predicated region
    $region34: #{tpu_custom_call.1} parent=1 // pred_check
      _
    $region35: #{tpu_custom_call.1} parent=1 // pred_check_branch
      %76 = sbr.rel (0) target = $region37
    $region36: #{tpu_custom_call.1} parent=1 // pred_region
      _
    $region37: #{tpu_custom_call.1} parent=1 // pred_fallthru
      _
    // Predicated region
    $region38: #{tpu_custom_call.1} parent=1 // pred_check
      _
    $region39: #{tpu_custom_call.1} parent=1 // pred_check_branch
      %78 = sbr.rel (0) target = $region41
    $region40: #{tpu_custom_call.1} parent=1 // pred_region
      _
    $region41: #{tpu_custom_call.1} parent=1 // pred_fallthru
      _
    // Predicated region
    $region42: #{tpu_custom_call.1} parent=1 // pred_check
      _
    $region43: #{tpu_custom_call.1} parent=1 // pred_check_branch
      %80 = sbr.rel (0) target = $region45
    $region44: #{tpu_custom_call.1} parent=1 // pred_region
      _
    $region45: #{tpu_custom_call.1} parent=1 // pred_fallthru
      _
    // Predicated region
    $region46: #{tpu_custom_call.1} parent=1 // pred_check
      _
    $region47: #{tpu_custom_call.1} parent=1 // pred_check_branch
      %82 = sbr.rel (0) target = $region49
    $region48: #{tpu_custom_call.1} parent=1 // pred_region
      %84 = vsyncadd [#allocation10], 0
      %s85 = sshll.u32 %s11, 4
      %s86 = int_to_ptr.hbm [resolvable:$true] %s85
      %s87 = sshll.u32 [#allocation9], 4
      %s88 = int_to_ptr.vmem [resolvable:$true] %s87
      %93 = dma.hbm_to_vmem [thread:$0]  %s86, 1024, %s88, [#allocation10], 256, 256, 16
    $region49: #{tpu_custom_call.1} parent=1 // pred_fallthru
      _
    // Predicated region
    $region50: #{tpu_custom_call.1} parent=1 // pred_check
      _
    $region51: #{tpu_custom_call.1} parent=1 // pred_check_branch
      %95 = sbr.rel (0) target = $region53
    $region52: #{tpu_custom_call.1} parent=1 // pred_region
      _
    $region53: #{tpu_custom_call.1} parent=1 // pred_fallthru
      _
    // Predicated region
    $region54: #{tpu_custom_call.1} parent=1 // pred_check
      _
    $region55: #{tpu_custom_call.1} parent=1 // pred_check_branch
      %97 = sbr.rel (0) target = $region57
    $region56: #{tpu_custom_call.1} parent=1 // pred_region
      _
    $region57: #{tpu_custom_call.1} parent=1 // pred_fallthru
      _
    // Predicated region
    $region58: #{tpu_custom_call.1} parent=1 // pred_check
      _
    $region59: #{tpu_custom_call.1} parent=1 // pred_check_branch
      %99 = sbr.rel (0) target = $region61
    $region60: #{tpu_custom_call.1} parent=1 // pred_region
      _
    $region61: #{tpu_custom_call.1} parent=1 // pred_fallthru
      _
    // Predicated region
    $region62: #{tpu_custom_call.1} parent=1 // pred_check
      _
    $region63: #{tpu_custom_call.1} parent=1 // pred_check_branch
      %101 = sbr.rel (0) target = $region65
    $region64: #{tpu_custom_call.1} parent=1 // pred_region
      %103 = dma.done [#allocation4], 256
    $region65: #{tpu_custom_call.1} parent=1 // pred_fallthru
      _
    // Predicated region
    $region66: #{tpu_custom_call.1} parent=1 // pred_check
      _
    $region67: #{tpu_custom_call.1} parent=1 // pred_check_branch
      %105 = sbr.rel (0) target = $region69
    $region68: #{tpu_custom_call.1} parent=1 // pred_region
      %107 = dma.done [#allocation7], 4608
    $region69: #{tpu_custom_call.1} parent=1 // pred_fallthru
      _
    // Predicated region
    $region70: #{tpu_custom_call.1} parent=1 // pred_check
      _
    $region71: #{tpu_custom_call.1} parent=1 // pred_check_branch
      %109 = sbr.rel (0) target = $region73
    $region72: #{tpu_custom_call.1} parent=1 // pred_region
      %111 = dma.done [#allocation7], 160
    $region73: #{tpu_custom_call.1} parent=1 // pred_fallthru
      _
    // Predicated region
    $region74: #{tpu_custom_call.1} parent=1 // pred_check
      _
    $region75: #{tpu_custom_call.1} parent=1 // pred_check_branch
      %113 = sbr.rel (0) target = $region77
    $region76: #{tpu_custom_call.1} parent=1 // pred_region
      %115 = dma.done [#allocation10], 1024
    $region77: #{tpu_custom_call.1} parent=1 // pred_fallthru
      _
    %v116 = vld [vmem:[%s0] sm:$0xff]
    %v117 = vld [vmem:[%s0 + $0x8] sm:$0xff]
    %v118 = vld [vmem:[%s1] sm:$0xff]
    %v119 = vld [vmem:[%s1 + $0x8] sm:$0xff]
    %v120 = vld [vmem:[%s1 + $0x10] sm:$0xff]
    %v121 = vld [vmem:[%s1 + $0x18] sm:$0xff]
    %v122 = vld [vmem:[%s1 + $0x20] sm:$0xff]
    %v123 = vld [vmem:[%s1 + $0x28] sm:$0xff]
    %v124 = vld [vmem:[%s1 + $0x30] sm:$0xff]
    %v125 = vld [vmem:[%s1 + $0x38] sm:$0xff]
    %v126 = vld [vmem:[%s1 + $0x40] sm:$0xff]
    %v127 = vld [vmem:[%s1 + $0x48] sm:$0xff]
    %v128 = vld [vmem:[%s1 + $0x50] sm:$0xff]
    %v129 = vld [vmem:[%s1 + $0x58] sm:$0xff]
    %v130 = vld [vmem:[%s1 + $0x60] sm:$0xff]
    %v131 = vld [vmem:[%s1 + $0x68] sm:$0xff]
    %v132 = vld [vmem:[%s1 + $0x70] sm:$0xff]
    %v133 = vld [vmem:[%s1 + $0x78] sm:$0xff]
    %v134 = vld [vmem:[#allocation3] sm:$0xff]
    %v135 = vld [vmem:[#allocation3 + $0x8] sm:$0xff]
    %v136 = vld [vmem:[#allocation6] sm:$0xff]
    %v137 = vld [vmem:[#allocation6 + $0x8] sm:$0xff]
    %v138 = vld [vmem:[#allocation6 + $0x10] sm:$0xff]
    %v139 = vld [vmem:[#allocation6 + $0x18] sm:$0xff]
    %v140 = vld [vmem:[#allocation6 + $0x20] sm:$0xff]
    %v141 = vld [vmem:[#allocation6 + $0x28] sm:$0xff]
    %v142 = vld [vmem:[#allocation6 + $0x30] sm:$0xff]
    %v143 = vld [vmem:[#allocation6 + $0x38] sm:$0xff]
    %v144 = vld [vmem:[#allocation6 + $0x40] sm:$0xff]
    %v145 = vld [vmem:[#allocation6 + $0x48] sm:$0xff]
    %v146 = vld [vmem:[#allocation6 + $0x50] sm:$0xff]
    %v147 = vld [vmem:[#allocation6 + $0x58] sm:$0xff]
    %v148 = vld [vmem:[#allocation6 + $0x60] sm:$0xff]
    %v149 = vld [vmem:[#allocation6 + $0x68] sm:$0xff]
    %v150 = vld [vmem:[#allocation6 + $0x70] sm:$0xff]
    %v151 = vld [vmem:[#allocation6 + $0x78] sm:$0xff]
    %v152 = vld [vmem:[#allocation6 + $0x80] sm:$0xff]
    %v153 = vld [vmem:[#allocation6 + $0x88] sm:$0xff]
    %v154 = vld [vmem:[#allocation6 + $0x90] sm:$0xff]
    %v155 = vld [vmem:[#allocation6 + $0x98] sm:$0xff]
    %v156 = vld [vmem:[#allocation6 + $0xa0] sm:$0xff]
    %v157 = vld [vmem:[#allocation6 + $0xa8] sm:$0xff]
    %v158 = vld [vmem:[#allocation6 + $0xb0] sm:$0xff]
    %v159 = vld [vmem:[#allocation6 + $0xb8] sm:$0xff]
    %v160 = vld [vmem:[#allocation6 + $0xc0] sm:$0xff]
    %v161 = vld [vmem:[#allocation6 + $0xc8] sm:$0xff]
    %v162 = vld [vmem:[#allocation6 + $0xd0] sm:$0xff]
    %v163 = vld [vmem:[#allocation6 + $0xd8] sm:$0xff]
    %v164 = vld [vmem:[#allocation6 + $0xe0] sm:$0xff]
    %v165 = vld [vmem:[#allocation6 + $0xe8] sm:$0xff]
    %v166 = vld [vmem:[#allocation6 + $0xf0] sm:$0xff]
    %v167 = vld [vmem:[#allocation6 + $0xf8] sm:$0xff]
    %v168 = vld [vmem:[#allocation6 + $0x100] sm:$0xff]
    %v169 = vld [vmem:[#allocation6 + $0x108] sm:$0x3f]
    %v170 = vld [vmem:[#allocation6 + $0x110] sm:$0x3f]
    %v171 = vld [vmem:[#allocation6 + $0x118] sm:$0x3f]
    %vm172 = vcmask 769024
    %v174 = vsel %vm172, %v116, 0
    %v177 = vsel %vm172, %v117, 0
    %vm179 = vcmask 1045504
    %v181 = vsel %vm179, %v169, 0
    %v184 = vsel %vm179, %v170, 0
    %v187 = vsel %vm179, %v171, 0
    %189 = vmatpush.msra.mxu0 0.0
    %190 = vmatpush.msra.mxu0 0.0
    %191 = vmatpush.msra.mxu0 0.0
    %192 = vmatpush.msra.mxu0 0.0
    %193 = vmatpush.msra.mxu0 %v181
    %194 = vmatpush.msra.mxu0 %v166
    %195 = vmatpush.msra.mxu0 %v163
    %196 = vmatpush.msra.mxu0 %v160
    %197 = vmatpush.msra.mxu0 %v157
    %198 = vmatpush.msra.mxu0 %v154
    %199 = vmatpush.msra.mxu0 %v151
    %200 = vmatpush.msra.mxu0 %v148
    %201 = vmatpush.msra.mxu0 %v145
    %202 = vmatpush.msra.mxu0 %v142
    %203 = vmatpush.msra.mxu0 %v139
    %204 = vmatpush.msra.mxu0 %v136
    %205 = vmatmul.f32.gmra.mxu0 %v174
    %v206 = vpop.f32.mrf.mxu0
    %v207 = vadd.f32 0.0, %v206
    %208 = vmatmul.f32.gmra.mxu0 %v177
    %v209 = vpop.f32.mrf.mxu0
    %v210 = vadd.f32 0.0, %v209
    %211 = vdwg.mxu0
    %212 = vmatpush.msra.mxu0 0.0
    %213 = vmatpush.msra.mxu0 0.0
    %214 = vmatpush.msra.mxu0 0.0
    %215 = vmatpush.msra.mxu0 0.0
    %216 = vmatpush.msra.mxu0 %v184
    %217 = vmatpush.msra.mxu0 %v167
    %218 = vmatpush.msra.mxu0 %v164
    %219 = vmatpush.msra.mxu0 %v161
    %220 = vmatpush.msra.mxu0 %v158
    %221 = vmatpush.msra.mxu0 %v155
    %222 = vmatpush.msra.mxu0 %v152
    %223 = vmatpush.msra.mxu0 %v149
    %224 = vmatpush.msra.mxu0 %v146
    %225 = vmatpush.msra.mxu0 %v143
    %226 = vmatpush.msra.mxu0 %v140
    %227 = vmatpush.msra.mxu0 %v137
    %228 = vmatmul.f32.gmra.mxu0 %v174
    %v229 = vpop.f32.mrf.mxu0
    %v230 = vadd.f32 0.0, %v229
    %231 = vmatmul.f32.gmra.mxu0 %v177
    %v232 = vpop.f32.mrf.mxu0
    %v233 = vadd.f32 0.0, %v232
    %234 = vdwg.mxu0
    %235 = vmatpush.msra.mxu0 0.0
    %236 = vmatpush.msra.mxu0 0.0
    %237 = vmatpush.msra.mxu0 0.0
    %238 = vmatpush.msra.mxu0 0.0
    %239 = vmatpush.msra.mxu0 %v187
    %240 = vmatpush.msra.mxu0 %v168
    %241 = vmatpush.msra.mxu0 %v165
    %242 = vmatpush.msra.mxu0 %v162
    %243 = vmatpush.msra.mxu0 %v159
    %244 = vmatpush.msra.mxu0 %v156
    %245 = vmatpush.msra.mxu0 %v153
    %246 = vmatpush.msra.mxu0 %v150
    %247 = vmatpush.msra.mxu0 %v147
    %248 = vmatpush.msra.mxu0 %v144
    %249 = vmatpush.msra.mxu0 %v141
    %250 = vmatpush.msra.mxu0 %v138
    %251 = vmatmul.f32.gmra.mxu0 %v174
    %v252 = vpop.f32.mrf.mxu0
    %v253 = vadd.f32 0.0, %v252
    %254 = vmatmul.f32.gmra.mxu0 %v177
    %v255 = vpop.f32.mrf.mxu0
    %v256 = vadd.f32 0.0, %v255
    %257 = vdwg.mxu0
    %v258 = vld [vmem:[%s5] sm:$0x1]
    %v260 = vperm.slane %v258, 0
    %v262 = vadd.f32 %v207, %v260
    %v263 = vadd.f32 %v210, %v260
    %vm264 = vcmp.ge.f32.partialorder %v262, 0.0
    %vm265 = vcmp.ge.f32.partialorder %v263, 0.0
    %v266 = vmul.f32 %v262, 0.2
    %v267 = vmul.f32 %v263, 0.2
    %v268 = vsel %vm264, %v262, %v266
    %v269 = vsel %vm265, %v263, %v267
    %v270 = vld [vmem:[%s8] sm:$0xff]
    %v271 = vld [vmem:[%s8 + $0x8] sm:$0xff]
    %v272 = vld [vmem:[%s8 + $0x10] sm:$0xff]
    %v273 = vld [vmem:[%s8 + $0x18] sm:$0xff]
    %v274 = vld [vmem:[%s8 + $0x20] sm:$0xff]
    %v275 = vld [vmem:[%s8 + $0x28] sm:$0xff]
    %v276 = vld [vmem:[%s8 + $0x30] sm:$0xff]
    %v277 = vld [vmem:[%s8 + $0x38] sm:$0xff]
    %v278 = vld [vmem:[%s8 + $0x40] sm:$0xff]
    %v279 = vld [vmem:[%s8 + $0x48] sm:$0xff]
    %v280 = vld [vmem:[%s8 + $0x50] sm:$0xff]
    %v281 = vld [vmem:[%s8 + $0x58] sm:$0xff]
    %v282 = vld [vmem:[%s8 + $0x60] sm:$0xff]
    %v283 = vld [vmem:[%s8 + $0x68] sm:$0xff]
    %v284 = vld [vmem:[%s8 + $0x70] sm:$0xff]
    %v285 = vld [vmem:[%s8 + $0x78] sm:$0x3]
    %v286 = vld [vmem:[%s8 + $0x80] sm:$0x3]
    %v287 = vld [vmem:[%s8 + $0x88] sm:$0x3]
    %v288 = vld [vmem:[%s9] sm:$0x7]
    %v290 = vperm.slane %v288, 0
    %v291 = vperm.slane %v288, 1
    %v292 = vperm.slane %v288, 2
    %vm296 = vcmask 343040
    %v298 = vsel %vm296, %v118, 0
    %v301 = vsel %vm296, %v119, 0
    %v304 = vsel %vm296, %v120, 0
    %v307 = vsel %vm296, %v121, 0
    %v310 = vsel %vm296, %v122, 0
    %v313 = vsel %vm296, %v123, 0
    %v316 = vsel %vm296, %v124, 0
    %v319 = vsel %vm296, %v125, 0
    %v322 = vsel %vm296, %v126, 0
    %v325 = vsel %vm296, %v127, 0
    %v328 = vsel %vm296, %v128, 0
    %v331 = vsel %vm296, %v129, 0
    %v334 = vsel %vm296, %v130, 0
    %v337 = vsel %vm296, %v131, 0
    %v340 = vsel %vm296, %v132, 0
    %v343 = vsel %vm296, %v133, 0
    %vm345 = vcmask 1041408
    %v347 = vsel %vm345, %v285, 0
    %v350 = vsel %vm345, %v286, 0
    %v353 = vsel %vm345, %v287, 0
    %355 = vmatpush.msra.mxu0 0.0
    %356 = vmatpush.msra.mxu0 0.0
    %357 = vmatpush.msra.mxu0 0.0
    %358 = vmatpush.msra.mxu0 0.0
    %359 = vmatpush.msra.mxu0 0.0
    %360 = vmatpush.msra.mxu0 0.0
    %361 = vmatpush.msra.mxu0 0.0
    %362 = vmatpush.msra.mxu0 0.0
    %363 = vmatpush.msra.mxu0 0.0
    %364 = vmatpush.msra.mxu0 0.0
    %365 = vmatpush.msra.mxu0 %v347
    %366 = vmatpush.msra.mxu0 %v282
    %367 = vmatpush.msra.mxu0 %v279
    %368 = vmatpush.msra.mxu0 %v276
    %369 = vmatpush.msra.mxu0 %v273
    %370 = vmatpush.msra.mxu0 %v270
    %371 = vmatmul.f32.gmra.mxu0 %v298
    %v372 = vpop.f32.mrf.mxu0
    %v373 = vadd.f32 %v290, %v372
    %374 = vmatmul.f32.gmra.mxu0 %v301
    %v375 = vpop.f32.mrf.mxu0
    %v376 = vadd.f32 %v290, %v375
    %377 = vmatmul.f32.gmra.mxu0 %v304
    %v378 = vpop.f32.mrf.mxu0
    %v379 = vadd.f32 %v290, %v378
    %380 = vmatmul.f32.gmra.mxu0 %v307
    %v381 = vpop.f32.mrf.mxu0
    %v382 = vadd.f32 %v290, %v381
    %383 = vmatmul.f32.gmra.mxu0 %v310
    %v384 = vpop.f32.mrf.mxu0
    %v385 = vadd.f32 %v290, %v384
    %386 = vmatmul.f32.gmra.mxu0 %v313
    %v387 = vpop.f32.mrf.mxu0
    %v388 = vadd.f32 %v290, %v387
    %389 = vmatmul.f32.gmra.mxu0 %v316
    %v390 = vpop.f32.mrf.mxu0
    %v391 = vadd.f32 %v290, %v390
    %392 = vmatmul.f32.gmra.mxu0 %v319
    %v393 = vpop.f32.mrf.mxu0
    %v394 = vadd.f32 %v290, %v393
    %395 = vmatmul.f32.gmra.mxu0 %v322
    %v396 = vpop.f32.mrf.mxu0
    %v397 = vadd.f32 %v290, %v396
    %398 = vmatmul.f32.gmra.mxu0 %v325
    %v399 = vpop.f32.mrf.mxu0
    %v400 = vadd.f32 %v290, %v399
    %401 = vmatmul.f32.gmra.mxu0 %v328
    %v402 = vpop.f32.mrf.mxu0
    %v403 = vadd.f32 %v290, %v402
    %404 = vmatmul.f32.gmra.mxu0 %v331
    %v405 = vpop.f32.mrf.mxu0
    %v406 = vadd.f32 %v290, %v405
    %407 = vmatmul.f32.gmra.mxu0 %v334
    %v408 = vpop.f32.mrf.mxu0
    %v409 = vadd.f32 %v290, %v408
    %410 = vmatmul.f32.gmra.mxu0 %v337
    %v411 = vpop.f32.mrf.mxu0
    %v412 = vadd.f32 %v290, %v411
    %413 = vmatmul.f32.gmra.mxu0 %v340
    %v414 = vpop.f32.mrf.mxu0
    %v415 = vadd.f32 %v290, %v414
    %416 = vmatmul.f32.gmra.mxu0 %v343
    %v417 = vpop.f32.mrf.mxu0
    %v418 = vadd.f32 %v290, %v417
    %419 = vdwg.mxu0
    %420 = vmatpush.msra.mxu0 0.0
    %421 = vmatpush.msra.mxu0 0.0
    %422 = vmatpush.msra.mxu0 0.0
    %423 = vmatpush.msra.mxu0 0.0
    %424 = vmatpush.msra.mxu0 0.0
    %425 = vmatpush.msra.mxu0 0.0
    %426 = vmatpush.msra.mxu0 0.0
    %427 = vmatpush.msra.mxu0 0.0
    %428 = vmatpush.msra.mxu0 0.0
    %429 = vmatpush.msra.mxu0 0.0
    %430 = vmatpush.msra.mxu0 %v350
    %431 = vmatpush.msra.mxu0 %v283
    %432 = vmatpush.msra.mxu0 %v280
    %433 = vmatpush.msra.mxu0 %v277
    %434 = vmatpush.msra.mxu0 %v274
    %435 = vmatpush.msra.mxu0 %v271
    %436 = vmatmul.f32.gmra.mxu0 %v298
    %v437 = vpop.f32.mrf.mxu0
    %v438 = vadd.f32 %v291, %v437
    %439 = vmatmul.f32.gmra.mxu0 %v301
    %v440 = vpop.f32.mrf.mxu0
    %v441 = vadd.f32 %v291, %v440
    %442 = vmatmul.f32.gmra.mxu0 %v304
    %v443 = vpop.f32.mrf.mxu0
    %v444 = vadd.f32 %v291, %v443
    %445 = vmatmul.f32.gmra.mxu0 %v307
    %v446 = vpop.f32.mrf.mxu0
    %v447 = vadd.f32 %v291, %v446
    %448 = vmatmul.f32.gmra.mxu0 %v310
    %v449 = vpop.f32.mrf.mxu0
    %v450 = vadd.f32 %v291, %v449
    %451 = vmatmul.f32.gmra.mxu0 %v313
    %v452 = vpop.f32.mrf.mxu0
    %v453 = vadd.f32 %v291, %v452
    %454 = vmatmul.f32.gmra.mxu0 %v316
    %v455 = vpop.f32.mrf.mxu0
    %v456 = vadd.f32 %v291, %v455
    %457 = vmatmul.f32.gmra.mxu0 %v319
    %v458 = vpop.f32.mrf.mxu0
    %v459 = vadd.f32 %v291, %v458
    %460 = vmatmul.f32.gmra.mxu0 %v322
    %v461 = vpop.f32.mrf.mxu0
    %v462 = vadd.f32 %v291, %v461
    %463 = vmatmul.f32.gmra.mxu0 %v325
    %v464 = vpop.f32.mrf.mxu0
    %v465 = vadd.f32 %v291, %v464
    %466 = vmatmul.f32.gmra.mxu0 %v328
    %v467 = vpop.f32.mrf.mxu0
    %v468 = vadd.f32 %v291, %v467
    %469 = vmatmul.f32.gmra.mxu0 %v331
    %v470 = vpop.f32.mrf.mxu0
    %v471 = vadd.f32 %v291, %v470
    %472 = vmatmul.f32.gmra.mxu0 %v334
    %v473 = vpop.f32.mrf.mxu0
    %v474 = vadd.f32 %v291, %v473
    %475 = vmatmul.f32.gmra.mxu0 %v337
    %v476 = vpop.f32.mrf.mxu0
    %v477 = vadd.f32 %v291, %v476
    %478 = vmatmul.f32.gmra.mxu0 %v340
    %v479 = vpop.f32.mrf.mxu0
    %v480 = vadd.f32 %v291, %v479
    %481 = vmatmul.f32.gmra.mxu0 %v343
    %v482 = vpop.f32.mrf.mxu0
    %v483 = vadd.f32 %v291, %v482
    %484 = vdwg.mxu0
    %485 = vmatpush.msra.mxu0 0.0
    %486 = vmatpush.msra.mxu0 0.0
    %487 = vmatpush.msra.mxu0 0.0
    %488 = vmatpush.msra.mxu0 0.0
    %489 = vmatpush.msra.mxu0 0.0
    %490 = vmatpush.msra.mxu0 0.0
    %491 = vmatpush.msra.mxu0 0.0
    %492 = vmatpush.msra.mxu0 0.0
    %493 = vmatpush.msra.mxu0 0.0
    %494 = vmatpush.msra.mxu0 0.0
    %495 = vmatpush.msra.mxu0 %v353
    %496 = vmatpush.msra.mxu0 %v284
    %497 = vmatpush.msra.mxu0 %v281
    %498 = vmatpush.msra.mxu0 %v278
    %499 = vmatpush.msra.mxu0 %v275
    %500 = vmatpush.msra.mxu0 %v272
    %501 = vmatmul.f32.gmra.mxu0 %v298
    %v502 = vpop.f32.mrf.mxu0
    %v503 = vadd.f32 %v292, %v502
    %504 = vmatmul.f32.gmra.mxu0 %v301
    %v505 = vpop.f32.mrf.mxu0
    %v506 = vadd.f32 %v292, %v505
    %507 = vmatmul.f32.gmra.mxu0 %v304
    %v508 = vpop.f32.mrf.mxu0
    %v509 = vadd.f32 %v292, %v508
    %510 = vmatmul.f32.gmra.mxu0 %v307
    %v511 = vpop.f32.mrf.mxu0
    %v512 = vadd.f32 %v292, %v511
    %513 = vmatmul.f32.gmra.mxu0 %v310
    %v514 = vpop.f32.mrf.mxu0
    %v515 = vadd.f32 %v292, %v514
    %516 = vmatmul.f32.gmra.mxu0 %v313
    %v517 = vpop.f32.mrf.mxu0
    %v518 = vadd.f32 %v292, %v517
    %519 = vmatmul.f32.gmra.mxu0 %v316
    %v520 = vpop.f32.mrf.mxu0
    %v521 = vadd.f32 %v292, %v520
    %522 = vmatmul.f32.gmra.mxu0 %v319
    %v523 = vpop.f32.mrf.mxu0
    %v524 = vadd.f32 %v292, %v523
    %525 = vmatmul.f32.gmra.mxu0 %v322
    %v526 = vpop.f32.mrf.mxu0
    %v527 = vadd.f32 %v292, %v526
    %528 = vmatmul.f32.gmra.mxu0 %v325
    %v529 = vpop.f32.mrf.mxu0
    %v530 = vadd.f32 %v292, %v529
    %531 = vmatmul.f32.gmra.mxu0 %v328
    %v532 = vpop.f32.mrf.mxu0
    %v533 = vadd.f32 %v292, %v532
    %534 = vmatmul.f32.gmra.mxu0 %v331
    %v535 = vpop.f32.mrf.mxu0
    %v536 = vadd.f32 %v292, %v535
    %537 = vmatmul.f32.gmra.mxu0 %v334
    %v538 = vpop.f32.mrf.mxu0
    %v539 = vadd.f32 %v292, %v538
    %540 = vmatmul.f32.gmra.mxu0 %v337
    %v541 = vpop.f32.mrf.mxu0
    %v542 = vadd.f32 %v292, %v541
    %543 = vmatmul.f32.gmra.mxu0 %v340
    %v544 = vpop.f32.mrf.mxu0
    %v545 = vadd.f32 %v292, %v544
    %546 = vmatmul.f32.gmra.mxu0 %v343
    %v547 = vpop.f32.mrf.mxu0
    %v548 = vadd.f32 %v292, %v547
    %549 = vdwg.mxu0
    %v550 = vld [vmem:[%s6] sm:$0xff]
    %v551 = vld [vmem:[%s6 + $0x8] sm:$0xff]
    %v552 = vld [vmem:[%s6 + $0x10] sm:$0xff]
    %v553 = vld [vmem:[%s6 + $0x18] sm:$0xff]
    %v554 = vld [vmem:[%s6 + $0x20] sm:$0xff]
    %v555 = vld [vmem:[%s6 + $0x28] sm:$0xff]
    %v556 = vld [vmem:[%s6 + $0x30] sm:$0xff]
    %v557 = vld [vmem:[%s6 + $0x38] sm:$0xff]
    %v558 = vld [vmem:[#allocation8] sm:$0x3]
    %v560 = vperm.slane %v558, 0
    %v561 = vperm.slane %v558, 1
    %vm564 = vcmask 261120
    %v566 = vsel %vm564, %v268, 0
    %v569 = vsel %vm564, %v269, 0
    %571 = vmatpush.msra.mxu0 0.0
    %572 = vmatpush.msra.mxu0 0.0
    %573 = vmatpush.msra.mxu0 0.0
    %574 = vmatpush.msra.mxu0 0.0
    %575 = vmatpush.msra.mxu0 0.0
    %576 = vmatpush.msra.mxu0 0.0
    %577 = vmatpush.msra.mxu0 0.0
    %578 = vmatpush.msra.mxu0 0.0
    %579 = vmatpush.msra.mxu0 0.0
    %580 = vmatpush.msra.mxu0 0.0
    %581 = vmatpush.msra.mxu0 0.0
    %582 = vmatpush.msra.mxu0 0.0
    %583 = vmatpush.msra.mxu0 %v556
    %584 = vmatpush.msra.mxu0 %v554
    %585 = vmatpush.msra.mxu0 %v552
    %586 = vmatpush.msra.mxu0 %v550
    %587 = vmatmul.f32.gmra.mxu0 %v566
    %v588 = vpop.f32.mrf.mxu0
    %v589 = vadd.f32 %v560, %v588
    %590 = vmatmul.f32.gmra.mxu0 %v569
    %v591 = vpop.f32.mrf.mxu0
    %v592 = vadd.f32 %v560, %v591
    %593 = vdwg.mxu0
    %594 = vmatpush.msra.mxu0 0.0
    %595 = vmatpush.msra.mxu0 0.0
    %596 = vmatpush.msra.mxu0 0.0
    %597 = vmatpush.msra.mxu0 0.0
    %598 = vmatpush.msra.mxu0 0.0
    %599 = vmatpush.msra.mxu0 0.0
    %600 = vmatpush.msra.mxu0 0.0
    %601 = vmatpush.msra.mxu0 0.0
    %602 = vmatpush.msra.mxu0 0.0
    %603 = vmatpush.msra.mxu0 0.0
    %604 = vmatpush.msra.mxu0 0.0
    %605 = vmatpush.msra.mxu0 0.0
    %606 = vmatpush.msra.mxu0 %v557
    %607 = vmatpush.msra.mxu0 %v555
    %608 = vmatpush.msra.mxu0 %v553
    %609 = vmatpush.msra.mxu0 %v551
    %610 = vmatmul.f32.gmra.mxu0 %v566
    %v611 = vpop.f32.mrf.mxu0
    %v612 = vadd.f32 %v561, %v611
    %613 = vmatmul.f32.gmra.mxu0 %v569
    %v614 = vpop.f32.mrf.mxu0
    %v615 = vadd.f32 %v561, %v614
    %616 = vdwg.mxu0
    %v619 = vrot.slane %v589, 1
    %v620 = vrot.slane %v589, 2
    %v621 = vrot.slane %v589, 3
    %v622 = vrot.slane %v589, 4
    %v623 = vrot.slane %v589, 5
    %v624 = vrot.slane %v589, 6
    %v625 = vrot.slane %v589, 7
    %v626 = vrot.slane %v592, 1
    %v627 = vrot.slane %v592, 2
    %v628 = vrot.slane %v592, 3
    %v629 = vrot.slane %v592, 4
    %v630 = vrot.slane %v592, 5
    %v631 = vrot.slane %v592, 6
    %v632 = vrot.slane %v592, 7
    %v633 = vperm.slane %v589, 0
    %v634 = vperm.slane %v619, 0
    %v635 = vperm.slane %v620, 0
    %v636 = vperm.slane %v621, 0
    %v637 = vperm.slane %v622, 0
    %v638 = vperm.slane %v623, 0
    %v639 = vperm.slane %v624, 0
    %v640 = vperm.slane %v625, 0
    %v641 = vperm.slane %v592, 0
    %v642 = vperm.slane %v626, 0
    %v643 = vperm.slane %v627, 0
    %v644 = vperm.slane %v628, 0
    %v645 = vperm.slane %v629, 0
    %v646 = vperm.slane %v630, 0
    %v647 = vperm.slane %v631, 0
    %v648 = vperm.slane %v632, 0
    %665 = vrot.lane.b32.xlu0 %v589, 96
    %v666 = vpop.permute.xlu0 %665
    %667 = vrot.lane.b32.xlu0 %v592, 96
    %v668 = vpop.permute.xlu0 %667
    %v671 = vadd.f32 %v633, %v666
    %v672 = vadd.f32 %v634, %v666
    %v673 = vadd.f32 %v635, %v666
    %v674 = vadd.f32 %v636, %v666
    %v675 = vadd.f32 %v637, %v666
    %v676 = vadd.f32 %v638, %v666
    %v677 = vadd.f32 %v639, %v666
    %v678 = vadd.f32 %v640, %v666
    %v679 = vadd.f32 %v641, %v668
    %v680 = vadd.f32 %v642, %v668
    %v681 = vadd.f32 %v643, %v668
    %v682 = vadd.f32 %v644, %v668
    %v683 = vadd.f32 %v645, %v668
    %v684 = vadd.f32 %v646, %v668
    %v685 = vadd.f32 %v647, %v668
    %v686 = vadd.f32 %v648, %v668
    %v687 = vadd.f32 %v671, %v373
    %v688 = vadd.f32 %v672, %v376
    %v689 = vadd.f32 %v673, %v379
    %v690 = vadd.f32 %v674, %v382
    %v691 = vadd.f32 %v675, %v385
    %v692 = vadd.f32 %v676, %v388
    %v693 = vadd.f32 %v677, %v391
    %v694 = vadd.f32 %v678, %v394
    %v695 = vadd.f32 %v679, %v397
    %v696 = vadd.f32 %v680, %v400
    %v697 = vadd.f32 %v681, %v403
    %v698 = vadd.f32 %v682, %v406
    %v699 = vadd.f32 %v683, %v409
    %v700 = vadd.f32 %v684, %v412
    %v701 = vadd.f32 %v685, %v415
    %v702 = vadd.f32 %v686, %v418
    %vm703 = vcmp.ge.f32.partialorder %v687, 0.0
    %vm704 = vcmp.ge.f32.partialorder %v688, 0.0
    %vm705 = vcmp.ge.f32.partialorder %v689, 0.0
    %vm706 = vcmp.ge.f32.partialorder %v690, 0.0
    %vm707 = vcmp.ge.f32.partialorder %v691, 0.0
    %vm708 = vcmp.ge.f32.partialorder %v692, 0.0
    %vm709 = vcmp.ge.f32.partialorder %v693, 0.0
    %vm710 = vcmp.ge.f32.partialorder %v694, 0.0
    %vm711 = vcmp.ge.f32.partialorder %v695, 0.0
    %vm712 = vcmp.ge.f32.partialorder %v696, 0.0
    %vm713 = vcmp.ge.f32.partialorder %v697, 0.0
    %vm714 = vcmp.ge.f32.partialorder %v698, 0.0
    %vm715 = vcmp.ge.f32.partialorder %v699, 0.0
    %vm716 = vcmp.ge.f32.partialorder %v700, 0.0
    %vm717 = vcmp.ge.f32.partialorder %v701, 0.0
    %vm718 = vcmp.ge.f32.partialorder %v702, 0.0
    %v719 = vmul.f32 %v687, 0.2
    %v720 = vmul.f32 %v688, 0.2
    %v721 = vmul.f32 %v689, 0.2
    %v722 = vmul.f32 %v690, 0.2
    %v723 = vmul.f32 %v691, 0.2
    %v724 = vmul.f32 %v692, 0.2
    %v725 = vmul.f32 %v693, 0.2
    %v726 = vmul.f32 %v694, 0.2
    %v727 = vmul.f32 %v695, 0.2
    %v728 = vmul.f32 %v696, 0.2
    %v729 = vmul.f32 %v697, 0.2
    %v730 = vmul.f32 %v698, 0.2
    %v731 = vmul.f32 %v699, 0.2
    %v732 = vmul.f32 %v700, 0.2
    %v733 = vmul.f32 %v701, 0.2
    %v734 = vmul.f32 %v702, 0.2
    %v735 = vsel %vm703, %v687, %v719
    %v736 = vsel %vm704, %v688, %v720
    %v737 = vsel %vm705, %v689, %v721
    %v738 = vsel %vm706, %v690, %v722
    %v739 = vsel %vm707, %v691, %v723
    %v740 = vsel %vm708, %v692, %v724
    %v741 = vsel %vm709, %v693, %v725
    %v742 = vsel %vm710, %v694, %v726
    %v743 = vsel %vm711, %v695, %v727
    %v744 = vsel %vm712, %v696, %v728
    %v745 = vsel %vm713, %v697, %v729
    %v746 = vsel %vm714, %v698, %v730
    %v747 = vsel %vm715, %v699, %v731
    %v748 = vsel %vm716, %v700, %v732
    %v749 = vsel %vm717, %v701, %v733
    %v750 = vsel %vm718, %v702, %v734
    %v751 = vld [vmem:[%s10] sm:$0x1]
    %v753 = vperm.slane %v751, 0
    %v755 = vmul.f32 %v735, %v753
    %v756 = vmul.f32 %v736, %v753
    %v757 = vmul.f32 %v737, %v753
    %v758 = vmul.f32 %v738, %v753
    %v759 = vmul.f32 %v739, %v753
    %v760 = vmul.f32 %v740, %v753
    %v761 = vmul.f32 %v741, %v753
    %v762 = vmul.f32 %v742, %v753
    %v763 = vmul.f32 %v743, %v753
    %v764 = vmul.f32 %v744, %v753
    %v765 = vmul.f32 %v745, %v753
    %v766 = vmul.f32 %v746, %v753
    %v767 = vmul.f32 %v747, %v753
    %v768 = vmul.f32 %v748, %v753
    %v769 = vmul.f32 %v749, %v753
    %v770 = vmul.f32 %v750, %v753
    %v771 = vsel %vm564, %v755, 0.0
    %772 = vadd.xlane.f32.xlu0 %v771
    %v773 = vpop.xlane.xlu0 %772
    %v774 = vsel %vm564, %v756, 0.0
    %775 = vadd.xlane.f32.xlu0 %v774
    %v776 = vpop.xlane.xlu0 %775
    %v777 = vsel %vm564, %v757, 0.0
    %778 = vadd.xlane.f32.xlu0 %v777
    %v779 = vpop.xlane.xlu0 %778
    %v780 = vsel %vm564, %v758, 0.0
    %781 = vadd.xlane.f32.xlu0 %v780
    %v782 = vpop.xlane.xlu0 %781
    %v783 = vsel %vm564, %v759, 0.0
    %784 = vadd.xlane.f32.xlu0 %v783
    %v785 = vpop.xlane.xlu0 %784
    %v786 = vsel %vm564, %v760, 0.0
    %787 = vadd.xlane.f32.xlu0 %v786
    %v788 = vpop.xlane.xlu0 %787
    %v789 = vsel %vm564, %v761, 0.0
    %790 = vadd.xlane.f32.xlu0 %v789
    %v791 = vpop.xlane.xlu0 %790
    %v792 = vsel %vm564, %v762, 0.0
    %793 = vadd.xlane.f32.xlu0 %v792
    %v794 = vpop.xlane.xlu0 %793
    %v795 = vsel %vm564, %v763, 0.0
    %796 = vadd.xlane.f32.xlu0 %v795
    %v797 = vpop.xlane.xlu0 %796
    %v798 = vsel %vm564, %v764, 0.0
    %799 = vadd.xlane.f32.xlu0 %v798
    %v800 = vpop.xlane.xlu0 %799
    %v801 = vsel %vm564, %v765, 0.0
    %802 = vadd.xlane.f32.xlu0 %v801
    %v803 = vpop.xlane.xlu0 %802
    %v804 = vsel %vm564, %v766, 0.0
    %805 = vadd.xlane.f32.xlu0 %v804
    %v806 = vpop.xlane.xlu0 %805
    %v807 = vsel %vm564, %v767, 0.0
    %808 = vadd.xlane.f32.xlu0 %v807
    %v809 = vpop.xlane.xlu0 %808
    %v810 = vsel %vm564, %v768, 0.0
    %811 = vadd.xlane.f32.xlu0 %v810
    %v812 = vpop.xlane.xlu0 %811
    %v813 = vsel %vm564, %v769, 0.0
    %814 = vadd.xlane.f32.xlu0 %v813
    %v815 = vpop.xlane.xlu0 %814
    %v816 = vsel %vm564, %v770, 0.0
    %817 = vadd.xlane.f32.xlu0 %v816
    %v818 = vpop.xlane.xlu0 %817
    %vm819 = vcmp.gt.f32.partialorder %v134, 0.0
    %vm820 = vcmp.gt.f32.partialorder %v135, 0.0
    %v837 = vlaneseq
    %v838 = vand.u32 %v837, 127
    %v839 = vperm.slane %v773, %v838
    %v840 = vperm.slane %v776, %v838
    %v841 = vperm.slane %v779, %v838
    %v842 = vperm.slane %v782, %v838
    %v843 = vperm.slane %v785, %v838
    %v844 = vperm.slane %v788, %v838
    %v845 = vperm.slane %v791, %v838
    %v846 = vperm.slane %v794, %v838
    %v847 = vperm.slane %v797, %v838
    %v848 = vperm.slane %v800, %v838
    %v849 = vperm.slane %v803, %v838
    %v850 = vperm.slane %v806, %v838
    %v851 = vperm.slane %v809, %v838
    %v852 = vperm.slane %v812, %v838
    %v853 = vperm.slane %v815, %v838
    %v854 = vperm.slane %v818, %v838
    %vm855 = vcmask 1041409
    %v856 = vsel %vm855, %v840, %v839
    %vm857 = vcmask 1042434
    %v858 = vsel %vm857, %v841, %v856
    %vm859 = vcmask 1043459
    %v860 = vsel %vm859, %v842, %v858
    %vm861 = vcmask 1044484
    %v862 = vsel %vm861, %v843, %v860
    %vm863 = vcmask 1045509
    %v864 = vsel %vm863, %v844, %v862
    %vm865 = vcmask 1046534
    %v866 = vsel %vm865, %v845, %v864
    %vm867 = vcmask 1047559
    %v868 = vsel %vm867, %v846, %v866
    %v869 = vsel %vm855, %v848, %v847
    %v870 = vsel %vm857, %v849, %v869
    %v871 = vsel %vm859, %v850, %v870
    %v872 = vsel %vm861, %v851, %v871
    %v873 = vsel %vm863, %v852, %v872
    %v874 = vsel %vm865, %v853, %v873
    %v875 = vsel %vm867, %v854, %v874
    %v878 = vsel %vm819, %v868, -1e+30
    %v879 = vsel %vm820, %v875, -1e+30
    %vm880 = vcmask 64512
    %v881 = vsel %vm880, %v878, -inf
    %v882 = vrot.slane %v881, 4
    %v883 = vmax.f32 %v881, %v882
    %v884 = vrot.slane %v883, 2
    %v885 = vmax.f32 %v883, %v884
    %v886 = vrot.slane %v885, 1
    %v887 = vmax.f32 %v885, %v886
    %v888 = vsel %vm880, %v879, -inf
    %v889 = vrot.slane %v888, 4
    %v890 = vmax.f32 %v888, %v889
    %v891 = vrot.slane %v890, 2
    %v892 = vmax.f32 %v890, %v891
    %v893 = vrot.slane %v892, 1
    %v894 = vmax.f32 %v892, %v893
    %v895 = vsub.f32 %v878, %v887
    %v896 = vsub.f32 %v879, %v894
    %v897 = vmul.f32 %v895, 1.442695
    %v898 = vpow.pop %v897
    %v899 = vmul.f32 %v896, 1.442695
    %v900 = vpow.pop %v899
    %v901 = vmul.f32 %v898, %v134
    %v902 = vmul.f32 %v900, %v135
    %v903 = vsel %vm880, %v901, 0.0
    %v904 = vrot.slane %v903, 4
    %v905 = vadd.f32 %v903, %v904
    %v906 = vrot.slane %v905, 2
    %v907 = vadd.f32 %v905, %v906
    %v908 = vrot.slane %v907, 1
    %v909 = vadd.f32 %v907, %v908
    %v910 = vsel %vm880, %v902, 0.0
    %v911 = vrot.slane %v910, 4
    %v912 = vadd.f32 %v910, %v911
    %v913 = vrot.slane %v912, 2
    %v914 = vadd.f32 %v912, %v913
    %v915 = vrot.slane %v914, 1
    %v916 = vadd.f32 %v914, %v915
    %v917 = vmax.f32 %v909, 1e-20
    %v918 = vmax.f32 %v916, 1e-20
    %v919 = vrcp.pop %v917
    %v920 = vmul.f32 %v917, %v919
    %v921 = vsub.f32 1.0, %v920
    %v922 = vmul.f32 %v919, %v921
    %v923 = vadd.f32 %v919, %v922
    %vm924 = vweird.f32 %v917
    %vm925 = vweird.f32 %v919
    %vm926 = vmor %vm924, %vm925
    %v927 = vsel %vm926, %v919, %v923
    %v928 = vand.u32 2147483647, %v917
    %vm929 = vcmp.eq.f32.partialorder %v928, 8.507059e+37
    %v930 = vand.u32 %v917, 2147483648
    %v931 = vor.u32 1.1754944e-38, %v930
    %v932 = vsel %vm929, %v931, %v927
    %v933 = vmul.f32 %v901, %v932
    %v934 = vrcp.pop %v918
    %v935 = vmul.f32 %v918, %v934
    %v936 = vsub.f32 1.0, %v935
    %v937 = vmul.f32 %v934, %v936
    %v938 = vadd.f32 %v934, %v937
    %vm939 = vweird.f32 %v918
    %vm940 = vweird.f32 %v934
    %vm941 = vmor %vm939, %vm940
    %v942 = vsel %vm941, %v934, %v938
    %v943 = vand.u32 2147483647, %v918
    %vm944 = vcmp.eq.f32.partialorder %v943, 8.507059e+37
    %v945 = vand.u32 %v918, 2147483648
    %v946 = vor.u32 1.1754944e-38, %v945
    %v947 = vsel %vm944, %v946, %v942
    %v948 = vmul.f32 %v902, %v947
    %965 = vrot.lane.b32.xlu0 %v373, 32
    %v966 = vpop.permute.xlu0 %965
    %967 = vrot.lane.b32.xlu0 %v376, 32
    %v968 = vpop.permute.xlu0 %967
    %969 = vrot.lane.b32.xlu0 %v379, 32
    %v970 = vpop.permute.xlu0 %969
    %971 = vrot.lane.b32.xlu0 %v382, 32
    %v972 = vpop.permute.xlu0 %971
    %973 = vrot.lane.b32.xlu0 %v385, 32
    %v974 = vpop.permute.xlu0 %973
    %975 = vrot.lane.b32.xlu0 %v388, 32
    %v976 = vpop.permute.xlu0 %975
    %977 = vrot.lane.b32.xlu0 %v391, 32
    %v978 = vpop.permute.xlu0 %977
    %979 = vrot.lane.b32.xlu0 %v394, 32
    %v980 = vpop.permute.xlu0 %979
    %981 = vrot.lane.b32.xlu0 %v397, 32
    %v982 = vpop.permute.xlu0 %981
    %983 = vrot.lane.b32.xlu0 %v400, 32
    %v984 = vpop.permute.xlu0 %983
    %985 = vrot.lane.b32.xlu0 %v403, 32
    %v986 = vpop.permute.xlu0 %985
    %987 = vrot.lane.b32.xlu0 %v406, 32
    %v988 = vpop.permute.xlu0 %987
    %989 = vrot.lane.b32.xlu0 %v409, 32
    %v990 = vpop.permute.xlu0 %989
    %991 = vrot.lane.b32.xlu0 %v412, 32
    %v992 = vpop.permute.xlu0 %991
    %993 = vrot.lane.b32.xlu0 %v415, 32
    %v994 = vpop.permute.xlu0 %993
    %995 = vrot.lane.b32.xlu0 %v418, 32
    %v996 = vpop.permute.xlu0 %995
    %v1013 = vadd.f32 %v671, %v966
    %v1014 = vadd.f32 %v672, %v968
    %v1015 = vadd.f32 %v673, %v970
    %v1016 = vadd.f32 %v674, %v972
    %v1017 = vadd.f32 %v675, %v974
    %v1018 = vadd.f32 %v676, %v976
    %v1019 = vadd.f32 %v677, %v978
    %v1020 = vadd.f32 %v678, %v980
    %v1021 = vadd.f32 %v679, %v982
    %v1022 = vadd.f32 %v680, %v984
    %v1023 = vadd.f32 %v681, %v986
    %v1024 = vadd.f32 %v682, %v988
    %v1025 = vadd.f32 %v683, %v990
    %v1026 = vadd.f32 %v684, %v992
    %v1027 = vadd.f32 %v685, %v994
    %v1028 = vadd.f32 %v686, %v996
    %vm1029 = vcmp.ge.f32.partialorder %v1013, 0.0
    %vm1030 = vcmp.ge.f32.partialorder %v1014, 0.0
    %vm1031 = vcmp.ge.f32.partialorder %v1015, 0.0
    %vm1032 = vcmp.ge.f32.partialorder %v1016, 0.0
    %vm1033 = vcmp.ge.f32.partialorder %v1017, 0.0
    %vm1034 = vcmp.ge.f32.partialorder %v1018, 0.0
    %vm1035 = vcmp.ge.f32.partialorder %v1019, 0.0
    %vm1036 = vcmp.ge.f32.partialorder %v1020, 0.0
    %vm1037 = vcmp.ge.f32.partialorder %v1021, 0.0
    %vm1038 = vcmp.ge.f32.partialorder %v1022, 0.0
    %vm1039 = vcmp.ge.f32.partialorder %v1023, 0.0
    %vm1040 = vcmp.ge.f32.partialorder %v1024, 0.0
    %vm1041 = vcmp.ge.f32.partialorder %v1025, 0.0
    %vm1042 = vcmp.ge.f32.partialorder %v1026, 0.0
    %vm1043 = vcmp.ge.f32.partialorder %v1027, 0.0
    %vm1044 = vcmp.ge.f32.partialorder %v1028, 0.0
    %v1045 = vmul.f32 %v1013, 0.2
    %v1046 = vmul.f32 %v1014, 0.2
    %v1047 = vmul.f32 %v1015, 0.2
    %v1048 = vmul.f32 %v1016, 0.2
    %v1049 = vmul.f32 %v1017, 0.2
    %v1050 = vmul.f32 %v1018, 0.2
    %v1051 = vmul.f32 %v1019, 0.2
    %v1052 = vmul.f32 %v1020, 0.2
    %v1053 = vmul.f32 %v1021, 0.2
    %v1054 = vmul.f32 %v1022, 0.2
    %v1055 = vmul.f32 %v1023, 0.2
    %v1056 = vmul.f32 %v1024, 0.2
    %v1057 = vmul.f32 %v1025, 0.2
    %v1058 = vmul.f32 %v1026, 0.2
    %v1059 = vmul.f32 %v1027, 0.2
    %v1060 = vmul.f32 %v1028, 0.2
    %v1061 = vsel %vm1029, %v1013, %v1045
    %v1062 = vsel %vm1030, %v1014, %v1046
    %v1063 = vsel %vm1031, %v1015, %v1047
    %v1064 = vsel %vm1032, %v1016, %v1048
    %v1065 = vsel %vm1033, %v1017, %v1049
    %v1066 = vsel %vm1034, %v1018, %v1050
    %v1067 = vsel %vm1035, %v1019, %v1051
    %v1068 = vsel %vm1036, %v1020, %v1052
    %v1069 = vsel %vm1037, %v1021, %v1053
    %v1070 = vsel %vm1038, %v1022, %v1054
    %v1071 = vsel %vm1039, %v1023, %v1055
    %v1072 = vsel %vm1040, %v1024, %v1056
    %v1073 = vsel %vm1041, %v1025, %v1057
    %v1074 = vsel %vm1042, %v1026, %v1058
    %v1075 = vsel %vm1043, %v1027, %v1059
    %v1076 = vsel %vm1044, %v1028, %v1060
    %v1077 = vperm.slane %v933, 0
    %v1078 = vlaneseq
    %v1079 = vshrl.u32 %v1078, 7
    %1081 = vset.pattern.permute.xlu0 %v1079
    %1082 = vperm.xlu0 %1081, %v1077
    %v1083 = vpop.permute.xlu0 %1082
    %v1084 = vperm.slane %v933, 1
    %v1085 = vlaneseq
    %v1086 = vshrl.u32 %v1085, 7
    %1088 = vset.pattern.permute.xlu0 %v1086
    %1089 = vperm.xlu0 %1088, %v1084
    %v1090 = vpop.permute.xlu0 %1089
    %v1091 = vperm.slane %v933, 2
    %v1092 = vlaneseq
    %v1093 = vshrl.u32 %v1092, 7
    %1095 = vset.pattern.permute.xlu0 %v1093
    %1096 = vperm.xlu0 %1095, %v1091
    %v1097 = vpop.permute.xlu0 %1096
    %v1098 = vperm.slane %v933, 3
    %v1099 = vlaneseq
    %v1100 = vshrl.u32 %v1099, 7
    %1102 = vset.pattern.permute.xlu0 %v1100
    %1103 = vperm.xlu0 %1102, %v1098
    %v1104 = vpop.permute.xlu0 %1103
    %v1105 = vperm.slane %v933, 4
    %v1106 = vlaneseq
    %v1107 = vshrl.u32 %v1106, 7
    %1109 = vset.pattern.permute.xlu0 %v1107
    %1110 = vperm.xlu0 %1109, %v1105
    %v1111 = vpop.permute.xlu0 %1110
    %v1112 = vperm.slane %v933, 5
    %v1113 = vlaneseq
    %v1114 = vshrl.u32 %v1113, 7
    %1116 = vset.pattern.permute.xlu0 %v1114
    %1117 = vperm.xlu0 %1116, %v1112
    %v1118 = vpop.permute.xlu0 %1117
    %v1119 = vperm.slane %v933, 6
    %v1120 = vlaneseq
    %v1121 = vshrl.u32 %v1120, 7
    %1123 = vset.pattern.permute.xlu0 %v1121
    %1124 = vperm.xlu0 %1123, %v1119
    %v1125 = vpop.permute.xlu0 %1124
    %v1126 = vperm.slane %v933, 7
    %v1127 = vlaneseq
    %v1128 = vshrl.u32 %v1127, 7
    %1130 = vset.pattern.permute.xlu0 %v1128
    %1131 = vperm.xlu0 %1130, %v1126
    %v1132 = vpop.permute.xlu0 %1131
    %v1133 = vperm.slane %v948, 0
    %v1134 = vlaneseq
    %v1135 = vshrl.u32 %v1134, 7
    %1137 = vset.pattern.permute.xlu0 %v1135
    %1138 = vperm.xlu0 %1137, %v1133
    %v1139 = vpop.permute.xlu0 %1138
    %v1140 = vperm.slane %v948, 1
    %v1141 = vlaneseq
    %v1142 = vshrl.u32 %v1141, 7
    %1144 = vset.pattern.permute.xlu0 %v1142
    %1145 = vperm.xlu0 %1144, %v1140
    %v1146 = vpop.permute.xlu0 %1145
    %v1147 = vperm.slane %v948, 2
    %v1148 = vlaneseq
    %v1149 = vshrl.u32 %v1148, 7
    %1151 = vset.pattern.permute.xlu0 %v1149
    %1152 = vperm.xlu0 %1151, %v1147
    %v1153 = vpop.permute.xlu0 %1152
    %v1154 = vperm.slane %v948, 3
    %v1155 = vlaneseq
    %v1156 = vshrl.u32 %v1155, 7
    %1158 = vset.pattern.permute.xlu0 %v1156
    %1159 = vperm.xlu0 %1158, %v1154
    %v1160 = vpop.permute.xlu0 %1159
    %v1161 = vperm.slane %v948, 4
    %v1162 = vlaneseq
    %v1163 = vshrl.u32 %v1162, 7
    %1165 = vset.pattern.permute.xlu0 %v1163
    %1166 = vperm.xlu0 %1165, %v1161
    %v1167 = vpop.permute.xlu0 %1166
    %v1168 = vperm.slane %v948, 5
    %v1169 = vlaneseq
    %v1170 = vshrl.u32 %v1169, 7
    %1172 = vset.pattern.permute.xlu0 %v1170
    %1173 = vperm.xlu0 %1172, %v1168
    %v1174 = vpop.permute.xlu0 %1173
    %v1175 = vperm.slane %v948, 6
    %v1176 = vlaneseq
    %v1177 = vshrl.u32 %v1176, 7
    %1179 = vset.pattern.permute.xlu0 %v1177
    %1180 = vperm.xlu0 %1179, %v1175
    %v1181 = vpop.permute.xlu0 %1180
    %v1182 = vperm.slane %v948, 7
    %v1183 = vlaneseq
    %v1184 = vshrl.u32 %v1183, 7
    %1186 = vset.pattern.permute.xlu0 %v1184
    %1187 = vperm.xlu0 %1186, %v1182
    %v1188 = vpop.permute.xlu0 %1187
    %v1189 = vmul.f32 %v1083, %v1061
    %v1190 = vmul.f32 %v1090, %v1062
    %v1191 = vmul.f32 %v1097, %v1063
    %v1192 = vmul.f32 %v1104, %v1064
    %v1193 = vmul.f32 %v1111, %v1065
    %v1194 = vmul.f32 %v1118, %v1066
    %v1195 = vmul.f32 %v1125, %v1067
    %v1196 = vmul.f32 %v1132, %v1068
    %v1197 = vmul.f32 %v1139, %v1069
    %v1198 = vmul.f32 %v1146, %v1070
    %v1199 = vmul.f32 %v1153, %v1071
    %v1200 = vmul.f32 %v1160, %v1072
    %v1201 = vmul.f32 %v1167, %v1073
    %v1202 = vmul.f32 %v1174, %v1074
    %v1203 = vmul.f32 %v1181, %v1075
    %v1204 = vmul.f32 %v1188, %v1076
    %vm1205 = vcmask 785920
    %v1206 = vsel %vm1205, %v1189, 0.0
    %v1207 = vsel %vm1205, %v1190, 0.0
    %v1208 = vadd.f32 %v1206, %v1207
    %v1209 = vsel %vm1205, %v1191, 0.0
    %v1210 = vadd.f32 %v1208, %v1209
    %v1211 = vsel %vm1205, %v1192, 0.0
    %v1212 = vadd.f32 %v1210, %v1211
    %v1213 = vsel %vm1205, %v1193, 0.0
    %v1214 = vadd.f32 %v1212, %v1213
    %v1215 = vsel %vm1205, %v1194, 0.0
    %v1216 = vadd.f32 %v1214, %v1215
    %v1217 = vsel %vm1205, %v1195, 0.0
    %v1218 = vadd.f32 %v1216, %v1217
    %v1219 = vsel %vm1205, %v1196, 0.0
    %v1220 = vadd.f32 %v1218, %v1219
    %v1221 = vsel %vm1205, %v1197, 0.0
    %v1222 = vsel %vm1205, %v1198, 0.0
    %v1223 = vadd.f32 %v1221, %v1222
    %v1224 = vsel %vm1205, %v1199, 0.0
    %v1225 = vadd.f32 %v1223, %v1224
    %v1226 = vsel %vm1205, %v1200, 0.0
    %v1227 = vadd.f32 %v1225, %v1226
    %v1228 = vsel %vm1205, %v1201, 0.0
    %v1229 = vadd.f32 %v1227, %v1228
    %v1230 = vsel %vm1205, %v1202, 0.0
    %v1231 = vadd.f32 %v1229, %v1230
    %v1232 = vsel %vm1205, %v1203, 0.0
    %v1233 = vadd.f32 %v1231, %v1232
    %v1234 = vsel %vm1205, %v1204, 0.0
    %v1235 = vadd.f32 %v1233, %v1234
    %1238 = vrot.lane.b32.xlu0 %v612, 64
    %v1239 = vpop.permute.xlu0 %1238
    %1240 = vrot.lane.b32.xlu0 %v615, 64
    %v1241 = vpop.permute.xlu0 %1240
    %v1244 = vadd.f32 %v1220, %v1239
    %v1245 = vadd.f32 %v1235, %v1241
    %vm1246 = vcmp.ge.f32.partialorder %v1244, 0.0
    %vm1247 = vcmp.ge.f32.partialorder %v1245, 0.0
    %v1248 = vmul.f32 %v1244, 0.2
    %v1249 = vmul.f32 %v1245, 0.2
    %v1250 = vsel %vm1246, %v1244, %v1248
    %v1251 = vsel %vm1247, %v1245, %v1249
    %1252 = vrot.lane.b32.xlu0 %v268, 64
    %v1253 = vpop.permute.xlu0 %1252
    %1254 = vrot.lane.b32.xlu0 %v269, 64
    %v1255 = vpop.permute.xlu0 %1254
    %v1258 = vadd.f32 %v1250, %v1253
    %v1259 = vadd.f32 %v1251, %v1255
    %v1260 = vmax.f32 %v1258, 0.0
    %v1261 = vmax.f32 %v1259, 0.0
    %s1262 = scalar_lea.vmem %s6, 64
    %v1263 = vld [vmem:[%s1262] sm:$0xff]
    %v1264 = vld [vmem:[%s1262 + $0x8] sm:$0xff]
    %v1265 = vld [vmem:[%s1262 + $0x10] sm:$0xff]
    %v1266 = vld [vmem:[%s1262 + $0x18] sm:$0xff]
    %v1267 = vld [vmem:[%s1262 + $0x20] sm:$0xff]
    %v1268 = vld [vmem:[%s1262 + $0x28] sm:$0xff]
    %v1269 = vld [vmem:[%s1262 + $0x30] sm:$0xff]
    %v1270 = vld [vmem:[%s1262 + $0x38] sm:$0xff]
    %s1271 = scalar_lea.vmem [#allocation8], 2
    %v1272 = vld [vmem:[%s1271] sm:$0x3]
    %v1274 = vperm.slane %v1272, 0
    %v1275 = vperm.slane %v1272, 1
    %1280 = vrot.lane.b32.xlu0 %v1260, 64
    %v1281 = vpop.permute.xlu0 %1280
    %1282 = vrot.lane.b32.xlu0 %v1261, 64
    %v1283 = vpop.permute.xlu0 %1282
    %v1284 = vsel %vm564, %v1281, 0
    %v1286 = vsel %vm564, %v1283, 0
    %1288 = vmatpush.msra.mxu0 0.0
    %1289 = vmatpush.msra.mxu0 0.0
    %1290 = vmatpush.msra.mxu0 0.0
    %1291 = vmatpush.msra.mxu0 0.0
    %1292 = vmatpush.msra.mxu0 0.0
    %1293 = vmatpush.msra.mxu0 0.0
    %1294 = vmatpush.msra.mxu0 0.0
    %1295 = vmatpush.msra.mxu0 0.0
    %1296 = vmatpush.msra.mxu0 0.0
    %1297 = vmatpush.msra.mxu0 0.0
    %1298 = vmatpush.msra.mxu0 0.0
    %1299 = vmatpush.msra.mxu0 0.0
    %1300 = vmatpush.msra.mxu0 %v1269
    %1301 = vmatpush.msra.mxu0 %v1267
    %1302 = vmatpush.msra.mxu0 %v1265
    %1303 = vmatpush.msra.mxu0 %v1263
    %1304 = vmatmul.f32.gmra.mxu0 %v1284
    %v1305 = vpop.f32.mrf.mxu0
    %v1306 = vadd.f32 %v1274, %v1305
    %1307 = vmatmul.f32.gmra.mxu0 %v1286
    %v1308 = vpop.f32.mrf.mxu0
    %v1309 = vadd.f32 %v1274, %v1308
    %1310 = vdwg.mxu0
    %1311 = vmatpush.msra.mxu0 0.0
    %1312 = vmatpush.msra.mxu0 0.0
    %1313 = vmatpush.msra.mxu0 0.0
    %1314 = vmatpush.msra.mxu0 0.0
    %1315 = vmatpush.msra.mxu0 0.0
    %1316 = vmatpush.msra.mxu0 0.0
    %1317 = vmatpush.msra.mxu0 0.0
    %1318 = vmatpush.msra.mxu0 0.0
    %1319 = vmatpush.msra.mxu0 0.0
    %1320 = vmatpush.msra.mxu0 0.0
    %1321 = vmatpush.msra.mxu0 0.0
    %1322 = vmatpush.msra.mxu0 0.0
    %1323 = vmatpush.msra.mxu0 %v1270
    %1324 = vmatpush.msra.mxu0 %v1268
    %1325 = vmatpush.msra.mxu0 %v1266
    %1326 = vmatpush.msra.mxu0 %v1264
    %1327 = vmatmul.f32.gmra.mxu0 %v1284
    %v1328 = vpop.f32.mrf.mxu0
    %v1329 = vadd.f32 %v1275, %v1328
    %1330 = vmatmul.f32.gmra.mxu0 %v1286
    %v1331 = vpop.f32.mrf.mxu0
    %v1332 = vadd.f32 %v1275, %v1331
    %1333 = vdwg.mxu0
    %v1336 = vrot.slane %v1306, 1
    %v1337 = vrot.slane %v1306, 2
    %v1338 = vrot.slane %v1306, 3
    %v1339 = vrot.slane %v1306, 4
    %v1340 = vrot.slane %v1306, 5
    %v1341 = vrot.slane %v1306, 6
    %v1342 = vrot.slane %v1306, 7
    %v1343 = vrot.slane %v1309, 1
    %v1344 = vrot.slane %v1309, 2
    %v1345 = vrot.slane %v1309, 3
    %v1346 = vrot.slane %v1309, 4
    %v1347 = vrot.slane %v1309, 5
    %v1348 = vrot.slane %v1309, 6
    %v1349 = vrot.slane %v1309, 7
    %v1350 = vperm.slane %v1306, 0
    %v1351 = vperm.slane %v1336, 0
    %v1352 = vperm.slane %v1337, 0
    %v1353 = vperm.slane %v1338, 0
    %v1354 = vperm.slane %v1339, 0
    %v1355 = vperm.slane %v1340, 0
    %v1356 = vperm.slane %v1341, 0
    %v1357 = vperm.slane %v1342, 0
    %v1358 = vperm.slane %v1309, 0
    %v1359 = vperm.slane %v1343, 0
    %v1360 = vperm.slane %v1344, 0
    %v1361 = vperm.slane %v1345, 0
    %v1362 = vperm.slane %v1346, 0
    %v1363 = vperm.slane %v1347, 0
    %v1364 = vperm.slane %v1348, 0
    %v1365 = vperm.slane %v1349, 0
    %1382 = vrot.lane.b32.xlu0 %v1306, 96
    %v1383 = vpop.permute.xlu0 %1382
    %1384 = vrot.lane.b32.xlu0 %v1309, 96
    %v1385 = vpop.permute.xlu0 %1384
    %v1388 = vadd.f32 %v1350, %v1383
    %v1389 = vadd.f32 %v1351, %v1383
    %v1390 = vadd.f32 %v1352, %v1383
    %v1391 = vadd.f32 %v1353, %v1383
    %v1392 = vadd.f32 %v1354, %v1383
    %v1393 = vadd.f32 %v1355, %v1383
    %v1394 = vadd.f32 %v1356, %v1383
    %v1395 = vadd.f32 %v1357, %v1383
    %v1396 = vadd.f32 %v1358, %v1385
    %v1397 = vadd.f32 %v1359, %v1385
    %v1398 = vadd.f32 %v1360, %v1385
    %v1399 = vadd.f32 %v1361, %v1385
    %v1400 = vadd.f32 %v1362, %v1385
    %v1401 = vadd.f32 %v1363, %v1385
    %v1402 = vadd.f32 %v1364, %v1385
    %v1403 = vadd.f32 %v1365, %v1385
    %1404 = vrot.lane.b32.xlu0 %v373, 64
    %v1405 = vpop.permute.xlu0 %1404
    %1406 = vrot.lane.b32.xlu0 %v376, 64
    %v1407 = vpop.permute.xlu0 %1406
    %1408 = vrot.lane.b32.xlu0 %v379, 64
    %v1409 = vpop.permute.xlu0 %1408
    %1410 = vrot.lane.b32.xlu0 %v382, 64
    %v1411 = vpop.permute.xlu0 %1410
    %1412 = vrot.lane.b32.xlu0 %v385, 64
    %v1413 = vpop.permute.xlu0 %1412
    %1414 = vrot.lane.b32.xlu0 %v388, 64
    %v1415 = vpop.permute.xlu0 %1414
    %1416 = vrot.lane.b32.xlu0 %v391, 64
    %v1417 = vpop.permute.xlu0 %1416
    %1418 = vrot.lane.b32.xlu0 %v394, 64
    %v1419 = vpop.permute.xlu0 %1418
    %1420 = vrot.lane.b32.xlu0 %v397, 64
    %v1421 = vpop.permute.xlu0 %1420
    %1422 = vrot.lane.b32.xlu0 %v400, 64
    %v1423 = vpop.permute.xlu0 %1422
    %1424 = vrot.lane.b32.xlu0 %v403, 64
    %v1425 = vpop.permute.xlu0 %1424
    %1426 = vrot.lane.b32.xlu0 %v406, 64
    %v1427 = vpop.permute.xlu0 %1426
    %1428 = vrot.lane.b32.xlu0 %v409, 64
    %v1429 = vpop.permute.xlu0 %1428
    %1430 = vrot.lane.b32.xlu0 %v412, 64
    %v1431 = vpop.permute.xlu0 %1430
    %1432 = vrot.lane.b32.xlu0 %v415, 64
    %v1433 = vpop.permute.xlu0 %1432
    %1434 = vrot.lane.b32.xlu0 %v418, 64
    %v1435 = vpop.permute.xlu0 %1434
    %v1452 = vadd.f32 %v1388, %v1405
    %v1453 = vadd.f32 %v1389, %v1407
    %v1454 = vadd.f32 %v1390, %v1409
    %v1455 = vadd.f32 %v1391, %v1411
    %v1456 = vadd.f32 %v1392, %v1413
    %v1457 = vadd.f32 %v1393, %v1415
    %v1458 = vadd.f32 %v1394, %v1417
    %v1459 = vadd.f32 %v1395, %v1419
    %v1460 = vadd.f32 %v1396, %v1421
    %v1461 = vadd.f32 %v1397, %v1423
    %v1462 = vadd.f32 %v1398, %v1425
    %v1463 = vadd.f32 %v1399, %v1427
    %v1464 = vadd.f32 %v1400, %v1429
    %v1465 = vadd.f32 %v1401, %v1431
    %v1466 = vadd.f32 %v1402, %v1433
    %v1467 = vadd.f32 %v1403, %v1435
    %vm1468 = vcmp.ge.f32.partialorder %v1452, 0.0
    %vm1469 = vcmp.ge.f32.partialorder %v1453, 0.0
    %vm1470 = vcmp.ge.f32.partialorder %v1454, 0.0
    %vm1471 = vcmp.ge.f32.partialorder %v1455, 0.0
    %vm1472 = vcmp.ge.f32.partialorder %v1456, 0.0
    %vm1473 = vcmp.ge.f32.partialorder %v1457, 0.0
    %vm1474 = vcmp.ge.f32.partialorder %v1458, 0.0
    %vm1475 = vcmp.ge.f32.partialorder %v1459, 0.0
    %vm1476 = vcmp.ge.f32.partialorder %v1460, 0.0
    %vm1477 = vcmp.ge.f32.partialorder %v1461, 0.0
    %vm1478 = vcmp.ge.f32.partialorder %v1462, 0.0
    %vm1479 = vcmp.ge.f32.partialorder %v1463, 0.0
    %vm1480 = vcmp.ge.f32.partialorder %v1464, 0.0
    %vm1481 = vcmp.ge.f32.partialorder %v1465, 0.0
    %vm1482 = vcmp.ge.f32.partialorder %v1466, 0.0
    %vm1483 = vcmp.ge.f32.partialorder %v1467, 0.0
    %v1484 = vmul.f32 %v1452, 0.2
    %v1485 = vmul.f32 %v1453, 0.2
    %v1486 = vmul.f32 %v1454, 0.2
    %v1487 = vmul.f32 %v1455, 0.2
    %v1488 = vmul.f32 %v1456, 0.2
    %v1489 = vmul.f32 %v1457, 0.2
    %v1490 = vmul.f32 %v1458, 0.2
    %v1491 = vmul.f32 %v1459, 0.2
    %v1492 = vmul.f32 %v1460, 0.2
    %v1493 = vmul.f32 %v1461, 0.2
    %v1494 = vmul.f32 %v1462, 0.2
    %v1495 = vmul.f32 %v1463, 0.2
    %v1496 = vmul.f32 %v1464, 0.2
    %v1497 = vmul.f32 %v1465, 0.2
    %v1498 = vmul.f32 %v1466, 0.2
    %v1499 = vmul.f32 %v1467, 0.2
    %v1500 = vsel %vm1468, %v1452, %v1484
    %v1501 = vsel %vm1469, %v1453, %v1485
    %v1502 = vsel %vm1470, %v1454, %v1486
    %v1503 = vsel %vm1471, %v1455, %v1487
    %v1504 = vsel %vm1472, %v1456, %v1488
    %v1505 = vsel %vm1473, %v1457, %v1489
    %v1506 = vsel %vm1474, %v1458, %v1490
    %v1507 = vsel %vm1475, %v1459, %v1491
    %v1508 = vsel %vm1476, %v1460, %v1492
    %v1509 = vsel %vm1477, %v1461, %v1493
    %v1510 = vsel %vm1478, %v1462, %v1494
    %v1511 = vsel %vm1479, %v1463, %v1495
    %v1512 = vsel %vm1480, %v1464, %v1496
    %v1513 = vsel %vm1481, %v1465, %v1497
    %v1514 = vsel %vm1482, %v1466, %v1498
    %v1515 = vsel %vm1483, %v1467, %v1499
    %s1516 = scalar_lea.vmem %s10, 1
    %v1517 = vld [vmem:[%s1516] sm:$0x1]
    %v1519 = vperm.slane %v1517, 0
    %v1521 = vmul.f32 %v1500, %v1519
    %v1522 = vmul.f32 %v1501, %v1519
    %v1523 = vmul.f32 %v1502, %v1519
    %v1524 = vmul.f32 %v1503, %v1519
    %v1525 = vmul.f32 %v1504, %v1519
    %v1526 = vmul.f32 %v1505, %v1519
    %v1527 = vmul.f32 %v1506, %v1519
    %v1528 = vmul.f32 %v1507, %v1519
    %v1529 = vmul.f32 %v1508, %v1519
    %v1530 = vmul.f32 %v1509, %v1519
    %v1531 = vmul.f32 %v1510, %v1519
    %v1532 = vmul.f32 %v1511, %v1519
    %v1533 = vmul.f32 %v1512, %v1519
    %v1534 = vmul.f32 %v1513, %v1519
    %v1535 = vmul.f32 %v1514, %v1519
    %v1536 = vmul.f32 %v1515, %v1519
    %v1537 = vsel %vm564, %v1521, 0.0
    %1538 = vadd.xlane.f32.xlu0 %v1537
    %v1539 = vpop.xlane.xlu0 %1538
    %v1540 = vsel %vm564, %v1522, 0.0
    %1541 = vadd.xlane.f32.xlu0 %v1540
    %v1542 = vpop.xlane.xlu0 %1541
    %v1543 = vsel %vm564, %v1523, 0.0
    %1544 = vadd.xlane.f32.xlu0 %v1543
    %v1545 = vpop.xlane.xlu0 %1544
    %v1546 = vsel %vm564, %v1524, 0.0
    %1547 = vadd.xlane.f32.xlu0 %v1546
    %v1548 = vpop.xlane.xlu0 %1547
    %v1549 = vsel %vm564, %v1525, 0.0
    %1550 = vadd.xlane.f32.xlu0 %v1549
    %v1551 = vpop.xlane.xlu0 %1550
    %v1552 = vsel %vm564, %v1526, 0.0
    %1553 = vadd.xlane.f32.xlu0 %v1552
    %v1554 = vpop.xlane.xlu0 %1553
    %v1555 = vsel %vm564, %v1527, 0.0
    %1556 = vadd.xlane.f32.xlu0 %v1555
    %v1557 = vpop.xlane.xlu0 %1556
    %v1558 = vsel %vm564, %v1528, 0.0
    %1559 = vadd.xlane.f32.xlu0 %v1558
    %v1560 = vpop.xlane.xlu0 %1559
    %v1561 = vsel %vm564, %v1529, 0.0
    %1562 = vadd.xlane.f32.xlu0 %v1561
    %v1563 = vpop.xlane.xlu0 %1562
    %v1564 = vsel %vm564, %v1530, 0.0
    %1565 = vadd.xlane.f32.xlu0 %v1564
    %v1566 = vpop.xlane.xlu0 %1565
    %v1567 = vsel %vm564, %v1531, 0.0
    %1568 = vadd.xlane.f32.xlu0 %v1567
    %v1569 = vpop.xlane.xlu0 %1568
    %v1570 = vsel %vm564, %v1532, 0.0
    %1571 = vadd.xlane.f32.xlu0 %v1570
    %v1572 = vpop.xlane.xlu0 %1571
    %v1573 = vsel %vm564, %v1533, 0.0
    %1574 = vadd.xlane.f32.xlu0 %v1573
    %v1575 = vpop.xlane.xlu0 %1574
    %v1576 = vsel %vm564, %v1534, 0.0
    %1577 = vadd.xlane.f32.xlu0 %v1576
    %v1578 = vpop.xlane.xlu0 %1577
    %v1579 = vsel %vm564, %v1535, 0.0
    %1580 = vadd.xlane.f32.xlu0 %v1579
    %v1581 = vpop.xlane.xlu0 %1580
    %v1582 = vsel %vm564, %v1536, 0.0
    %1583 = vadd.xlane.f32.xlu0 %v1582
    %v1584 = vpop.xlane.xlu0 %1583
    %v1601 = vperm.slane %v1539, %v838
    %v1602 = vperm.slane %v1542, %v838
    %v1603 = vperm.slane %v1545, %v838
    %v1604 = vperm.slane %v1548, %v838
    %v1605 = vperm.slane %v1551, %v838
    %v1606 = vperm.slane %v1554, %v838
    %v1607 = vperm.slane %v1557, %v838
    %v1608 = vperm.slane %v1560, %v838
    %v1609 = vperm.slane %v1563, %v838
    %v1610 = vperm.slane %v1566, %v838
    %v1611 = vperm.slane %v1569, %v838
    %v1612 = vperm.slane %v1572, %v838
    %v1613 = vperm.slane %v1575, %v838
    %v1614 = vperm.slane %v1578, %v838
    %v1615 = vperm.slane %v1581, %v838
    %v1616 = vperm.slane %v1584, %v838
    %v1617 = vsel %vm855, %v1602, %v1601
    %v1618 = vsel %vm857, %v1603, %v1617
    %v1619 = vsel %vm859, %v1604, %v1618
    %v1620 = vsel %vm861, %v1605, %v1619
    %v1621 = vsel %vm863, %v1606, %v1620
    %v1622 = vsel %vm865, %v1607, %v1621
    %v1623 = vsel %vm867, %v1608, %v1622
    %v1624 = vsel %vm855, %v1610, %v1609
    %v1625 = vsel %vm857, %v1611, %v1624
    %v1626 = vsel %vm859, %v1612, %v1625
    %v1627 = vsel %vm861, %v1613, %v1626
    %v1628 = vsel %vm863, %v1614, %v1627
    %v1629 = vsel %vm865, %v1615, %v1628
    %v1630 = vsel %vm867, %v1616, %v1629
    %v1633 = vsel %vm819, %v1623, -1e+30
    %v1634 = vsel %vm820, %v1630, -1e+30
    %v1635 = vsel %vm880, %v1633, -inf
    %v1636 = vrot.slane %v1635, 4
    %v1637 = vmax.f32 %v1635, %v1636
    %v1638 = vrot.slane %v1637, 2
    %v1639 = vmax.f32 %v1637, %v1638
    %v1640 = vrot.slane %v1639, 1
    %v1641 = vmax.f32 %v1639, %v1640
    %v1642 = vsel %vm880, %v1634, -inf
    %v1643 = vrot.slane %v1642, 4
    %v1644 = vmax.f32 %v1642, %v1643
    %v1645 = vrot.slane %v1644, 2
    %v1646 = vmax.f32 %v1644, %v1645
    %v1647 = vrot.slane %v1646, 1
    %v1648 = vmax.f32 %v1646, %v1647
    %v1649 = vsub.f32 %v1633, %v1641
    %v1650 = vsub.f32 %v1634, %v1648
    %v1651 = vmul.f32 %v1649, 1.442695
    %v1652 = vpow.pop %v1651
    %v1653 = vmul.f32 %v1650, 1.442695
    %v1654 = vpow.pop %v1653
    %v1655 = vmul.f32 %v1652, %v134
    %v1656 = vmul.f32 %v1654, %v135
    %v1657 = vsel %vm880, %v1655, 0.0
    %v1658 = vrot.slane %v1657, 4
    %v1659 = vadd.f32 %v1657, %v1658
    %v1660 = vrot.slane %v1659, 2
    %v1661 = vadd.f32 %v1659, %v1660
    %v1662 = vrot.slane %v1661, 1
    %v1663 = vadd.f32 %v1661, %v1662
    %v1664 = vsel %vm880, %v1656, 0.0
    %v1665 = vrot.slane %v1664, 4
    %v1666 = vadd.f32 %v1664, %v1665
    %v1667 = vrot.slane %v1666, 2
    %v1668 = vadd.f32 %v1666, %v1667
    %v1669 = vrot.slane %v1668, 1
    %v1670 = vadd.f32 %v1668, %v1669
    %v1671 = vmax.f32 %v1663, 1e-20
    %v1672 = vmax.f32 %v1670, 1e-20
    %v1673 = vrcp.pop %v1671
    %v1674 = vmul.f32 %v1671, %v1673
    %v1675 = vsub.f32 1.0, %v1674
    %v1676 = vmul.f32 %v1673, %v1675
    %v1677 = vadd.f32 %v1673, %v1676
    %vm1678 = vweird.f32 %v1671
    %vm1679 = vweird.f32 %v1673
    %vm1680 = vmor %vm1678, %vm1679
    %v1681 = vsel %vm1680, %v1673, %v1677
    %v1682 = vand.u32 2147483647, %v1671
    %vm1683 = vcmp.eq.f32.partialorder %v1682, 8.507059e+37
    %v1684 = vand.u32 %v1671, 2147483648
    %v1685 = vor.u32 1.1754944e-38, %v1684
    %v1686 = vsel %vm1683, %v1685, %v1681
    %v1687 = vmul.f32 %v1655, %v1686
    %v1688 = vrcp.pop %v1672
    %v1689 = vmul.f32 %v1672, %v1688
    %v1690 = vsub.f32 1.0, %v1689
    %v1691 = vmul.f32 %v1688, %v1690
    %v1692 = vadd.f32 %v1688, %v1691
    %vm1693 = vweird.f32 %v1672
    %vm1694 = vweird.f32 %v1688
    %vm1695 = vmor %vm1693, %vm1694
    %v1696 = vsel %vm1695, %v1688, %v1692
    %v1697 = vand.u32 2147483647, %v1672
    %vm1698 = vcmp.eq.f32.partialorder %v1697, 8.507059e+37
    %v1699 = vand.u32 %v1672, 2147483648
    %v1700 = vor.u32 1.1754944e-38, %v1699
    %v1701 = vsel %vm1698, %v1700, %v1696
    %v1702 = vmul.f32 %v1656, %v1701
    %1703 = vrot.lane.b32.xlu0 %v373, 96
    %v1704 = vpop.permute.xlu0 %1703
    %1705 = vrot.lane.b32.xlu0 %v376, 96
    %v1706 = vpop.permute.xlu0 %1705
    %1707 = vrot.lane.b32.xlu0 %v379, 96
    %v1708 = vpop.permute.xlu0 %1707
    %1709 = vrot.lane.b32.xlu0 %v382, 96
    %v1710 = vpop.permute.xlu0 %1709
    %1711 = vrot.lane.b32.xlu0 %v385, 96
    %v1712 = vpop.permute.xlu0 %1711
    %1713 = vrot.lane.b32.xlu0 %v388, 96
    %v1714 = vpop.permute.xlu0 %1713
    %1715 = vrot.lane.b32.xlu0 %v391, 96
    %v1716 = vpop.permute.xlu0 %1715
    %1717 = vrot.lane.b32.xlu0 %v394, 96
    %v1718 = vpop.permute.xlu0 %1717
    %1719 = vrot.lane.b32.xlu0 %v397, 96
    %v1720 = vpop.permute.xlu0 %1719
    %1721 = vrot.lane.b32.xlu0 %v400, 96
    %v1722 = vpop.permute.xlu0 %1721
    %1723 = vrot.lane.b32.xlu0 %v403, 96
    %v1724 = vpop.permute.xlu0 %1723
    %1725 = vrot.lane.b32.xlu0 %v406, 96
    %v1726 = vpop.permute.xlu0 %1725
    %1727 = vrot.lane.b32.xlu0 %v409, 96
    %v1728 = vpop.permute.xlu0 %1727
    %1729 = vrot.lane.b32.xlu0 %v412, 96
    %v1730 = vpop.permute.xlu0 %1729
    %1731 = vrot.lane.b32.xlu0 %v415, 96
    %v1732 = vpop.permute.xlu0 %1731
    %1733 = vrot.lane.b32.xlu0 %v418, 96
    %v1734 = vpop.permute.xlu0 %1733
    %v1751 = vadd.f32 %v1388, %v1704
    %v1752 = vadd.f32 %v1389, %v1706
    %v1753 = vadd.f32 %v1390, %v1708
    %v1754 = vadd.f32 %v1391, %v1710
    %v1755 = vadd.f32 %v1392, %v1712
    %v1756 = vadd.f32 %v1393, %v1714
    %v1757 = vadd.f32 %v1394, %v1716
    %v1758 = vadd.f32 %v1395, %v1718
    %v1759 = vadd.f32 %v1396, %v1720
    %v1760 = vadd.f32 %v1397, %v1722
    %v1761 = vadd.f32 %v1398, %v1724
    %v1762 = vadd.f32 %v1399, %v1726
    %v1763 = vadd.f32 %v1400, %v1728
    %v1764 = vadd.f32 %v1401, %v1730
    %v1765 = vadd.f32 %v1402, %v1732
    %v1766 = vadd.f32 %v1403, %v1734
    %vm1767 = vcmp.ge.f32.partialorder %v1751, 0.0
    %vm1768 = vcmp.ge.f32.partialorder %v1752, 0.0
    %vm1769 = vcmp.ge.f32.partialorder %v1753, 0.0
    %vm1770 = vcmp.ge.f32.partialorder %v1754, 0.0
    %vm1771 = vcmp.ge.f32.partialorder %v1755, 0.0
    %vm1772 = vcmp.ge.f32.partialorder %v1756, 0.0
    %vm1773 = vcmp.ge.f32.partialorder %v1757, 0.0
    %vm1774 = vcmp.ge.f32.partialorder %v1758, 0.0
    %vm1775 = vcmp.ge.f32.partialorder %v1759, 0.0
    %vm1776 = vcmp.ge.f32.partialorder %v1760, 0.0
    %vm1777 = vcmp.ge.f32.partialorder %v1761, 0.0
    %vm1778 = vcmp.ge.f32.partialorder %v1762, 0.0
    %vm1779 = vcmp.ge.f32.partialorder %v1763, 0.0
    %vm1780 = vcmp.ge.f32.partialorder %v1764, 0.0
    %vm1781 = vcmp.ge.f32.partialorder %v1765, 0.0
    %vm1782 = vcmp.ge.f32.partialorder %v1766, 0.0
    %v1783 = vmul.f32 %v1751, 0.2
    %v1784 = vmul.f32 %v1752, 0.2
    %v1785 = vmul.f32 %v1753, 0.2
    %v1786 = vmul.f32 %v1754, 0.2
    %v1787 = vmul.f32 %v1755, 0.2
    %v1788 = vmul.f32 %v1756, 0.2
    %v1789 = vmul.f32 %v1757, 0.2
    %v1790 = vmul.f32 %v1758, 0.2
    %v1791 = vmul.f32 %v1759, 0.2
    %v1792 = vmul.f32 %v1760, 0.2
    %v1793 = vmul.f32 %v1761, 0.2
    %v1794 = vmul.f32 %v1762, 0.2
    %v1795 = vmul.f32 %v1763, 0.2
    %v1796 = vmul.f32 %v1764, 0.2
    %v1797 = vmul.f32 %v1765, 0.2
    %v1798 = vmul.f32 %v1766, 0.2
    %v1799 = vsel %vm1767, %v1751, %v1783
    %v1800 = vsel %vm1768, %v1752, %v1784
    %v1801 = vsel %vm1769, %v1753, %v1785
    %v1802 = vsel %vm1770, %v1754, %v1786
    %v1803 = vsel %vm1771, %v1755, %v1787
    %v1804 = vsel %vm1772, %v1756, %v1788
    %v1805 = vsel %vm1773, %v1757, %v1789
    %v1806 = vsel %vm1774, %v1758, %v1790
    %v1807 = vsel %vm1775, %v1759, %v1791
    %v1808 = vsel %vm1776, %v1760, %v1792
    %v1809 = vsel %vm1777, %v1761, %v1793
    %v1810 = vsel %vm1778, %v1762, %v1794
    %v1811 = vsel %vm1779, %v1763, %v1795
    %v1812 = vsel %vm1780, %v1764, %v1796
    %v1813 = vsel %vm1781, %v1765, %v1797
    %v1814 = vsel %vm1782, %v1766, %v1798
    %v1815 = vperm.slane %v1687, 0
    %v1816 = vlaneseq
    %v1817 = vshrl.u32 %v1816, 7
    %1819 = vset.pattern.permute.xlu0 %v1817
    %1820 = vperm.xlu0 %1819, %v1815
    %v1821 = vpop.permute.xlu0 %1820
    %v1822 = vperm.slane %v1687, 1
    %v1823 = vlaneseq
    %v1824 = vshrl.u32 %v1823, 7
    %1826 = vset.pattern.permute.xlu0 %v1824
    %1827 = vperm.xlu0 %1826, %v1822
    %v1828 = vpop.permute.xlu0 %1827
    %v1829 = vperm.slane %v1687, 2
    %v1830 = vlaneseq
    %v1831 = vshrl.u32 %v1830, 7
    %1833 = vset.pattern.permute.xlu0 %v1831
    %1834 = vperm.xlu0 %1833, %v1829
    %v1835 = vpop.permute.xlu0 %1834
    %v1836 = vperm.slane %v1687, 3
    %v1837 = vlaneseq
    %v1838 = vshrl.u32 %v1837, 7
    %1840 = vset.pattern.permute.xlu0 %v1838
    %1841 = vperm.xlu0 %1840, %v1836
    %v1842 = vpop.permute.xlu0 %1841
    %v1843 = vperm.slane %v1687, 4
    %v1844 = vlaneseq
    %v1845 = vshrl.u32 %v1844, 7
    %1847 = vset.pattern.permute.xlu0 %v1845
    %1848 = vperm.xlu0 %1847, %v1843
    %v1849 = vpop.permute.xlu0 %1848
    %v1850 = vperm.slane %v1687, 5
    %v1851 = vlaneseq
    %v1852 = vshrl.u32 %v1851, 7
    %1854 = vset.pattern.permute.xlu0 %v1852
    %1855 = vperm.xlu0 %1854, %v1850
    %v1856 = vpop.permute.xlu0 %1855
    %v1857 = vperm.slane %v1687, 6
    %v1858 = vlaneseq
    %v1859 = vshrl.u32 %v1858, 7
    %1861 = vset.pattern.permute.xlu0 %v1859
    %1862 = vperm.xlu0 %1861, %v1857
    %v1863 = vpop.permute.xlu0 %1862
    %v1864 = vperm.slane %v1687, 7
    %v1865 = vlaneseq
    %v1866 = vshrl.u32 %v1865, 7
    %1868 = vset.pattern.permute.xlu0 %v1866
    %1869 = vperm.xlu0 %1868, %v1864
    %v1870 = vpop.permute.xlu0 %1869
    %v1871 = vperm.slane %v1702, 0
    %v1872 = vlaneseq
    %v1873 = vshrl.u32 %v1872, 7
    %1875 = vset.pattern.permute.xlu0 %v1873
    %1876 = vperm.xlu0 %1875, %v1871
    %v1877 = vpop.permute.xlu0 %1876
    %v1878 = vperm.slane %v1702, 1
    %v1879 = vlaneseq
    %v1880 = vshrl.u32 %v1879, 7
    %1882 = vset.pattern.permute.xlu0 %v1880
    %1883 = vperm.xlu0 %1882, %v1878
    %v1884 = vpop.permute.xlu0 %1883
    %v1885 = vperm.slane %v1702, 2
    %v1886 = vlaneseq
    %v1887 = vshrl.u32 %v1886, 7
    %1889 = vset.pattern.permute.xlu0 %v1887
    %1890 = vperm.xlu0 %1889, %v1885
    %v1891 = vpop.permute.xlu0 %1890
    %v1892 = vperm.slane %v1702, 3
    %v1893 = vlaneseq
    %v1894 = vshrl.u32 %v1893, 7
    %1896 = vset.pattern.permute.xlu0 %v1894
    %1897 = vperm.xlu0 %1896, %v1892
    %v1898 = vpop.permute.xlu0 %1897
    %v1899 = vperm.slane %v1702, 4
    %v1900 = vlaneseq
    %v1901 = vshrl.u32 %v1900, 7
    %1903 = vset.pattern.permute.xlu0 %v1901
    %1904 = vperm.xlu0 %1903, %v1899
    %v1905 = vpop.permute.xlu0 %1904
    %v1906 = vperm.slane %v1702, 5
    %v1907 = vlaneseq
    %v1908 = vshrl.u32 %v1907, 7
    %1910 = vset.pattern.permute.xlu0 %v1908
    %1911 = vperm.xlu0 %1910, %v1906
    %v1912 = vpop.permute.xlu0 %1911
    %v1913 = vperm.slane %v1702, 6
    %v1914 = vlaneseq
    %v1915 = vshrl.u32 %v1914, 7
    %1917 = vset.pattern.permute.xlu0 %v1915
    %1918 = vperm.xlu0 %1917, %v1913
    %v1919 = vpop.permute.xlu0 %1918
    %v1920 = vperm.slane %v1702, 7
    %v1921 = vlaneseq
    %v1922 = vshrl.u32 %v1921, 7
    %1924 = vset.pattern.permute.xlu0 %v1922
    %1925 = vperm.xlu0 %1924, %v1920
    %v1926 = vpop.permute.xlu0 %1925
    %v1927 = vmul.f32 %v1821, %v1799
    %v1928 = vmul.f32 %v1828, %v1800
    %v1929 = vmul.f32 %v1835, %v1801
    %v1930 = vmul.f32 %v1842, %v1802
    %v1931 = vmul.f32 %v1849, %v1803
    %v1932 = vmul.f32 %v1856, %v1804
    %v1933 = vmul.f32 %v1863, %v1805
    %v1934 = vmul.f32 %v1870, %v1806
    %v1935 = vmul.f32 %v1877, %v1807
    %v1936 = vmul.f32 %v1884, %v1808
    %v1937 = vmul.f32 %v1891, %v1809
    %v1938 = vmul.f32 %v1898, %v1810
    %v1939 = vmul.f32 %v1905, %v1811
    %v1940 = vmul.f32 %v1912, %v1812
    %v1941 = vmul.f32 %v1919, %v1813
    %v1942 = vmul.f32 %v1926, %v1814
    %v1943 = vsel %vm1205, %v1927, 0.0
    %v1944 = vsel %vm1205, %v1928, 0.0
    %v1945 = vadd.f32 %v1943, %v1944
    %v1946 = vsel %vm1205, %v1929, 0.0
    %v1947 = vadd.f32 %v1945, %v1946
    %v1948 = vsel %vm1205, %v1930, 0.0
    %v1949 = vadd.f32 %v1947, %v1948
    %v1950 = vsel %vm1205, %v1931, 0.0
    %v1951 = vadd.f32 %v1949, %v1950
    %v1952 = vsel %vm1205, %v1932, 0.0
    %v1953 = vadd.f32 %v1951, %v1952
    %v1954 = vsel %vm1205, %v1933, 0.0
    %v1955 = vadd.f32 %v1953, %v1954
    %v1956 = vsel %vm1205, %v1934, 0.0
    %v1957 = vadd.f32 %v1955, %v1956
    %v1958 = vsel %vm1205, %v1935, 0.0
    %v1959 = vsel %vm1205, %v1936, 0.0
    %v1960 = vadd.f32 %v1958, %v1959
    %v1961 = vsel %vm1205, %v1937, 0.0
    %v1962 = vadd.f32 %v1960, %v1961
    %v1963 = vsel %vm1205, %v1938, 0.0
    %v1964 = vadd.f32 %v1962, %v1963
    %v1965 = vsel %vm1205, %v1939, 0.0
    %v1966 = vadd.f32 %v1964, %v1965
    %v1967 = vsel %vm1205, %v1940, 0.0
    %v1968 = vadd.f32 %v1966, %v1967
    %v1969 = vsel %vm1205, %v1941, 0.0
    %v1970 = vadd.f32 %v1968, %v1969
    %v1971 = vsel %vm1205, %v1942, 0.0
    %v1972 = vadd.f32 %v1970, %v1971
    %1975 = vrot.lane.b32.xlu0 %v1329, 64
    %v1976 = vpop.permute.xlu0 %1975
    %1977 = vrot.lane.b32.xlu0 %v1332, 64
    %v1978 = vpop.permute.xlu0 %1977
    %v1981 = vadd.f32 %v1957, %v1976
    %v1982 = vadd.f32 %v1972, %v1978
    %vm1983 = vcmp.ge.f32.partialorder %v1981, 0.0
    %vm1984 = vcmp.ge.f32.partialorder %v1982, 0.0
    %v1985 = vmul.f32 %v1981, 0.2
    %v1986 = vmul.f32 %v1982, 0.2
    %v1987 = vsel %vm1983, %v1981, %v1985
    %v1988 = vsel %vm1984, %v1982, %v1986
    %v1989 = vadd.f32 %v1987, %v1253
    %v1990 = vadd.f32 %v1988, %v1255
    %v1991 = vmax.f32 %v1989, 0.0
    %v1992 = vmax.f32 %v1990, 0.0
    %s1993 = scalar_lea.vmem %s6, 128
    %v1994 = vld [vmem:[%s1993] sm:$0xff]
    %v1995 = vld [vmem:[%s1993 + $0x8] sm:$0xff]
    %v1996 = vld [vmem:[%s1993 + $0x10] sm:$0xff]
    %v1997 = vld [vmem:[%s1993 + $0x18] sm:$0xff]
    %v1998 = vld [vmem:[%s1993 + $0x20] sm:$0xff]
    %v1999 = vld [vmem:[%s1993 + $0x28] sm:$0xff]
    %v2000 = vld [vmem:[%s1993 + $0x30] sm:$0xff]
    %v2001 = vld [vmem:[%s1993 + $0x38] sm:$0xff]
    %s2002 = scalar_lea.vmem [#allocation8], 4
    %v2003 = vld [vmem:[%s2002] sm:$0x3]
    %v2005 = vperm.slane %v2003, 0
    %v2006 = vperm.slane %v2003, 1
    %2011 = vrot.lane.b32.xlu0 %v1991, 64
    %v2012 = vpop.permute.xlu0 %2011
    %2013 = vrot.lane.b32.xlu0 %v1992, 64
    %v2014 = vpop.permute.xlu0 %2013
    %v2015 = vsel %vm564, %v2012, 0
    %v2017 = vsel %vm564, %v2014, 0
    %2019 = vmatpush.msra.mxu0 0.0
    %2020 = vmatpush.msra.mxu0 0.0
    %2021 = vmatpush.msra.mxu0 0.0
    %2022 = vmatpush.msra.mxu0 0.0
    %2023 = vmatpush.msra.mxu0 0.0
    %2024 = vmatpush.msra.mxu0 0.0
    %2025 = vmatpush.msra.mxu0 0.0
    %2026 = vmatpush.msra.mxu0 0.0
    %2027 = vmatpush.msra.mxu0 0.0
    %2028 = vmatpush.msra.mxu0 0.0
    %2029 = vmatpush.msra.mxu0 0.0
    %2030 = vmatpush.msra.mxu0 0.0
    %2031 = vmatpush.msra.mxu0 %v2000
    %2032 = vmatpush.msra.mxu0 %v1998
    %2033 = vmatpush.msra.mxu0 %v1996
    %2034 = vmatpush.msra.mxu0 %v1994
    %2035 = vmatmul.f32.gmra.mxu0 %v2015
    %v2036 = vpop.f32.mrf.mxu0
    %v2037 = vadd.f32 %v2005, %v2036
    %2038 = vmatmul.f32.gmra.mxu0 %v2017
    %v2039 = vpop.f32.mrf.mxu0
    %v2040 = vadd.f32 %v2005, %v2039
    %2041 = vdwg.mxu0
    %2042 = vmatpush.msra.mxu0 0.0
    %2043 = vmatpush.msra.mxu0 0.0
    %2044 = vmatpush.msra.mxu0 0.0
    %2045 = vmatpush.msra.mxu0 0.0
    %2046 = vmatpush.msra.mxu0 0.0
    %2047 = vmatpush.msra.mxu0 0.0
    %2048 = vmatpush.msra.mxu0 0.0
    %2049 = vmatpush.msra.mxu0 0.0
    %2050 = vmatpush.msra.mxu0 0.0
    %2051 = vmatpush.msra.mxu0 0.0
    %2052 = vmatpush.msra.mxu0 0.0
    %2053 = vmatpush.msra.mxu0 0.0
    %2054 = vmatpush.msra.mxu0 %v2001
    %2055 = vmatpush.msra.mxu0 %v1999
    %2056 = vmatpush.msra.mxu0 %v1997
    %2057 = vmatpush.msra.mxu0 %v1995
    %2058 = vmatmul.f32.gmra.mxu0 %v2015
    %v2059 = vpop.f32.mrf.mxu0
    %v2060 = vadd.f32 %v2006, %v2059
    %2061 = vmatmul.f32.gmra.mxu0 %v2017
    %v2062 = vpop.f32.mrf.mxu0
    %v2063 = vadd.f32 %v2006, %v2062
    %2064 = vdwg.mxu0
    %v2067 = vrot.slane %v2037, 1
    %v2068 = vrot.slane %v2037, 2
    %v2069 = vrot.slane %v2037, 3
    %v2070 = vrot.slane %v2037, 4
    %v2071 = vrot.slane %v2037, 5
    %v2072 = vrot.slane %v2037, 6
    %v2073 = vrot.slane %v2037, 7
    %v2074 = vrot.slane %v2040, 1
    %v2075 = vrot.slane %v2040, 2
    %v2076 = vrot.slane %v2040, 3
    %v2077 = vrot.slane %v2040, 4
    %v2078 = vrot.slane %v2040, 5
    %v2079 = vrot.slane %v2040, 6
    %v2080 = vrot.slane %v2040, 7
    %v2081 = vperm.slane %v2037, 0
    %v2082 = vperm.slane %v2067, 0
    %v2083 = vperm.slane %v2068, 0
    %v2084 = vperm.slane %v2069, 0
    %v2085 = vperm.slane %v2070, 0
    %v2086 = vperm.slane %v2071, 0
    %v2087 = vperm.slane %v2072, 0
    %v2088 = vperm.slane %v2073, 0
    %v2089 = vperm.slane %v2040, 0
    %v2090 = vperm.slane %v2074, 0
    %v2091 = vperm.slane %v2075, 0
    %v2092 = vperm.slane %v2076, 0
    %v2093 = vperm.slane %v2077, 0
    %v2094 = vperm.slane %v2078, 0
    %v2095 = vperm.slane %v2079, 0
    %v2096 = vperm.slane %v2080, 0
    %2113 = vrot.lane.b32.xlu0 %v2037, 96
    %v2114 = vpop.permute.xlu0 %2113
    %2115 = vrot.lane.b32.xlu0 %v2040, 96
    %v2116 = vpop.permute.xlu0 %2115
    %v2119 = vadd.f32 %v2081, %v2114
    %v2120 = vadd.f32 %v2082, %v2114
    %v2121 = vadd.f32 %v2083, %v2114
    %v2122 = vadd.f32 %v2084, %v2114
    %v2123 = vadd.f32 %v2085, %v2114
    %v2124 = vadd.f32 %v2086, %v2114
    %v2125 = vadd.f32 %v2087, %v2114
    %v2126 = vadd.f32 %v2088, %v2114
    %v2127 = vadd.f32 %v2089, %v2116
    %v2128 = vadd.f32 %v2090, %v2116
    %v2129 = vadd.f32 %v2091, %v2116
    %v2130 = vadd.f32 %v2092, %v2116
    %v2131 = vadd.f32 %v2093, %v2116
    %v2132 = vadd.f32 %v2094, %v2116
    %v2133 = vadd.f32 %v2095, %v2116
    %v2134 = vadd.f32 %v2096, %v2116
    %v2135 = vadd.f32 %v2119, %v438
    %v2136 = vadd.f32 %v2120, %v441
    %v2137 = vadd.f32 %v2121, %v444
    %v2138 = vadd.f32 %v2122, %v447
    %v2139 = vadd.f32 %v2123, %v450
    %v2140 = vadd.f32 %v2124, %v453
    %v2141 = vadd.f32 %v2125, %v456
    %v2142 = vadd.f32 %v2126, %v459
    %v2143 = vadd.f32 %v2127, %v462
    %v2144 = vadd.f32 %v2128, %v465
    %v2145 = vadd.f32 %v2129, %v468
    %v2146 = vadd.f32 %v2130, %v471
    %v2147 = vadd.f32 %v2131, %v474
    %v2148 = vadd.f32 %v2132, %v477
    %v2149 = vadd.f32 %v2133, %v480
    %v2150 = vadd.f32 %v2134, %v483
    %vm2151 = vcmp.ge.f32.partialorder %v2135, 0.0
    %vm2152 = vcmp.ge.f32.partialorder %v2136, 0.0
    %vm2153 = vcmp.ge.f32.partialorder %v2137, 0.0
    %vm2154 = vcmp.ge.f32.partialorder %v2138, 0.0
    %vm2155 = vcmp.ge.f32.partialorder %v2139, 0.0
    %vm2156 = vcmp.ge.f32.partialorder %v2140, 0.0
    %vm2157 = vcmp.ge.f32.partialorder %v2141, 0.0
    %vm2158 = vcmp.ge.f32.partialorder %v2142, 0.0
    %vm2159 = vcmp.ge.f32.partialorder %v2143, 0.0
    %vm2160 = vcmp.ge.f32.partialorder %v2144, 0.0
    %vm2161 = vcmp.ge.f32.partialorder %v2145, 0.0
    %vm2162 = vcmp.ge.f32.partialorder %v2146, 0.0
    %vm2163 = vcmp.ge.f32.partialorder %v2147, 0.0
    %vm2164 = vcmp.ge.f32.partialorder %v2148, 0.0
    %vm2165 = vcmp.ge.f32.partialorder %v2149, 0.0
    %vm2166 = vcmp.ge.f32.partialorder %v2150, 0.0
    %v2167 = vmul.f32 %v2135, 0.2
    %v2168 = vmul.f32 %v2136, 0.2
    %v2169 = vmul.f32 %v2137, 0.2
    %v2170 = vmul.f32 %v2138, 0.2
    %v2171 = vmul.f32 %v2139, 0.2
    %v2172 = vmul.f32 %v2140, 0.2
    %v2173 = vmul.f32 %v2141, 0.2
    %v2174 = vmul.f32 %v2142, 0.2
    %v2175 = vmul.f32 %v2143, 0.2
    %v2176 = vmul.f32 %v2144, 0.2
    %v2177 = vmul.f32 %v2145, 0.2
    %v2178 = vmul.f32 %v2146, 0.2
    %v2179 = vmul.f32 %v2147, 0.2
    %v2180 = vmul.f32 %v2148, 0.2
    %v2181 = vmul.f32 %v2149, 0.2
    %v2182 = vmul.f32 %v2150, 0.2
    %v2183 = vsel %vm2151, %v2135, %v2167
    %v2184 = vsel %vm2152, %v2136, %v2168
    %v2185 = vsel %vm2153, %v2137, %v2169
    %v2186 = vsel %vm2154, %v2138, %v2170
    %v2187 = vsel %vm2155, %v2139, %v2171
    %v2188 = vsel %vm2156, %v2140, %v2172
    %v2189 = vsel %vm2157, %v2141, %v2173
    %v2190 = vsel %vm2158, %v2142, %v2174
    %v2191 = vsel %vm2159, %v2143, %v2175
    %v2192 = vsel %vm2160, %v2144, %v2176
    %v2193 = vsel %vm2161, %v2145, %v2177
    %v2194 = vsel %vm2162, %v2146, %v2178
    %v2195 = vsel %vm2163, %v2147, %v2179
    %v2196 = vsel %vm2164, %v2148, %v2180
    %v2197 = vsel %vm2165, %v2149, %v2181
    %v2198 = vsel %vm2166, %v2150, %v2182
    %s2199 = scalar_lea.vmem %s10, 2
    %v2200 = vld [vmem:[%s2199] sm:$0x1]
    %v2202 = vperm.slane %v2200, 0
    %v2204 = vmul.f32 %v2183, %v2202
    %v2205 = vmul.f32 %v2184, %v2202
    %v2206 = vmul.f32 %v2185, %v2202
    %v2207 = vmul.f32 %v2186, %v2202
    %v2208 = vmul.f32 %v2187, %v2202
    %v2209 = vmul.f32 %v2188, %v2202
    %v2210 = vmul.f32 %v2189, %v2202
    %v2211 = vmul.f32 %v2190, %v2202
    %v2212 = vmul.f32 %v2191, %v2202
    %v2213 = vmul.f32 %v2192, %v2202
    %v2214 = vmul.f32 %v2193, %v2202
    %v2215 = vmul.f32 %v2194, %v2202
    %v2216 = vmul.f32 %v2195, %v2202
    %v2217 = vmul.f32 %v2196, %v2202
    %v2218 = vmul.f32 %v2197, %v2202
    %v2219 = vmul.f32 %v2198, %v2202
    %v2220 = vsel %vm564, %v2204, 0.0
    %2221 = vadd.xlane.f32.xlu0 %v2220
    %v2222 = vpop.xlane.xlu0 %2221
    %v2223 = vsel %vm564, %v2205, 0.0
    %2224 = vadd.xlane.f32.xlu0 %v2223
    %v2225 = vpop.xlane.xlu0 %2224
    %v2226 = vsel %vm564, %v2206, 0.0
    %2227 = vadd.xlane.f32.xlu0 %v2226
    %v2228 = vpop.xlane.xlu0 %2227
    %v2229 = vsel %vm564, %v2207, 0.0
    %2230 = vadd.xlane.f32.xlu0 %v2229
    %v2231 = vpop.xlane.xlu0 %2230
    %v2232 = vsel %vm564, %v2208, 0.0
    %2233 = vadd.xlane.f32.xlu0 %v2232
    %v2234 = vpop.xlane.xlu0 %2233
    %v2235 = vsel %vm564, %v2209, 0.0
    %2236 = vadd.xlane.f32.xlu0 %v2235
    %v2237 = vpop.xlane.xlu0 %2236
    %v2238 = vsel %vm564, %v2210, 0.0
    %2239 = vadd.xlane.f32.xlu0 %v2238
    %v2240 = vpop.xlane.xlu0 %2239
    %v2241 = vsel %vm564, %v2211, 0.0
    %2242 = vadd.xlane.f32.xlu0 %v2241
    %v2243 = vpop.xlane.xlu0 %2242
    %v2244 = vsel %vm564, %v2212, 0.0
    %2245 = vadd.xlane.f32.xlu0 %v2244
    %v2246 = vpop.xlane.xlu0 %2245
    %v2247 = vsel %vm564, %v2213, 0.0
    %2248 = vadd.xlane.f32.xlu0 %v2247
    %v2249 = vpop.xlane.xlu0 %2248
    %v2250 = vsel %vm564, %v2214, 0.0
    %2251 = vadd.xlane.f32.xlu0 %v2250
    %v2252 = vpop.xlane.xlu0 %2251
    %v2253 = vsel %vm564, %v2215, 0.0
    %2254 = vadd.xlane.f32.xlu0 %v2253
    %v2255 = vpop.xlane.xlu0 %2254
    %v2256 = vsel %vm564, %v2216, 0.0
    %2257 = vadd.xlane.f32.xlu0 %v2256
    %v2258 = vpop.xlane.xlu0 %2257
    %v2259 = vsel %vm564, %v2217, 0.0
    %2260 = vadd.xlane.f32.xlu0 %v2259
    %v2261 = vpop.xlane.xlu0 %2260
    %v2262 = vsel %vm564, %v2218, 0.0
    %2263 = vadd.xlane.f32.xlu0 %v2262
    %v2264 = vpop.xlane.xlu0 %2263
    %v2265 = vsel %vm564, %v2219, 0.0
    %2266 = vadd.xlane.f32.xlu0 %v2265
    %v2267 = vpop.xlane.xlu0 %2266
    %v2284 = vperm.slane %v2222, %v838
    %v2285 = vperm.slane %v2225, %v838
    %v2286 = vperm.slane %v2228, %v838
    %v2287 = vperm.slane %v2231, %v838
    %v2288 = vperm.slane %v2234, %v838
    %v2289 = vperm.slane %v2237, %v838
    %v2290 = vperm.slane %v2240, %v838
    %v2291 = vperm.slane %v2243, %v838
    %v2292 = vperm.slane %v2246, %v838
    %v2293 = vperm.slane %v2249, %v838
    %v2294 = vperm.slane %v2252, %v838
    %v2295 = vperm.slane %v2255, %v838
    %v2296 = vperm.slane %v2258, %v838
    %v2297 = vperm.slane %v2261, %v838
    %v2298 = vperm.slane %v2264, %v838
    %v2299 = vperm.slane %v2267, %v838
    %v2300 = vsel %vm855, %v2285, %v2284
    %v2301 = vsel %vm857, %v2286, %v2300
    %v2302 = vsel %vm859, %v2287, %v2301
    %v2303 = vsel %vm861, %v2288, %v2302
    %v2304 = vsel %vm863, %v2289, %v2303
    %v2305 = vsel %vm865, %v2290, %v2304
    %v2306 = vsel %vm867, %v2291, %v2305
    %v2307 = vsel %vm855, %v2293, %v2292
    %v2308 = vsel %vm857, %v2294, %v2307
    %v2309 = vsel %vm859, %v2295, %v2308
    %v2310 = vsel %vm861, %v2296, %v2309
    %v2311 = vsel %vm863, %v2297, %v2310
    %v2312 = vsel %vm865, %v2298, %v2311
    %v2313 = vsel %vm867, %v2299, %v2312
    %v2316 = vsel %vm819, %v2306, -1e+30
    %v2317 = vsel %vm820, %v2313, -1e+30
    %v2318 = vsel %vm880, %v2316, -inf
    %v2319 = vrot.slane %v2318, 4
    %v2320 = vmax.f32 %v2318, %v2319
    %v2321 = vrot.slane %v2320, 2
    %v2322 = vmax.f32 %v2320, %v2321
    %v2323 = vrot.slane %v2322, 1
    %v2324 = vmax.f32 %v2322, %v2323
    %v2325 = vsel %vm880, %v2317, -inf
    %v2326 = vrot.slane %v2325, 4
    %v2327 = vmax.f32 %v2325, %v2326
    %v2328 = vrot.slane %v2327, 2
    %v2329 = vmax.f32 %v2327, %v2328
    %v2330 = vrot.slane %v2329, 1
    %v2331 = vmax.f32 %v2329, %v2330
    %v2332 = vsub.f32 %v2316, %v2324
    %v2333 = vsub.f32 %v2317, %v2331
    %v2334 = vmul.f32 %v2332, 1.442695
    %v2335 = vpow.pop %v2334
    %v2336 = vmul.f32 %v2333, 1.442695
    %v2337 = vpow.pop %v2336
    %v2338 = vmul.f32 %v2335, %v134
    %v2339 = vmul.f32 %v2337, %v135
    %v2340 = vsel %vm880, %v2338, 0.0
    %v2341 = vrot.slane %v2340, 4
    %v2342 = vadd.f32 %v2340, %v2341
    %v2343 = vrot.slane %v2342, 2
    %v2344 = vadd.f32 %v2342, %v2343
    %v2345 = vrot.slane %v2344, 1
    %v2346 = vadd.f32 %v2344, %v2345
    %v2347 = vsel %vm880, %v2339, 0.0
    %v2348 = vrot.slane %v2347, 4
    %v2349 = vadd.f32 %v2347, %v2348
    %v2350 = vrot.slane %v2349, 2
    %v2351 = vadd.f32 %v2349, %v2350
    %v2352 = vrot.slane %v2351, 1
    %v2353 = vadd.f32 %v2351, %v2352
    %v2354 = vmax.f32 %v2346, 1e-20
    %v2355 = vmax.f32 %v2353, 1e-20
    %v2356 = vrcp.pop %v2354
    %v2357 = vmul.f32 %v2354, %v2356
    %v2358 = vsub.f32 1.0, %v2357
    %v2359 = vmul.f32 %v2356, %v2358
    %v2360 = vadd.f32 %v2356, %v2359
    %vm2361 = vweird.f32 %v2354
    %vm2362 = vweird.f32 %v2356
    %vm2363 = vmor %vm2361, %vm2362
    %v2364 = vsel %vm2363, %v2356, %v2360
    %v2365 = vand.u32 2147483647, %v2354
    %vm2366 = vcmp.eq.f32.partialorder %v2365, 8.507059e+37
    %v2367 = vand.u32 %v2354, 2147483648
    %v2368 = vor.u32 1.1754944e-38, %v2367
    %v2369 = vsel %vm2366, %v2368, %v2364
    %v2370 = vmul.f32 %v2338, %v2369
    %v2371 = vrcp.pop %v2355
    %v2372 = vmul.f32 %v2355, %v2371
    %v2373 = vsub.f32 1.0, %v2372
    %v2374 = vmul.f32 %v2371, %v2373
    %v2375 = vadd.f32 %v2371, %v2374
    %vm2376 = vweird.f32 %v2355
    %vm2377 = vweird.f32 %v2371
    %vm2378 = vmor %vm2376, %vm2377
    %v2379 = vsel %vm2378, %v2371, %v2375
    %v2380 = vand.u32 2147483647, %v2355
    %vm2381 = vcmp.eq.f32.partialorder %v2380, 8.507059e+37
    %v2382 = vand.u32 %v2355, 2147483648
    %v2383 = vor.u32 1.1754944e-38, %v2382
    %v2384 = vsel %vm2381, %v2383, %v2379
    %v2385 = vmul.f32 %v2339, %v2384
    %2402 = vrot.lane.b32.xlu0 %v438, 32
    %v2403 = vpop.permute.xlu0 %2402
    %2404 = vrot.lane.b32.xlu0 %v441, 32
    %v2405 = vpop.permute.xlu0 %2404
    %2406 = vrot.lane.b32.xlu0 %v444, 32
    %v2407 = vpop.permute.xlu0 %2406
    %2408 = vrot.lane.b32.xlu0 %v447, 32
    %v2409 = vpop.permute.xlu0 %2408
    %2410 = vrot.lane.b32.xlu0 %v450, 32
    %v2411 = vpop.permute.xlu0 %2410
    %2412 = vrot.lane.b32.xlu0 %v453, 32
    %v2413 = vpop.permute.xlu0 %2412
    %2414 = vrot.lane.b32.xlu0 %v456, 32
    %v2415 = vpop.permute.xlu0 %2414
    %2416 = vrot.lane.b32.xlu0 %v459, 32
    %v2417 = vpop.permute.xlu0 %2416
    %2418 = vrot.lane.b32.xlu0 %v462, 32
    %v2419 = vpop.permute.xlu0 %2418
    %2420 = vrot.lane.b32.xlu0 %v465, 32
    %v2421 = vpop.permute.xlu0 %2420
    %2422 = vrot.lane.b32.xlu0 %v468, 32
    %v2423 = vpop.permute.xlu0 %2422
    %2424 = vrot.lane.b32.xlu0 %v471, 32
    %v2425 = vpop.permute.xlu0 %2424
    %2426 = vrot.lane.b32.xlu0 %v474, 32
    %v2427 = vpop.permute.xlu0 %2426
    %2428 = vrot.lane.b32.xlu0 %v477, 32
    %v2429 = vpop.permute.xlu0 %2428
    %2430 = vrot.lane.b32.xlu0 %v480, 32
    %v2431 = vpop.permute.xlu0 %2430
    %2432 = vrot.lane.b32.xlu0 %v483, 32
    %v2433 = vpop.permute.xlu0 %2432
    %v2450 = vadd.f32 %v2119, %v2403
    %v2451 = vadd.f32 %v2120, %v2405
    %v2452 = vadd.f32 %v2121, %v2407
    %v2453 = vadd.f32 %v2122, %v2409
    %v2454 = vadd.f32 %v2123, %v2411
    %v2455 = vadd.f32 %v2124, %v2413
    %v2456 = vadd.f32 %v2125, %v2415
    %v2457 = vadd.f32 %v2126, %v2417
    %v2458 = vadd.f32 %v2127, %v2419
    %v2459 = vadd.f32 %v2128, %v2421
    %v2460 = vadd.f32 %v2129, %v2423
    %v2461 = vadd.f32 %v2130, %v2425
    %v2462 = vadd.f32 %v2131, %v2427
    %v2463 = vadd.f32 %v2132, %v2429
    %v2464 = vadd.f32 %v2133, %v2431
    %v2465 = vadd.f32 %v2134, %v2433
    %vm2466 = vcmp.ge.f32.partialorder %v2450, 0.0
    %vm2467 = vcmp.ge.f32.partialorder %v2451, 0.0
    %vm2468 = vcmp.ge.f32.partialorder %v2452, 0.0
    %vm2469 = vcmp.ge.f32.partialorder %v2453, 0.0
    %vm2470 = vcmp.ge.f32.partialorder %v2454, 0.0
    %vm2471 = vcmp.ge.f32.partialorder %v2455, 0.0
    %vm2472 = vcmp.ge.f32.partialorder %v2456, 0.0
    %vm2473 = vcmp.ge.f32.partialorder %v2457, 0.0
    %vm2474 = vcmp.ge.f32.partialorder %v2458, 0.0
    %vm2475 = vcmp.ge.f32.partialorder %v2459, 0.0
    %vm2476 = vcmp.ge.f32.partialorder %v2460, 0.0
    %vm2477 = vcmp.ge.f32.partialorder %v2461, 0.0
    %vm2478 = vcmp.ge.f32.partialorder %v2462, 0.0
    %vm2479 = vcmp.ge.f32.partialorder %v2463, 0.0
    %vm2480 = vcmp.ge.f32.partialorder %v2464, 0.0
    %vm2481 = vcmp.ge.f32.partialorder %v2465, 0.0
    %v2482 = vmul.f32 %v2450, 0.2
    %v2483 = vmul.f32 %v2451, 0.2
    %v2484 = vmul.f32 %v2452, 0.2
    %v2485 = vmul.f32 %v2453, 0.2
    %v2486 = vmul.f32 %v2454, 0.2
    %v2487 = vmul.f32 %v2455, 0.2
    %v2488 = vmul.f32 %v2456, 0.2
    %v2489 = vmul.f32 %v2457, 0.2
    %v2490 = vmul.f32 %v2458, 0.2
    %v2491 = vmul.f32 %v2459, 0.2
    %v2492 = vmul.f32 %v2460, 0.2
    %v2493 = vmul.f32 %v2461, 0.2
    %v2494 = vmul.f32 %v2462, 0.2
    %v2495 = vmul.f32 %v2463, 0.2
    %v2496 = vmul.f32 %v2464, 0.2
    %v2497 = vmul.f32 %v2465, 0.2
    %v2498 = vsel %vm2466, %v2450, %v2482
    %v2499 = vsel %vm2467, %v2451, %v2483
    %v2500 = vsel %vm2468, %v2452, %v2484
    %v2501 = vsel %vm2469, %v2453, %v2485
    %v2502 = vsel %vm2470, %v2454, %v2486
    %v2503 = vsel %vm2471, %v2455, %v2487
    %v2504 = vsel %vm2472, %v2456, %v2488
    %v2505 = vsel %vm2473, %v2457, %v2489
    %v2506 = vsel %vm2474, %v2458, %v2490
    %v2507 = vsel %vm2475, %v2459, %v2491
    %v2508 = vsel %vm2476, %v2460, %v2492
    %v2509 = vsel %vm2477, %v2461, %v2493
    %v2510 = vsel %vm2478, %v2462, %v2494
    %v2511 = vsel %vm2479, %v2463, %v2495
    %v2512 = vsel %vm2480, %v2464, %v2496
    %v2513 = vsel %vm2481, %v2465, %v2497
    %v2514 = vperm.slane %v2370, 0
    %v2515 = vlaneseq
    %v2516 = vshrl.u32 %v2515, 7
    %2518 = vset.pattern.permute.xlu0 %v2516
    %2519 = vperm.xlu0 %2518, %v2514
    %v2520 = vpop.permute.xlu0 %2519
    %v2521 = vperm.slane %v2370, 1
    %v2522 = vlaneseq
    %v2523 = vshrl.u32 %v2522, 7
    %2525 = vset.pattern.permute.xlu0 %v2523
    %2526 = vperm.xlu0 %2525, %v2521
    %v2527 = vpop.permute.xlu0 %2526
    %v2528 = vperm.slane %v2370, 2
    %v2529 = vlaneseq
    %v2530 = vshrl.u32 %v2529, 7
    %2532 = vset.pattern.permute.xlu0 %v2530
    %2533 = vperm.xlu0 %2532, %v2528
    %v2534 = vpop.permute.xlu0 %2533
    %v2535 = vperm.slane %v2370, 3
    %v2536 = vlaneseq
    %v2537 = vshrl.u32 %v2536, 7
    %2539 = vset.pattern.permute.xlu0 %v2537
    %2540 = vperm.xlu0 %2539, %v2535
    %v2541 = vpop.permute.xlu0 %2540
    %v2542 = vperm.slane %v2370, 4
    %v2543 = vlaneseq
    %v2544 = vshrl.u32 %v2543, 7
    %2546 = vset.pattern.permute.xlu0 %v2544
    %2547 = vperm.xlu0 %2546, %v2542
    %v2548 = vpop.permute.xlu0 %2547
    %v2549 = vperm.slane %v2370, 5
    %v2550 = vlaneseq
    %v2551 = vshrl.u32 %v2550, 7
    %2553 = vset.pattern.permute.xlu0 %v2551
    %2554 = vperm.xlu0 %2553, %v2549
    %v2555 = vpop.permute.xlu0 %2554
    %v2556 = vperm.slane %v2370, 6
    %v2557 = vlaneseq
    %v2558 = vshrl.u32 %v2557, 7
    %2560 = vset.pattern.permute.xlu0 %v2558
    %2561 = vperm.xlu0 %2560, %v2556
    %v2562 = vpop.permute.xlu0 %2561
    %v2563 = vperm.slane %v2370, 7
    %v2564 = vlaneseq
    %v2565 = vshrl.u32 %v2564, 7
    %2567 = vset.pattern.permute.xlu0 %v2565
    %2568 = vperm.xlu0 %2567, %v2563
    %v2569 = vpop.permute.xlu0 %2568
    %v2570 = vperm.slane %v2385, 0
    %v2571 = vlaneseq
    %v2572 = vshrl.u32 %v2571, 7
    %2574 = vset.pattern.permute.xlu0 %v2572
    %2575 = vperm.xlu0 %2574, %v2570
    %v2576 = vpop.permute.xlu0 %2575
    %v2577 = vperm.slane %v2385, 1
    %v2578 = vlaneseq
    %v2579 = vshrl.u32 %v2578, 7
    %2581 = vset.pattern.permute.xlu0 %v2579
    %2582 = vperm.xlu0 %2581, %v2577
    %v2583 = vpop.permute.xlu0 %2582
    %v2584 = vperm.slane %v2385, 2
    %v2585 = vlaneseq
    %v2586 = vshrl.u32 %v2585, 7
    %2588 = vset.pattern.permute.xlu0 %v2586
    %2589 = vperm.xlu0 %2588, %v2584
    %v2590 = vpop.permute.xlu0 %2589
    %v2591 = vperm.slane %v2385, 3
    %v2592 = vlaneseq
    %v2593 = vshrl.u32 %v2592, 7
    %2595 = vset.pattern.permute.xlu0 %v2593
    %2596 = vperm.xlu0 %2595, %v2591
    %v2597 = vpop.permute.xlu0 %2596
    %v2598 = vperm.slane %v2385, 4
    %v2599 = vlaneseq
    %v2600 = vshrl.u32 %v2599, 7
    %2602 = vset.pattern.permute.xlu0 %v2600
    %2603 = vperm.xlu0 %2602, %v2598
    %v2604 = vpop.permute.xlu0 %2603
    %v2605 = vperm.slane %v2385, 5
    %v2606 = vlaneseq
    %v2607 = vshrl.u32 %v2606, 7
    %2609 = vset.pattern.permute.xlu0 %v2607
    %2610 = vperm.xlu0 %2609, %v2605
    %v2611 = vpop.permute.xlu0 %2610
    %v2612 = vperm.slane %v2385, 6
    %v2613 = vlaneseq
    %v2614 = vshrl.u32 %v2613, 7
    %2616 = vset.pattern.permute.xlu0 %v2614
    %2617 = vperm.xlu0 %2616, %v2612
    %v2618 = vpop.permute.xlu0 %2617
    %v2619 = vperm.slane %v2385, 7
    %v2620 = vlaneseq
    %v2621 = vshrl.u32 %v2620, 7
    %2623 = vset.pattern.permute.xlu0 %v2621
    %2624 = vperm.xlu0 %2623, %v2619
    %v2625 = vpop.permute.xlu0 %2624
    %v2626 = vmul.f32 %v2520, %v2498
    %v2627 = vmul.f32 %v2527, %v2499
    %v2628 = vmul.f32 %v2534, %v2500
    %v2629 = vmul.f32 %v2541, %v2501
    %v2630 = vmul.f32 %v2548, %v2502
    %v2631 = vmul.f32 %v2555, %v2503
    %v2632 = vmul.f32 %v2562, %v2504
    %v2633 = vmul.f32 %v2569, %v2505
    %v2634 = vmul.f32 %v2576, %v2506
    %v2635 = vmul.f32 %v2583, %v2507
    %v2636 = vmul.f32 %v2590, %v2508
    %v2637 = vmul.f32 %v2597, %v2509
    %v2638 = vmul.f32 %v2604, %v2510
    %v2639 = vmul.f32 %v2611, %v2511
    %v2640 = vmul.f32 %v2618, %v2512
    %v2641 = vmul.f32 %v2625, %v2513
    %v2642 = vsel %vm1205, %v2626, 0.0
    %v2643 = vsel %vm1205, %v2627, 0.0
    %v2644 = vadd.f32 %v2642, %v2643
    %v2645 = vsel %vm1205, %v2628, 0.0
    %v2646 = vadd.f32 %v2644, %v2645
    %v2647 = vsel %vm1205, %v2629, 0.0
    %v2648 = vadd.f32 %v2646, %v2647
    %v2649 = vsel %vm1205, %v2630, 0.0
    %v2650 = vadd.f32 %v2648, %v2649
    %v2651 = vsel %vm1205, %v2631, 0.0
    %v2652 = vadd.f32 %v2650, %v2651
    %v2653 = vsel %vm1205, %v2632, 0.0
    %v2654 = vadd.f32 %v2652, %v2653
    %v2655 = vsel %vm1205, %v2633, 0.0
    %v2656 = vadd.f32 %v2654, %v2655
    %v2657 = vsel %vm1205, %v2634, 0.0
    %v2658 = vsel %vm1205, %v2635, 0.0
    %v2659 = vadd.f32 %v2657, %v2658
    %v2660 = vsel %vm1205, %v2636, 0.0
    %v2661 = vadd.f32 %v2659, %v2660
    %v2662 = vsel %vm1205, %v2637, 0.0
    %v2663 = vadd.f32 %v2661, %v2662
    %v2664 = vsel %vm1205, %v2638, 0.0
    %v2665 = vadd.f32 %v2663, %v2664
    %v2666 = vsel %vm1205, %v2639, 0.0
    %v2667 = vadd.f32 %v2665, %v2666
    %v2668 = vsel %vm1205, %v2640, 0.0
    %v2669 = vadd.f32 %v2667, %v2668
    %v2670 = vsel %vm1205, %v2641, 0.0
    %v2671 = vadd.f32 %v2669, %v2670
    %2674 = vrot.lane.b32.xlu0 %v2060, 64
    %v2675 = vpop.permute.xlu0 %2674
    %2676 = vrot.lane.b32.xlu0 %v2063, 64
    %v2677 = vpop.permute.xlu0 %2676
    %v2680 = vadd.f32 %v2656, %v2675
    %v2681 = vadd.f32 %v2671, %v2677
    %vm2682 = vcmp.ge.f32.partialorder %v2680, 0.0
    %vm2683 = vcmp.ge.f32.partialorder %v2681, 0.0
    %v2684 = vmul.f32 %v2680, 0.2
    %v2685 = vmul.f32 %v2681, 0.2
    %v2686 = vsel %vm2682, %v2680, %v2684
    %v2687 = vsel %vm2683, %v2681, %v2685
    %v2688 = vadd.f32 %v2686, %v1253
    %v2689 = vadd.f32 %v2687, %v1255
    %v2690 = vmax.f32 %v2688, 0.0
    %v2691 = vmax.f32 %v2689, 0.0
    %s2692 = scalar_lea.vmem %s6, 192
    %v2693 = vld [vmem:[%s2692] sm:$0xff]
    %v2694 = vld [vmem:[%s2692 + $0x8] sm:$0xff]
    %v2695 = vld [vmem:[%s2692 + $0x10] sm:$0xff]
    %v2696 = vld [vmem:[%s2692 + $0x18] sm:$0xff]
    %v2697 = vld [vmem:[%s2692 + $0x20] sm:$0xff]
    %v2698 = vld [vmem:[%s2692 + $0x28] sm:$0xff]
    %v2699 = vld [vmem:[%s2692 + $0x30] sm:$0xff]
    %v2700 = vld [vmem:[%s2692 + $0x38] sm:$0xff]
    %s2701 = scalar_lea.vmem [#allocation8], 6
    %v2702 = vld [vmem:[%s2701] sm:$0x3]
    %v2704 = vperm.slane %v2702, 0
    %v2705 = vperm.slane %v2702, 1
    %2710 = vrot.lane.b32.xlu0 %v2690, 64
    %v2711 = vpop.permute.xlu0 %2710
    %2712 = vrot.lane.b32.xlu0 %v2691, 64
    %v2713 = vpop.permute.xlu0 %2712
    %v2714 = vsel %vm564, %v2711, 0
    %v2716 = vsel %vm564, %v2713, 0
    %2718 = vmatpush.msra.mxu0 0.0
    %2719 = vmatpush.msra.mxu0 0.0
    %2720 = vmatpush.msra.mxu0 0.0
    %2721 = vmatpush.msra.mxu0 0.0
    %2722 = vmatpush.msra.mxu0 0.0
    %2723 = vmatpush.msra.mxu0 0.0
    %2724 = vmatpush.msra.mxu0 0.0
    %2725 = vmatpush.msra.mxu0 0.0
    %2726 = vmatpush.msra.mxu0 0.0
    %2727 = vmatpush.msra.mxu0 0.0
    %2728 = vmatpush.msra.mxu0 0.0
    %2729 = vmatpush.msra.mxu0 0.0
    %2730 = vmatpush.msra.mxu0 %v2699
    %2731 = vmatpush.msra.mxu0 %v2697
    %2732 = vmatpush.msra.mxu0 %v2695
    %2733 = vmatpush.msra.mxu0 %v2693
    %2734 = vmatmul.f32.gmra.mxu0 %v2714
    %v2735 = vpop.f32.mrf.mxu0
    %v2736 = vadd.f32 %v2704, %v2735
    %2737 = vmatmul.f32.gmra.mxu0 %v2716
    %v2738 = vpop.f32.mrf.mxu0
    %v2739 = vadd.f32 %v2704, %v2738
    %2740 = vdwg.mxu0
    %2741 = vmatpush.msra.mxu0 0.0
    %2742 = vmatpush.msra.mxu0 0.0
    %2743 = vmatpush.msra.mxu0 0.0
    %2744 = vmatpush.msra.mxu0 0.0
    %2745 = vmatpush.msra.mxu0 0.0
    %2746 = vmatpush.msra.mxu0 0.0
    %2747 = vmatpush.msra.mxu0 0.0
    %2748 = vmatpush.msra.mxu0 0.0
    %2749 = vmatpush.msra.mxu0 0.0
    %2750 = vmatpush.msra.mxu0 0.0
    %2751 = vmatpush.msra.mxu0 0.0
    %2752 = vmatpush.msra.mxu0 0.0
    %2753 = vmatpush.msra.mxu0 %v2700
    %2754 = vmatpush.msra.mxu0 %v2698
    %2755 = vmatpush.msra.mxu0 %v2696
    %2756 = vmatpush.msra.mxu0 %v2694
    %2757 = vmatmul.f32.gmra.mxu0 %v2714
    %v2758 = vpop.f32.mrf.mxu0
    %v2759 = vadd.f32 %v2705, %v2758
    %2760 = vmatmul.f32.gmra.mxu0 %v2716
    %v2761 = vpop.f32.mrf.mxu0
    %v2762 = vadd.f32 %v2705, %v2761
    %2763 = vdwg.mxu0
    %v2766 = vrot.slane %v2736, 1
    %v2767 = vrot.slane %v2736, 2
    %v2768 = vrot.slane %v2736, 3
    %v2769 = vrot.slane %v2736, 4
    %v2770 = vrot.slane %v2736, 5
    %v2771 = vrot.slane %v2736, 6
    %v2772 = vrot.slane %v2736, 7
    %v2773 = vrot.slane %v2739, 1
    %v2774 = vrot.slane %v2739, 2
    %v2775 = vrot.slane %v2739, 3
    %v2776 = vrot.slane %v2739, 4
    %v2777 = vrot.slane %v2739, 5
    %v2778 = vrot.slane %v2739, 6
    %v2779 = vrot.slane %v2739, 7
    %v2780 = vperm.slane %v2736, 0
    %v2781 = vperm.slane %v2766, 0
    %v2782 = vperm.slane %v2767, 0
    %v2783 = vperm.slane %v2768, 0
    %v2784 = vperm.slane %v2769, 0
    %v2785 = vperm.slane %v2770, 0
    %v2786 = vperm.slane %v2771, 0
    %v2787 = vperm.slane %v2772, 0
    %v2788 = vperm.slane %v2739, 0
    %v2789 = vperm.slane %v2773, 0
    %v2790 = vperm.slane %v2774, 0
    %v2791 = vperm.slane %v2775, 0
    %v2792 = vperm.slane %v2776, 0
    %v2793 = vperm.slane %v2777, 0
    %v2794 = vperm.slane %v2778, 0
    %v2795 = vperm.slane %v2779, 0
    %2812 = vrot.lane.b32.xlu0 %v2736, 96
    %v2813 = vpop.permute.xlu0 %2812
    %2814 = vrot.lane.b32.xlu0 %v2739, 96
    %v2815 = vpop.permute.xlu0 %2814
    %v2818 = vadd.f32 %v2780, %v2813
    %v2819 = vadd.f32 %v2781, %v2813
    %v2820 = vadd.f32 %v2782, %v2813
    %v2821 = vadd.f32 %v2783, %v2813
    %v2822 = vadd.f32 %v2784, %v2813
    %v2823 = vadd.f32 %v2785, %v2813
    %v2824 = vadd.f32 %v2786, %v2813
    %v2825 = vadd.f32 %v2787, %v2813
    %v2826 = vadd.f32 %v2788, %v2815
    %v2827 = vadd.f32 %v2789, %v2815
    %v2828 = vadd.f32 %v2790, %v2815
    %v2829 = vadd.f32 %v2791, %v2815
    %v2830 = vadd.f32 %v2792, %v2815
    %v2831 = vadd.f32 %v2793, %v2815
    %v2832 = vadd.f32 %v2794, %v2815
    %v2833 = vadd.f32 %v2795, %v2815
    %2834 = vrot.lane.b32.xlu0 %v438, 64
    %v2835 = vpop.permute.xlu0 %2834
    %2836 = vrot.lane.b32.xlu0 %v441, 64
    %v2837 = vpop.permute.xlu0 %2836
    %2838 = vrot.lane.b32.xlu0 %v444, 64
    %v2839 = vpop.permute.xlu0 %2838
    %2840 = vrot.lane.b32.xlu0 %v447, 64
    %v2841 = vpop.permute.xlu0 %2840
    %2842 = vrot.lane.b32.xlu0 %v450, 64
    %v2843 = vpop.permute.xlu0 %2842
    %2844 = vrot.lane.b32.xlu0 %v453, 64
    %v2845 = vpop.permute.xlu0 %2844
    %2846 = vrot.lane.b32.xlu0 %v456, 64
    %v2847 = vpop.permute.xlu0 %2846
    %2848 = vrot.lane.b32.xlu0 %v459, 64
    %v2849 = vpop.permute.xlu0 %2848
    %2850 = vrot.lane.b32.xlu0 %v462, 64
    %v2851 = vpop.permute.xlu0 %2850
    %2852 = vrot.lane.b32.xlu0 %v465, 64
    %v2853 = vpop.permute.xlu0 %2852
    %2854 = vrot.lane.b32.xlu0 %v468, 64
    %v2855 = vpop.permute.xlu0 %2854
    %2856 = vrot.lane.b32.xlu0 %v471, 64
    %v2857 = vpop.permute.xlu0 %2856
    %2858 = vrot.lane.b32.xlu0 %v474, 64
    %v2859 = vpop.permute.xlu0 %2858
    %2860 = vrot.lane.b32.xlu0 %v477, 64
    %v2861 = vpop.permute.xlu0 %2860
    %2862 = vrot.lane.b32.xlu0 %v480, 64
    %v2863 = vpop.permute.xlu0 %2862
    %2864 = vrot.lane.b32.xlu0 %v483, 64
    %v2865 = vpop.permute.xlu0 %2864
    %v2882 = vadd.f32 %v2818, %v2835
    %v2883 = vadd.f32 %v2819, %v2837
    %v2884 = vadd.f32 %v2820, %v2839
    %v2885 = vadd.f32 %v2821, %v2841
    %v2886 = vadd.f32 %v2822, %v2843
    %v2887 = vadd.f32 %v2823, %v2845
    %v2888 = vadd.f32 %v2824, %v2847
    %v2889 = vadd.f32 %v2825, %v2849
    %v2890 = vadd.f32 %v2826, %v2851
    %v2891 = vadd.f32 %v2827, %v2853
    %v2892 = vadd.f32 %v2828, %v2855
    %v2893 = vadd.f32 %v2829, %v2857
    %v2894 = vadd.f32 %v2830, %v2859
    %v2895 = vadd.f32 %v2831, %v2861
    %v2896 = vadd.f32 %v2832, %v2863
    %v2897 = vadd.f32 %v2833, %v2865
    %vm2898 = vcmp.ge.f32.partialorder %v2882, 0.0
    %vm2899 = vcmp.ge.f32.partialorder %v2883, 0.0
    %vm2900 = vcmp.ge.f32.partialorder %v2884, 0.0
    %vm2901 = vcmp.ge.f32.partialorder %v2885, 0.0
    %vm2902 = vcmp.ge.f32.partialorder %v2886, 0.0
    %vm2903 = vcmp.ge.f32.partialorder %v2887, 0.0
    %vm2904 = vcmp.ge.f32.partialorder %v2888, 0.0
    %vm2905 = vcmp.ge.f32.partialorder %v2889, 0.0
    %vm2906 = vcmp.ge.f32.partialorder %v2890, 0.0
    %vm2907 = vcmp.ge.f32.partialorder %v2891, 0.0
    %vm2908 = vcmp.ge.f32.partialorder %v2892, 0.0
    %vm2909 = vcmp.ge.f32.partialorder %v2893, 0.0
    %vm2910 = vcmp.ge.f32.partialorder %v2894, 0.0
    %vm2911 = vcmp.ge.f32.partialorder %v2895, 0.0
    %vm2912 = vcmp.ge.f32.partialorder %v2896, 0.0
    %vm2913 = vcmp.ge.f32.partialorder %v2897, 0.0
    %v2914 = vmul.f32 %v2882, 0.2
    %v2915 = vmul.f32 %v2883, 0.2
    %v2916 = vmul.f32 %v2884, 0.2
    %v2917 = vmul.f32 %v2885, 0.2
    %v2918 = vmul.f32 %v2886, 0.2
    %v2919 = vmul.f32 %v2887, 0.2
    %v2920 = vmul.f32 %v2888, 0.2
    %v2921 = vmul.f32 %v2889, 0.2
    %v2922 = vmul.f32 %v2890, 0.2
    %v2923 = vmul.f32 %v2891, 0.2
    %v2924 = vmul.f32 %v2892, 0.2
    %v2925 = vmul.f32 %v2893, 0.2
    %v2926 = vmul.f32 %v2894, 0.2
    %v2927 = vmul.f32 %v2895, 0.2
    %v2928 = vmul.f32 %v2896, 0.2
    %v2929 = vmul.f32 %v2897, 0.2
    %v2930 = vsel %vm2898, %v2882, %v2914
    %v2931 = vsel %vm2899, %v2883, %v2915
    %v2932 = vsel %vm2900, %v2884, %v2916
    %v2933 = vsel %vm2901, %v2885, %v2917
    %v2934 = vsel %vm2902, %v2886, %v2918
    %v2935 = vsel %vm2903, %v2887, %v2919
    %v2936 = vsel %vm2904, %v2888, %v2920
    %v2937 = vsel %vm2905, %v2889, %v2921
    %v2938 = vsel %vm2906, %v2890, %v2922
    %v2939 = vsel %vm2907, %v2891, %v2923
    %v2940 = vsel %vm2908, %v2892, %v2924
    %v2941 = vsel %vm2909, %v2893, %v2925
    %v2942 = vsel %vm2910, %v2894, %v2926
    %v2943 = vsel %vm2911, %v2895, %v2927
    %v2944 = vsel %vm2912, %v2896, %v2928
    %v2945 = vsel %vm2913, %v2897, %v2929
    %s2946 = scalar_lea.vmem %s10, 3
    %v2947 = vld [vmem:[%s2946] sm:$0x1]
    %v2949 = vperm.slane %v2947, 0
    %v2951 = vmul.f32 %v2930, %v2949
    %v2952 = vmul.f32 %v2931, %v2949
    %v2953 = vmul.f32 %v2932, %v2949
    %v2954 = vmul.f32 %v2933, %v2949
    %v2955 = vmul.f32 %v2934, %v2949
    %v2956 = vmul.f32 %v2935, %v2949
    %v2957 = vmul.f32 %v2936, %v2949
    %v2958 = vmul.f32 %v2937, %v2949
    %v2959 = vmul.f32 %v2938, %v2949
    %v2960 = vmul.f32 %v2939, %v2949
    %v2961 = vmul.f32 %v2940, %v2949
    %v2962 = vmul.f32 %v2941, %v2949
    %v2963 = vmul.f32 %v2942, %v2949
    %v2964 = vmul.f32 %v2943, %v2949
    %v2965 = vmul.f32 %v2944, %v2949
    %v2966 = vmul.f32 %v2945, %v2949
    %v2967 = vsel %vm564, %v2951, 0.0
    %2968 = vadd.xlane.f32.xlu0 %v2967
    %v2969 = vpop.xlane.xlu0 %2968
    %v2970 = vsel %vm564, %v2952, 0.0
    %2971 = vadd.xlane.f32.xlu0 %v2970
    %v2972 = vpop.xlane.xlu0 %2971
    %v2973 = vsel %vm564, %v2953, 0.0
    %2974 = vadd.xlane.f32.xlu0 %v2973
    %v2975 = vpop.xlane.xlu0 %2974
    %v2976 = vsel %vm564, %v2954, 0.0
    %2977 = vadd.xlane.f32.xlu0 %v2976
    %v2978 = vpop.xlane.xlu0 %2977
    %v2979 = vsel %vm564, %v2955, 0.0
    %2980 = vadd.xlane.f32.xlu0 %v2979
    %v2981 = vpop.xlane.xlu0 %2980
    %v2982 = vsel %vm564, %v2956, 0.0
    %2983 = vadd.xlane.f32.xlu0 %v2982
    %v2984 = vpop.xlane.xlu0 %2983
    %v2985 = vsel %vm564, %v2957, 0.0
    %2986 = vadd.xlane.f32.xlu0 %v2985
    %v2987 = vpop.xlane.xlu0 %2986
    %v2988 = vsel %vm564, %v2958, 0.0
    %2989 = vadd.xlane.f32.xlu0 %v2988
    %v2990 = vpop.xlane.xlu0 %2989
    %v2991 = vsel %vm564, %v2959, 0.0
    %2992 = vadd.xlane.f32.xlu0 %v2991
    %v2993 = vpop.xlane.xlu0 %2992
    %v2994 = vsel %vm564, %v2960, 0.0
    %2995 = vadd.xlane.f32.xlu0 %v2994
    %v2996 = vpop.xlane.xlu0 %2995
    %v2997 = vsel %vm564, %v2961, 0.0
    %2998 = vadd.xlane.f32.xlu0 %v2997
    %v2999 = vpop.xlane.xlu0 %2998
    %v3000 = vsel %vm564, %v2962, 0.0
    %3001 = vadd.xlane.f32.xlu0 %v3000
    %v3002 = vpop.xlane.xlu0 %3001
    %v3003 = vsel %vm564, %v2963, 0.0
    %3004 = vadd.xlane.f32.xlu0 %v3003
    %v3005 = vpop.xlane.xlu0 %3004
    %v3006 = vsel %vm564, %v2964, 0.0
    %3007 = vadd.xlane.f32.xlu0 %v3006
    %v3008 = vpop.xlane.xlu0 %3007
    %v3009 = vsel %vm564, %v2965, 0.0
    %3010 = vadd.xlane.f32.xlu0 %v3009
    %v3011 = vpop.xlane.xlu0 %3010
    %v3012 = vsel %vm564, %v2966, 0.0
    %3013 = vadd.xlane.f32.xlu0 %v3012
    %v3014 = vpop.xlane.xlu0 %3013
    %v3031 = vperm.slane %v2969, %v838
    %v3032 = vperm.slane %v2972, %v838
    %v3033 = vperm.slane %v2975, %v838
    %v3034 = vperm.slane %v2978, %v838
    %v3035 = vperm.slane %v2981, %v838
    %v3036 = vperm.slane %v2984, %v838
    %v3037 = vperm.slane %v2987, %v838
    %v3038 = vperm.slane %v2990, %v838
    %v3039 = vperm.slane %v2993, %v838
    %v3040 = vperm.slane %v2996, %v838
    %v3041 = vperm.slane %v2999, %v838
    %v3042 = vperm.slane %v3002, %v838
    %v3043 = vperm.slane %v3005, %v838
    %v3044 = vperm.slane %v3008, %v838
    %v3045 = vperm.slane %v3011, %v838
    %v3046 = vperm.slane %v3014, %v838
    %v3047 = vsel %vm855, %v3032, %v3031
    %v3048 = vsel %vm857, %v3033, %v3047
    %v3049 = vsel %vm859, %v3034, %v3048
    %v3050 = vsel %vm861, %v3035, %v3049
    %v3051 = vsel %vm863, %v3036, %v3050
    %v3052 = vsel %vm865, %v3037, %v3051
    %v3053 = vsel %vm867, %v3038, %v3052
    %v3054 = vsel %vm855, %v3040, %v3039
    %v3055 = vsel %vm857, %v3041, %v3054
    %v3056 = vsel %vm859, %v3042, %v3055
    %v3057 = vsel %vm861, %v3043, %v3056
    %v3058 = vsel %vm863, %v3044, %v3057
    %v3059 = vsel %vm865, %v3045, %v3058
    %v3060 = vsel %vm867, %v3046, %v3059
    %v3063 = vsel %vm819, %v3053, -1e+30
    %v3064 = vsel %vm820, %v3060, -1e+30
    %v3065 = vsel %vm880, %v3063, -inf
    %v3066 = vrot.slane %v3065, 4
    %v3067 = vmax.f32 %v3065, %v3066
    %v3068 = vrot.slane %v3067, 2
    %v3069 = vmax.f32 %v3067, %v3068
    %v3070 = vrot.slane %v3069, 1
    %v3071 = vmax.f32 %v3069, %v3070
    %v3072 = vsel %vm880, %v3064, -inf
    %v3073 = vrot.slane %v3072, 4
    %v3074 = vmax.f32 %v3072, %v3073
    %v3075 = vrot.slane %v3074, 2
    %v3076 = vmax.f32 %v3074, %v3075
    %v3077 = vrot.slane %v3076, 1
    %v3078 = vmax.f32 %v3076, %v3077
    %v3079 = vsub.f32 %v3063, %v3071
    %v3080 = vsub.f32 %v3064, %v3078
    %v3081 = vmul.f32 %v3079, 1.442695
    %v3082 = vpow.pop %v3081
    %v3083 = vmul.f32 %v3080, 1.442695
    %v3084 = vpow.pop %v3083
    %v3085 = vmul.f32 %v3082, %v134
    %v3086 = vmul.f32 %v3084, %v135
    %v3087 = vsel %vm880, %v3085, 0.0
    %v3088 = vrot.slane %v3087, 4
    %v3089 = vadd.f32 %v3087, %v3088
    %v3090 = vrot.slane %v3089, 2
    %v3091 = vadd.f32 %v3089, %v3090
    %v3092 = vrot.slane %v3091, 1
    %v3093 = vadd.f32 %v3091, %v3092
    %v3094 = vsel %vm880, %v3086, 0.0
    %v3095 = vrot.slane %v3094, 4
    %v3096 = vadd.f32 %v3094, %v3095
    %v3097 = vrot.slane %v3096, 2
    %v3098 = vadd.f32 %v3096, %v3097
    %v3099 = vrot.slane %v3098, 1
    %v3100 = vadd.f32 %v3098, %v3099
    %v3101 = vmax.f32 %v3093, 1e-20
    %v3102 = vmax.f32 %v3100, 1e-20
    %v3103 = vrcp.pop %v3101
    %v3104 = vmul.f32 %v3101, %v3103
    %v3105 = vsub.f32 1.0, %v3104
    %v3106 = vmul.f32 %v3103, %v3105
    %v3107 = vadd.f32 %v3103, %v3106
    %vm3108 = vweird.f32 %v3101
    %vm3109 = vweird.f32 %v3103
    %vm3110 = vmor %vm3108, %vm3109
    %v3111 = vsel %vm3110, %v3103, %v3107
    %v3112 = vand.u32 2147483647, %v3101
    %vm3113 = vcmp.eq.f32.partialorder %v3112, 8.507059e+37
    %v3114 = vand.u32 %v3101, 2147483648
    %v3115 = vor.u32 1.1754944e-38, %v3114
    %v3116 = vsel %vm3113, %v3115, %v3111
    %v3117 = vmul.f32 %v3085, %v3116
    %v3118 = vrcp.pop %v3102
    %v3119 = vmul.f32 %v3102, %v3118
    %v3120 = vsub.f32 1.0, %v3119
    %v3121 = vmul.f32 %v3118, %v3120
    %v3122 = vadd.f32 %v3118, %v3121
    %vm3123 = vweird.f32 %v3102
    %vm3124 = vweird.f32 %v3118
    %vm3125 = vmor %vm3123, %vm3124
    %v3126 = vsel %vm3125, %v3118, %v3122
    %v3127 = vand.u32 2147483647, %v3102
    %vm3128 = vcmp.eq.f32.partialorder %v3127, 8.507059e+37
    %v3129 = vand.u32 %v3102, 2147483648
    %v3130 = vor.u32 1.1754944e-38, %v3129
    %v3131 = vsel %vm3128, %v3130, %v3126
    %v3132 = vmul.f32 %v3086, %v3131
    %3133 = vrot.lane.b32.xlu0 %v438, 96
    %v3134 = vpop.permute.xlu0 %3133
    %3135 = vrot.lane.b32.xlu0 %v441, 96
    %v3136 = vpop.permute.xlu0 %3135
    %3137 = vrot.lane.b32.xlu0 %v444, 96
    %v3138 = vpop.permute.xlu0 %3137
    %3139 = vrot.lane.b32.xlu0 %v447, 96
    %v3140 = vpop.permute.xlu0 %3139
    %3141 = vrot.lane.b32.xlu0 %v450, 96
    %v3142 = vpop.permute.xlu0 %3141
    %3143 = vrot.lane.b32.xlu0 %v453, 96
    %v3144 = vpop.permute.xlu0 %3143
    %3145 = vrot.lane.b32.xlu0 %v456, 96
    %v3146 = vpop.permute.xlu0 %3145
    %3147 = vrot.lane.b32.xlu0 %v459, 96
    %v3148 = vpop.permute.xlu0 %3147
    %3149 = vrot.lane.b32.xlu0 %v462, 96
    %v3150 = vpop.permute.xlu0 %3149
    %3151 = vrot.lane.b32.xlu0 %v465, 96
    %v3152 = vpop.permute.xlu0 %3151
    %3153 = vrot.lane.b32.xlu0 %v468, 96
    %v3154 = vpop.permute.xlu0 %3153
    %3155 = vrot.lane.b32.xlu0 %v471, 96
    %v3156 = vpop.permute.xlu0 %3155
    %3157 = vrot.lane.b32.xlu0 %v474, 96
    %v3158 = vpop.permute.xlu0 %3157
    %3159 = vrot.lane.b32.xlu0 %v477, 96
    %v3160 = vpop.permute.xlu0 %3159
    %3161 = vrot.lane.b32.xlu0 %v480, 96
    %v3162 = vpop.permute.xlu0 %3161
    %3163 = vrot.lane.b32.xlu0 %v483, 96
    %v3164 = vpop.permute.xlu0 %3163
    %v3181 = vadd.f32 %v2818, %v3134
    %v3182 = vadd.f32 %v2819, %v3136
    %v3183 = vadd.f32 %v2820, %v3138
    %v3184 = vadd.f32 %v2821, %v3140
    %v3185 = vadd.f32 %v2822, %v3142
    %v3186 = vadd.f32 %v2823, %v3144
    %v3187 = vadd.f32 %v2824, %v3146
    %v3188 = vadd.f32 %v2825, %v3148
    %v3189 = vadd.f32 %v2826, %v3150
    %v3190 = vadd.f32 %v2827, %v3152
    %v3191 = vadd.f32 %v2828, %v3154
    %v3192 = vadd.f32 %v2829, %v3156
    %v3193 = vadd.f32 %v2830, %v3158
    %v3194 = vadd.f32 %v2831, %v3160
    %v3195 = vadd.f32 %v2832, %v3162
    %v3196 = vadd.f32 %v2833, %v3164
    %vm3197 = vcmp.ge.f32.partialorder %v3181, 0.0
    %vm3198 = vcmp.ge.f32.partialorder %v3182, 0.0
    %vm3199 = vcmp.ge.f32.partialorder %v3183, 0.0
    %vm3200 = vcmp.ge.f32.partialorder %v3184, 0.0
    %vm3201 = vcmp.ge.f32.partialorder %v3185, 0.0
    %vm3202 = vcmp.ge.f32.partialorder %v3186, 0.0
    %vm3203 = vcmp.ge.f32.partialorder %v3187, 0.0
    %vm3204 = vcmp.ge.f32.partialorder %v3188, 0.0
    %vm3205 = vcmp.ge.f32.partialorder %v3189, 0.0
    %vm3206 = vcmp.ge.f32.partialorder %v3190, 0.0
    %vm3207 = vcmp.ge.f32.partialorder %v3191, 0.0
    %vm3208 = vcmp.ge.f32.partialorder %v3192, 0.0
    %vm3209 = vcmp.ge.f32.partialorder %v3193, 0.0
    %vm3210 = vcmp.ge.f32.partialorder %v3194, 0.0
    %vm3211 = vcmp.ge.f32.partialorder %v3195, 0.0
    %vm3212 = vcmp.ge.f32.partialorder %v3196, 0.0
    %v3213 = vmul.f32 %v3181, 0.2
    %v3214 = vmul.f32 %v3182, 0.2
    %v3215 = vmul.f32 %v3183, 0.2
    %v3216 = vmul.f32 %v3184, 0.2
    %v3217 = vmul.f32 %v3185, 0.2
    %v3218 = vmul.f32 %v3186, 0.2
    %v3219 = vmul.f32 %v3187, 0.2
    %v3220 = vmul.f32 %v3188, 0.2
    %v3221 = vmul.f32 %v3189, 0.2
    %v3222 = vmul.f32 %v3190, 0.2
    %v3223 = vmul.f32 %v3191, 0.2
    %v3224 = vmul.f32 %v3192, 0.2
    %v3225 = vmul.f32 %v3193, 0.2
    %v3226 = vmul.f32 %v3194, 0.2
    %v3227 = vmul.f32 %v3195, 0.2
    %v3228 = vmul.f32 %v3196, 0.2
    %v3229 = vsel %vm3197, %v3181, %v3213
    %v3230 = vsel %vm3198, %v3182, %v3214
    %v3231 = vsel %vm3199, %v3183, %v3215
    %v3232 = vsel %vm3200, %v3184, %v3216
    %v3233 = vsel %vm3201, %v3185, %v3217
    %v3234 = vsel %vm3202, %v3186, %v3218
    %v3235 = vsel %vm3203, %v3187, %v3219
    %v3236 = vsel %vm3204, %v3188, %v3220
    %v3237 = vsel %vm3205, %v3189, %v3221
    %v3238 = vsel %vm3206, %v3190, %v3222
    %v3239 = vsel %vm3207, %v3191, %v3223
    %v3240 = vsel %vm3208, %v3192, %v3224
    %v3241 = vsel %vm3209, %v3193, %v3225
    %v3242 = vsel %vm3210, %v3194, %v3226
    %v3243 = vsel %vm3211, %v3195, %v3227
    %v3244 = vsel %vm3212, %v3196, %v3228
    %v3245 = vperm.slane %v3117, 0
    %v3246 = vlaneseq
    %v3247 = vshrl.u32 %v3246, 7
    %3249 = vset.pattern.permute.xlu0 %v3247
    %3250 = vperm.xlu0 %3249, %v3245
    %v3251 = vpop.permute.xlu0 %3250
    %v3252 = vperm.slane %v3117, 1
    %v3253 = vlaneseq
    %v3254 = vshrl.u32 %v3253, 7
    %3256 = vset.pattern.permute.xlu0 %v3254
    %3257 = vperm.xlu0 %3256, %v3252
    %v3258 = vpop.permute.xlu0 %3257
    %v3259 = vperm.slane %v3117, 2
    %v3260 = vlaneseq
    %v3261 = vshrl.u32 %v3260, 7
    %3263 = vset.pattern.permute.xlu0 %v3261
    %3264 = vperm.xlu0 %3263, %v3259
    %v3265 = vpop.permute.xlu0 %3264
    %v3266 = vperm.slane %v3117, 3
    %v3267 = vlaneseq
    %v3268 = vshrl.u32 %v3267, 7
    %3270 = vset.pattern.permute.xlu0 %v3268
    %3271 = vperm.xlu0 %3270, %v3266
    %v3272 = vpop.permute.xlu0 %3271
    %v3273 = vperm.slane %v3117, 4
    %v3274 = vlaneseq
    %v3275 = vshrl.u32 %v3274, 7
    %3277 = vset.pattern.permute.xlu0 %v3275
    %3278 = vperm.xlu0 %3277, %v3273
    %v3279 = vpop.permute.xlu0 %3278
    %v3280 = vperm.slane %v3117, 5
    %v3281 = vlaneseq
    %v3282 = vshrl.u32 %v3281, 7
    %3284 = vset.pattern.permute.xlu0 %v3282
    %3285 = vperm.xlu0 %3284, %v3280
    %v3286 = vpop.permute.xlu0 %3285
    %v3287 = vperm.slane %v3117, 6
    %v3288 = vlaneseq
    %v3289 = vshrl.u32 %v3288, 7
    %3291 = vset.pattern.permute.xlu0 %v3289
    %3292 = vperm.xlu0 %3291, %v3287
    %v3293 = vpop.permute.xlu0 %3292
    %v3294 = vperm.slane %v3117, 7
    %v3295 = vlaneseq
    %v3296 = vshrl.u32 %v3295, 7
    %3298 = vset.pattern.permute.xlu0 %v3296
    %3299 = vperm.xlu0 %3298, %v3294
    %v3300 = vpop.permute.xlu0 %3299
    %v3301 = vperm.slane %v3132, 0
    %v3302 = vlaneseq
    %v3303 = vshrl.u32 %v3302, 7
    %3305 = vset.pattern.permute.xlu0 %v3303
    %3306 = vperm.xlu0 %3305, %v3301
    %v3307 = vpop.permute.xlu0 %3306
    %v3308 = vperm.slane %v3132, 1
    %v3309 = vlaneseq
    %v3310 = vshrl.u32 %v3309, 7
    %3312 = vset.pattern.permute.xlu0 %v3310
    %3313 = vperm.xlu0 %3312, %v3308
    %v3314 = vpop.permute.xlu0 %3313
    %v3315 = vperm.slane %v3132, 2
    %v3316 = vlaneseq
    %v3317 = vshrl.u32 %v3316, 7
    %3319 = vset.pattern.permute.xlu0 %v3317
    %3320 = vperm.xlu0 %3319, %v3315
    %v3321 = vpop.permute.xlu0 %3320
    %v3322 = vperm.slane %v3132, 3
    %v3323 = vlaneseq
    %v3324 = vshrl.u32 %v3323, 7
    %3326 = vset.pattern.permute.xlu0 %v3324
    %3327 = vperm.xlu0 %3326, %v3322
    %v3328 = vpop.permute.xlu0 %3327
    %v3329 = vperm.slane %v3132, 4
    %v3330 = vlaneseq
    %v3331 = vshrl.u32 %v3330, 7
    %3333 = vset.pattern.permute.xlu0 %v3331
    %3334 = vperm.xlu0 %3333, %v3329
    %v3335 = vpop.permute.xlu0 %3334
    %v3336 = vperm.slane %v3132, 5
    %v3337 = vlaneseq
    %v3338 = vshrl.u32 %v3337, 7
    %3340 = vset.pattern.permute.xlu0 %v3338
    %3341 = vperm.xlu0 %3340, %v3336
    %v3342 = vpop.permute.xlu0 %3341
    %v3343 = vperm.slane %v3132, 6
    %v3344 = vlaneseq
    %v3345 = vshrl.u32 %v3344, 7
    %3347 = vset.pattern.permute.xlu0 %v3345
    %3348 = vperm.xlu0 %3347, %v3343
    %v3349 = vpop.permute.xlu0 %3348
    %v3350 = vperm.slane %v3132, 7
    %v3351 = vlaneseq
    %v3352 = vshrl.u32 %v3351, 7
    %3354 = vset.pattern.permute.xlu0 %v3352
    %3355 = vperm.xlu0 %3354, %v3350
    %v3356 = vpop.permute.xlu0 %3355
    %v3357 = vmul.f32 %v3251, %v3229
    %v3358 = vmul.f32 %v3258, %v3230
    %v3359 = vmul.f32 %v3265, %v3231
    %v3360 = vmul.f32 %v3272, %v3232
    %v3361 = vmul.f32 %v3279, %v3233
    %v3362 = vmul.f32 %v3286, %v3234
    %v3363 = vmul.f32 %v3293, %v3235
    %v3364 = vmul.f32 %v3300, %v3236
    %v3365 = vmul.f32 %v3307, %v3237
    %v3366 = vmul.f32 %v3314, %v3238
    %v3367 = vmul.f32 %v3321, %v3239
    %v3368 = vmul.f32 %v3328, %v3240
    %v3369 = vmul.f32 %v3335, %v3241
    %v3370 = vmul.f32 %v3342, %v3242
    %v3371 = vmul.f32 %v3349, %v3243
    %v3372 = vmul.f32 %v3356, %v3244
    %v3373 = vsel %vm1205, %v3357, 0.0
    %v3374 = vsel %vm1205, %v3358, 0.0
    %v3375 = vadd.f32 %v3373, %v3374
    %v3376 = vsel %vm1205, %v3359, 0.0
    %v3377 = vadd.f32 %v3375, %v3376
    %v3378 = vsel %vm1205, %v3360, 0.0
    %v3379 = vadd.f32 %v3377, %v3378
    %v3380 = vsel %vm1205, %v3361, 0.0
    %v3381 = vadd.f32 %v3379, %v3380
    %v3382 = vsel %vm1205, %v3362, 0.0
    %v3383 = vadd.f32 %v3381, %v3382
    %v3384 = vsel %vm1205, %v3363, 0.0
    %v3385 = vadd.f32 %v3383, %v3384
    %v3386 = vsel %vm1205, %v3364, 0.0
    %v3387 = vadd.f32 %v3385, %v3386
    %v3388 = vsel %vm1205, %v3365, 0.0
    %v3389 = vsel %vm1205, %v3366, 0.0
    %v3390 = vadd.f32 %v3388, %v3389
    %v3391 = vsel %vm1205, %v3367, 0.0
    %v3392 = vadd.f32 %v3390, %v3391
    %v3393 = vsel %vm1205, %v3368, 0.0
    %v3394 = vadd.f32 %v3392, %v3393
    %v3395 = vsel %vm1205, %v3369, 0.0
    %v3396 = vadd.f32 %v3394, %v3395
    %v3397 = vsel %vm1205, %v3370, 0.0
    %v3398 = vadd.f32 %v3396, %v3397
    %v3399 = vsel %vm1205, %v3371, 0.0
    %v3400 = vadd.f32 %v3398, %v3399
    %v3401 = vsel %vm1205, %v3372, 0.0
    %v3402 = vadd.f32 %v3400, %v3401
    %3405 = vrot.lane.b32.xlu0 %v2759, 64
    %v3406 = vpop.permute.xlu0 %3405
    %3407 = vrot.lane.b32.xlu0 %v2762, 64
    %v3408 = vpop.permute.xlu0 %3407
    %v3411 = vadd.f32 %v3387, %v3406
    %v3412 = vadd.f32 %v3402, %v3408
    %vm3413 = vcmp.ge.f32.partialorder %v3411, 0.0
    %vm3414 = vcmp.ge.f32.partialorder %v3412, 0.0
    %v3415 = vmul.f32 %v3411, 0.2
    %v3416 = vmul.f32 %v3412, 0.2
    %v3417 = vsel %vm3413, %v3411, %v3415
    %v3418 = vsel %vm3414, %v3412, %v3416
    %v3419 = vadd.f32 %v3417, %v1253
    %v3420 = vadd.f32 %v3418, %v1255
    %v3421 = vmax.f32 %v3419, 0.0
    %v3422 = vmax.f32 %v3420, 0.0
    %s3423 = scalar_lea.vmem %s6, 256
    %v3424 = vld [vmem:[%s3423] sm:$0xff]
    %v3425 = vld [vmem:[%s3423 + $0x8] sm:$0xff]
    %v3426 = vld [vmem:[%s3423 + $0x10] sm:$0xff]
    %v3427 = vld [vmem:[%s3423 + $0x18] sm:$0xff]
    %v3428 = vld [vmem:[%s3423 + $0x20] sm:$0xff]
    %v3429 = vld [vmem:[%s3423 + $0x28] sm:$0xff]
    %v3430 = vld [vmem:[%s3423 + $0x30] sm:$0xff]
    %v3431 = vld [vmem:[%s3423 + $0x38] sm:$0xff]
    %s3432 = scalar_lea.vmem [#allocation8], 8
    %v3433 = vld [vmem:[%s3432] sm:$0x3]
    %v3435 = vperm.slane %v3433, 0
    %v3436 = vperm.slane %v3433, 1
    %3441 = vrot.lane.b32.xlu0 %v3421, 64
    %v3442 = vpop.permute.xlu0 %3441
    %3443 = vrot.lane.b32.xlu0 %v3422, 64
    %v3444 = vpop.permute.xlu0 %3443
    %v3445 = vsel %vm564, %v3442, 0
    %v3447 = vsel %vm564, %v3444, 0
    %3449 = vmatpush.msra.mxu0 0.0
    %3450 = vmatpush.msra.mxu0 0.0
    %3451 = vmatpush.msra.mxu0 0.0
    %3452 = vmatpush.msra.mxu0 0.0
    %3453 = vmatpush.msra.mxu0 0.0
    %3454 = vmatpush.msra.mxu0 0.0
    %3455 = vmatpush.msra.mxu0 0.0
    %3456 = vmatpush.msra.mxu0 0.0
    %3457 = vmatpush.msra.mxu0 0.0
    %3458 = vmatpush.msra.mxu0 0.0
    %3459 = vmatpush.msra.mxu0 0.0
    %3460 = vmatpush.msra.mxu0 0.0
    %3461 = vmatpush.msra.mxu0 %v3430
    %3462 = vmatpush.msra.mxu0 %v3428
    %3463 = vmatpush.msra.mxu0 %v3426
    %3464 = vmatpush.msra.mxu0 %v3424
    %3465 = vmatmul.f32.gmra.mxu0 %v3445
    %v3466 = vpop.f32.mrf.mxu0
    %v3467 = vadd.f32 %v3435, %v3466
    %3468 = vmatmul.f32.gmra.mxu0 %v3447
    %v3469 = vpop.f32.mrf.mxu0
    %v3470 = vadd.f32 %v3435, %v3469
    %3471 = vdwg.mxu0
    %3472 = vmatpush.msra.mxu0 0.0
    %3473 = vmatpush.msra.mxu0 0.0
    %3474 = vmatpush.msra.mxu0 0.0
    %3475 = vmatpush.msra.mxu0 0.0
    %3476 = vmatpush.msra.mxu0 0.0
    %3477 = vmatpush.msra.mxu0 0.0
    %3478 = vmatpush.msra.mxu0 0.0
    %3479 = vmatpush.msra.mxu0 0.0
    %3480 = vmatpush.msra.mxu0 0.0
    %3481 = vmatpush.msra.mxu0 0.0
    %3482 = vmatpush.msra.mxu0 0.0
    %3483 = vmatpush.msra.mxu0 0.0
    %3484 = vmatpush.msra.mxu0 %v3431
    %3485 = vmatpush.msra.mxu0 %v3429
    %3486 = vmatpush.msra.mxu0 %v3427
    %3487 = vmatpush.msra.mxu0 %v3425
    %3488 = vmatmul.f32.gmra.mxu0 %v3445
    %v3489 = vpop.f32.mrf.mxu0
    %v3490 = vadd.f32 %v3436, %v3489
    %3491 = vmatmul.f32.gmra.mxu0 %v3447
    %v3492 = vpop.f32.mrf.mxu0
    %v3493 = vadd.f32 %v3436, %v3492
    %3494 = vdwg.mxu0
    %v3497 = vrot.slane %v3467, 1
    %v3498 = vrot.slane %v3467, 2
    %v3499 = vrot.slane %v3467, 3
    %v3500 = vrot.slane %v3467, 4
    %v3501 = vrot.slane %v3467, 5
    %v3502 = vrot.slane %v3467, 6
    %v3503 = vrot.slane %v3467, 7
    %v3504 = vrot.slane %v3470, 1
    %v3505 = vrot.slane %v3470, 2
    %v3506 = vrot.slane %v3470, 3
    %v3507 = vrot.slane %v3470, 4
    %v3508 = vrot.slane %v3470, 5
    %v3509 = vrot.slane %v3470, 6
    %v3510 = vrot.slane %v3470, 7
    %v3511 = vperm.slane %v3467, 0
    %v3512 = vperm.slane %v3497, 0
    %v3513 = vperm.slane %v3498, 0
    %v3514 = vperm.slane %v3499, 0
    %v3515 = vperm.slane %v3500, 0
    %v3516 = vperm.slane %v3501, 0
    %v3517 = vperm.slane %v3502, 0
    %v3518 = vperm.slane %v3503, 0
    %v3519 = vperm.slane %v3470, 0
    %v3520 = vperm.slane %v3504, 0
    %v3521 = vperm.slane %v3505, 0
    %v3522 = vperm.slane %v3506, 0
    %v3523 = vperm.slane %v3507, 0
    %v3524 = vperm.slane %v3508, 0
    %v3525 = vperm.slane %v3509, 0
    %v3526 = vperm.slane %v3510, 0
    %3543 = vrot.lane.b32.xlu0 %v3467, 96
    %v3544 = vpop.permute.xlu0 %3543
    %3545 = vrot.lane.b32.xlu0 %v3470, 96
    %v3546 = vpop.permute.xlu0 %3545
    %v3549 = vadd.f32 %v3511, %v3544
    %v3550 = vadd.f32 %v3512, %v3544
    %v3551 = vadd.f32 %v3513, %v3544
    %v3552 = vadd.f32 %v3514, %v3544
    %v3553 = vadd.f32 %v3515, %v3544
    %v3554 = vadd.f32 %v3516, %v3544
    %v3555 = vadd.f32 %v3517, %v3544
    %v3556 = vadd.f32 %v3518, %v3544
    %v3557 = vadd.f32 %v3519, %v3546
    %v3558 = vadd.f32 %v3520, %v3546
    %v3559 = vadd.f32 %v3521, %v3546
    %v3560 = vadd.f32 %v3522, %v3546
    %v3561 = vadd.f32 %v3523, %v3546
    %v3562 = vadd.f32 %v3524, %v3546
    %v3563 = vadd.f32 %v3525, %v3546
    %v3564 = vadd.f32 %v3526, %v3546
    %v3565 = vadd.f32 %v3549, %v503
    %v3566 = vadd.f32 %v3550, %v506
    %v3567 = vadd.f32 %v3551, %v509
    %v3568 = vadd.f32 %v3552, %v512
    %v3569 = vadd.f32 %v3553, %v515
    %v3570 = vadd.f32 %v3554, %v518
    %v3571 = vadd.f32 %v3555, %v521
    %v3572 = vadd.f32 %v3556, %v524
    %v3573 = vadd.f32 %v3557, %v527
    %v3574 = vadd.f32 %v3558, %v530
    %v3575 = vadd.f32 %v3559, %v533
    %v3576 = vadd.f32 %v3560, %v536
    %v3577 = vadd.f32 %v3561, %v539
    %v3578 = vadd.f32 %v3562, %v542
    %v3579 = vadd.f32 %v3563, %v545
    %v3580 = vadd.f32 %v3564, %v548
    %vm3581 = vcmp.ge.f32.partialorder %v3565, 0.0
    %vm3582 = vcmp.ge.f32.partialorder %v3566, 0.0
    %vm3583 = vcmp.ge.f32.partialorder %v3567, 0.0
    %vm3584 = vcmp.ge.f32.partialorder %v3568, 0.0
    %vm3585 = vcmp.ge.f32.partialorder %v3569, 0.0
    %vm3586 = vcmp.ge.f32.partialorder %v3570, 0.0
    %vm3587 = vcmp.ge.f32.partialorder %v3571, 0.0
    %vm3588 = vcmp.ge.f32.partialorder %v3572, 0.0
    %vm3589 = vcmp.ge.f32.partialorder %v3573, 0.0
    %vm3590 = vcmp.ge.f32.partialorder %v3574, 0.0
    %vm3591 = vcmp.ge.f32.partialorder %v3575, 0.0
    %vm3592 = vcmp.ge.f32.partialorder %v3576, 0.0
    %vm3593 = vcmp.ge.f32.partialorder %v3577, 0.0
    %vm3594 = vcmp.ge.f32.partialorder %v3578, 0.0
    %vm3595 = vcmp.ge.f32.partialorder %v3579, 0.0
    %vm3596 = vcmp.ge.f32.partialorder %v3580, 0.0
    %v3597 = vmul.f32 %v3565, 0.2
    %v3598 = vmul.f32 %v3566, 0.2
    %v3599 = vmul.f32 %v3567, 0.2
    %v3600 = vmul.f32 %v3568, 0.2
    %v3601 = vmul.f32 %v3569, 0.2
    %v3602 = vmul.f32 %v3570, 0.2
    %v3603 = vmul.f32 %v3571, 0.2
    %v3604 = vmul.f32 %v3572, 0.2
    %v3605 = vmul.f32 %v3573, 0.2
    %v3606 = vmul.f32 %v3574, 0.2
    %v3607 = vmul.f32 %v3575, 0.2
    %v3608 = vmul.f32 %v3576, 0.2
    %v3609 = vmul.f32 %v3577, 0.2
    %v3610 = vmul.f32 %v3578, 0.2
    %v3611 = vmul.f32 %v3579, 0.2
    %v3612 = vmul.f32 %v3580, 0.2
    %v3613 = vsel %vm3581, %v3565, %v3597
    %v3614 = vsel %vm3582, %v3566, %v3598
    %v3615 = vsel %vm3583, %v3567, %v3599
    %v3616 = vsel %vm3584, %v3568, %v3600
    %v3617 = vsel %vm3585, %v3569, %v3601
    %v3618 = vsel %vm3586, %v3570, %v3602
    %v3619 = vsel %vm3587, %v3571, %v3603
    %v3620 = vsel %vm3588, %v3572, %v3604
    %v3621 = vsel %vm3589, %v3573, %v3605
    %v3622 = vsel %vm3590, %v3574, %v3606
    %v3623 = vsel %vm3591, %v3575, %v3607
    %v3624 = vsel %vm3592, %v3576, %v3608
    %v3625 = vsel %vm3593, %v3577, %v3609
    %v3626 = vsel %vm3594, %v3578, %v3610
    %v3627 = vsel %vm3595, %v3579, %v3611
    %v3628 = vsel %vm3596, %v3580, %v3612
    %s3629 = scalar_lea.vmem %s10, 4
    %v3630 = vld [vmem:[%s3629] sm:$0x1]
    %v3632 = vperm.slane %v3630, 0
    %v3634 = vmul.f32 %v3613, %v3632
    %v3635 = vmul.f32 %v3614, %v3632
    %v3636 = vmul.f32 %v3615, %v3632
    %v3637 = vmul.f32 %v3616, %v3632
    %v3638 = vmul.f32 %v3617, %v3632
    %v3639 = vmul.f32 %v3618, %v3632
    %v3640 = vmul.f32 %v3619, %v3632
    %v3641 = vmul.f32 %v3620, %v3632
    %v3642 = vmul.f32 %v3621, %v3632
    %v3643 = vmul.f32 %v3622, %v3632
    %v3644 = vmul.f32 %v3623, %v3632
    %v3645 = vmul.f32 %v3624, %v3632
    %v3646 = vmul.f32 %v3625, %v3632
    %v3647 = vmul.f32 %v3626, %v3632
    %v3648 = vmul.f32 %v3627, %v3632
    %v3649 = vmul.f32 %v3628, %v3632
    %v3650 = vsel %vm564, %v3634, 0.0
    %3651 = vadd.xlane.f32.xlu0 %v3650
    %v3652 = vpop.xlane.xlu0 %3651
    %v3653 = vsel %vm564, %v3635, 0.0
    %3654 = vadd.xlane.f32.xlu0 %v3653
    %v3655 = vpop.xlane.xlu0 %3654
    %v3656 = vsel %vm564, %v3636, 0.0
    %3657 = vadd.xlane.f32.xlu0 %v3656
    %v3658 = vpop.xlane.xlu0 %3657
    %v3659 = vsel %vm564, %v3637, 0.0
    %3660 = vadd.xlane.f32.xlu0 %v3659
    %v3661 = vpop.xlane.xlu0 %3660
    %v3662 = vsel %vm564, %v3638, 0.0
    %3663 = vadd.xlane.f32.xlu0 %v3662
    %v3664 = vpop.xlane.xlu0 %3663
    %v3665 = vsel %vm564, %v3639, 0.0
    %3666 = vadd.xlane.f32.xlu0 %v3665
    %v3667 = vpop.xlane.xlu0 %3666
    %v3668 = vsel %vm564, %v3640, 0.0
    %3669 = vadd.xlane.f32.xlu0 %v3668
    %v3670 = vpop.xlane.xlu0 %3669
    %v3671 = vsel %vm564, %v3641, 0.0
    %3672 = vadd.xlane.f32.xlu0 %v3671
    %v3673 = vpop.xlane.xlu0 %3672
    %v3674 = vsel %vm564, %v3642, 0.0
    %3675 = vadd.xlane.f32.xlu0 %v3674
    %v3676 = vpop.xlane.xlu0 %3675
    %v3677 = vsel %vm564, %v3643, 0.0
    %3678 = vadd.xlane.f32.xlu0 %v3677
    %v3679 = vpop.xlane.xlu0 %3678
    %v3680 = vsel %vm564, %v3644, 0.0
    %3681 = vadd.xlane.f32.xlu0 %v3680
    %v3682 = vpop.xlane.xlu0 %3681
    %v3683 = vsel %vm564, %v3645, 0.0
    %3684 = vadd.xlane.f32.xlu0 %v3683
    %v3685 = vpop.xlane.xlu0 %3684
    %v3686 = vsel %vm564, %v3646, 0.0
    %3687 = vadd.xlane.f32.xlu0 %v3686
    %v3688 = vpop.xlane.xlu0 %3687
    %v3689 = vsel %vm564, %v3647, 0.0
    %3690 = vadd.xlane.f32.xlu0 %v3689
    %v3691 = vpop.xlane.xlu0 %3690
    %v3692 = vsel %vm564, %v3648, 0.0
    %3693 = vadd.xlane.f32.xlu0 %v3692
    %v3694 = vpop.xlane.xlu0 %3693
    %v3695 = vsel %vm564, %v3649, 0.0
    %3696 = vadd.xlane.f32.xlu0 %v3695
    %v3697 = vpop.xlane.xlu0 %3696
    %v3714 = vperm.slane %v3652, %v838
    %v3715 = vperm.slane %v3655, %v838
    %v3716 = vperm.slane %v3658, %v838
    %v3717 = vperm.slane %v3661, %v838
    %v3718 = vperm.slane %v3664, %v838
    %v3719 = vperm.slane %v3667, %v838
    %v3720 = vperm.slane %v3670, %v838
    %v3721 = vperm.slane %v3673, %v838
    %v3722 = vperm.slane %v3676, %v838
    %v3723 = vperm.slane %v3679, %v838
    %v3724 = vperm.slane %v3682, %v838
    %v3725 = vperm.slane %v3685, %v838
    %v3726 = vperm.slane %v3688, %v838
    %v3727 = vperm.slane %v3691, %v838
    %v3728 = vperm.slane %v3694, %v838
    %v3729 = vperm.slane %v3697, %v838
    %v3730 = vsel %vm855, %v3715, %v3714
    %v3731 = vsel %vm857, %v3716, %v3730
    %v3732 = vsel %vm859, %v3717, %v3731
    %v3733 = vsel %vm861, %v3718, %v3732
    %v3734 = vsel %vm863, %v3719, %v3733
    %v3735 = vsel %vm865, %v3720, %v3734
    %v3736 = vsel %vm867, %v3721, %v3735
    %v3737 = vsel %vm855, %v3723, %v3722
    %v3738 = vsel %vm857, %v3724, %v3737
    %v3739 = vsel %vm859, %v3725, %v3738
    %v3740 = vsel %vm861, %v3726, %v3739
    %v3741 = vsel %vm863, %v3727, %v3740
    %v3742 = vsel %vm865, %v3728, %v3741
    %v3743 = vsel %vm867, %v3729, %v3742
    %v3746 = vsel %vm819, %v3736, -1e+30
    %v3747 = vsel %vm820, %v3743, -1e+30
    %v3748 = vsel %vm880, %v3746, -inf
    %v3749 = vrot.slane %v3748, 4
    %v3750 = vmax.f32 %v3748, %v3749
    %v3751 = vrot.slane %v3750, 2
    %v3752 = vmax.f32 %v3750, %v3751
    %v3753 = vrot.slane %v3752, 1
    %v3754 = vmax.f32 %v3752, %v3753
    %v3755 = vsel %vm880, %v3747, -inf
    %v3756 = vrot.slane %v3755, 4
    %v3757 = vmax.f32 %v3755, %v3756
    %v3758 = vrot.slane %v3757, 2
    %v3759 = vmax.f32 %v3757, %v3758
    %v3760 = vrot.slane %v3759, 1
    %v3761 = vmax.f32 %v3759, %v3760
    %v3762 = vsub.f32 %v3746, %v3754
    %v3763 = vsub.f32 %v3747, %v3761
    %v3764 = vmul.f32 %v3762, 1.442695
    %v3765 = vpow.pop %v3764
    %v3766 = vmul.f32 %v3763, 1.442695
    %v3767 = vpow.pop %v3766
    %v3768 = vmul.f32 %v3765, %v134
    %v3769 = vmul.f32 %v3767, %v135
    %v3770 = vsel %vm880, %v3768, 0.0
    %v3771 = vrot.slane %v3770, 4
    %v3772 = vadd.f32 %v3770, %v3771
    %v3773 = vrot.slane %v3772, 2
    %v3774 = vadd.f32 %v3772, %v3773
    %v3775 = vrot.slane %v3774, 1
    %v3776 = vadd.f32 %v3774, %v3775
    %v3777 = vsel %vm880, %v3769, 0.0
    %v3778 = vrot.slane %v3777, 4
    %v3779 = vadd.f32 %v3777, %v3778
    %v3780 = vrot.slane %v3779, 2
    %v3781 = vadd.f32 %v3779, %v3780
    %v3782 = vrot.slane %v3781, 1
    %v3783 = vadd.f32 %v3781, %v3782
    %v3784 = vmax.f32 %v3776, 1e-20
    %v3785 = vmax.f32 %v3783, 1e-20
    %v3786 = vrcp.pop %v3784
    %v3787 = vmul.f32 %v3784, %v3786
    %v3788 = vsub.f32 1.0, %v3787
    %v3789 = vmul.f32 %v3786, %v3788
    %v3790 = vadd.f32 %v3786, %v3789
    %vm3791 = vweird.f32 %v3784
    %vm3792 = vweird.f32 %v3786
    %vm3793 = vmor %vm3791, %vm3792
    %v3794 = vsel %vm3793, %v3786, %v3790
    %v3795 = vand.u32 2147483647, %v3784
    %vm3796 = vcmp.eq.f32.partialorder %v3795, 8.507059e+37
    %v3797 = vand.u32 %v3784, 2147483648
    %v3798 = vor.u32 1.1754944e-38, %v3797
    %v3799 = vsel %vm3796, %v3798, %v3794
    %v3800 = vmul.f32 %v3768, %v3799
    %v3801 = vrcp.pop %v3785
    %v3802 = vmul.f32 %v3785, %v3801
    %v3803 = vsub.f32 1.0, %v3802
    %v3804 = vmul.f32 %v3801, %v3803
    %v3805 = vadd.f32 %v3801, %v3804
    %vm3806 = vweird.f32 %v3785
    %vm3807 = vweird.f32 %v3801
    %vm3808 = vmor %vm3806, %vm3807
    %v3809 = vsel %vm3808, %v3801, %v3805
    %v3810 = vand.u32 2147483647, %v3785
    %vm3811 = vcmp.eq.f32.partialorder %v3810, 8.507059e+37
    %v3812 = vand.u32 %v3785, 2147483648
    %v3813 = vor.u32 1.1754944e-38, %v3812
    %v3814 = vsel %vm3811, %v3813, %v3809
    %v3815 = vmul.f32 %v3769, %v3814
    %3832 = vrot.lane.b32.xlu0 %v503, 32
    %v3833 = vpop.permute.xlu0 %3832
    %3834 = vrot.lane.b32.xlu0 %v506, 32
    %v3835 = vpop.permute.xlu0 %3834
    %3836 = vrot.lane.b32.xlu0 %v509, 32
    %v3837 = vpop.permute.xlu0 %3836
    %3838 = vrot.lane.b32.xlu0 %v512, 32
    %v3839 = vpop.permute.xlu0 %3838
    %3840 = vrot.lane.b32.xlu0 %v515, 32
    %v3841 = vpop.permute.xlu0 %3840
    %3842 = vrot.lane.b32.xlu0 %v518, 32
    %v3843 = vpop.permute.xlu0 %3842
    %3844 = vrot.lane.b32.xlu0 %v521, 32
    %v3845 = vpop.permute.xlu0 %3844
    %3846 = vrot.lane.b32.xlu0 %v524, 32
    %v3847 = vpop.permute.xlu0 %3846
    %3848 = vrot.lane.b32.xlu0 %v527, 32
    %v3849 = vpop.permute.xlu0 %3848
    %3850 = vrot.lane.b32.xlu0 %v530, 32
    %v3851 = vpop.permute.xlu0 %3850
    %3852 = vrot.lane.b32.xlu0 %v533, 32
    %v3853 = vpop.permute.xlu0 %3852
    %3854 = vrot.lane.b32.xlu0 %v536, 32
    %v3855 = vpop.permute.xlu0 %3854
    %3856 = vrot.lane.b32.xlu0 %v539, 32
    %v3857 = vpop.permute.xlu0 %3856
    %3858 = vrot.lane.b32.xlu0 %v542, 32
    %v3859 = vpop.permute.xlu0 %3858
    %3860 = vrot.lane.b32.xlu0 %v545, 32
    %v3861 = vpop.permute.xlu0 %3860
    %3862 = vrot.lane.b32.xlu0 %v548, 32
    %v3863 = vpop.permute.xlu0 %3862
    %v3880 = vadd.f32 %v3549, %v3833
    %v3881 = vadd.f32 %v3550, %v3835
    %v3882 = vadd.f32 %v3551, %v3837
    %v3883 = vadd.f32 %v3552, %v3839
    %v3884 = vadd.f32 %v3553, %v3841
    %v3885 = vadd.f32 %v3554, %v3843
    %v3886 = vadd.f32 %v3555, %v3845
    %v3887 = vadd.f32 %v3556, %v3847
    %v3888 = vadd.f32 %v3557, %v3849
    %v3889 = vadd.f32 %v3558, %v3851
    %v3890 = vadd.f32 %v3559, %v3853
    %v3891 = vadd.f32 %v3560, %v3855
    %v3892 = vadd.f32 %v3561, %v3857
    %v3893 = vadd.f32 %v3562, %v3859
    %v3894 = vadd.f32 %v3563, %v3861
    %v3895 = vadd.f32 %v3564, %v3863
    %vm3896 = vcmp.ge.f32.partialorder %v3880, 0.0
    %vm3897 = vcmp.ge.f32.partialorder %v3881, 0.0
    %vm3898 = vcmp.ge.f32.partialorder %v3882, 0.0
    %vm3899 = vcmp.ge.f32.partialorder %v3883, 0.0
    %vm3900 = vcmp.ge.f32.partialorder %v3884, 0.0
    %vm3901 = vcmp.ge.f32.partialorder %v3885, 0.0
    %vm3902 = vcmp.ge.f32.partialorder %v3886, 0.0
    %vm3903 = vcmp.ge.f32.partialorder %v3887, 0.0
    %vm3904 = vcmp.ge.f32.partialorder %v3888, 0.0
    %vm3905 = vcmp.ge.f32.partialorder %v3889, 0.0
    %vm3906 = vcmp.ge.f32.partialorder %v3890, 0.0
    %vm3907 = vcmp.ge.f32.partialorder %v3891, 0.0
    %vm3908 = vcmp.ge.f32.partialorder %v3892, 0.0
    %vm3909 = vcmp.ge.f32.partialorder %v3893, 0.0
    %vm3910 = vcmp.ge.f32.partialorder %v3894, 0.0
    %vm3911 = vcmp.ge.f32.partialorder %v3895, 0.0
    %v3912 = vmul.f32 %v3880, 0.2
    %v3913 = vmul.f32 %v3881, 0.2
    %v3914 = vmul.f32 %v3882, 0.2
    %v3915 = vmul.f32 %v3883, 0.2
    %v3916 = vmul.f32 %v3884, 0.2
    %v3917 = vmul.f32 %v3885, 0.2
    %v3918 = vmul.f32 %v3886, 0.2
    %v3919 = vmul.f32 %v3887, 0.2
    %v3920 = vmul.f32 %v3888, 0.2
    %v3921 = vmul.f32 %v3889, 0.2
    %v3922 = vmul.f32 %v3890, 0.2
    %v3923 = vmul.f32 %v3891, 0.2
    %v3924 = vmul.f32 %v3892, 0.2
    %v3925 = vmul.f32 %v3893, 0.2
    %v3926 = vmul.f32 %v3894, 0.2
    %v3927 = vmul.f32 %v3895, 0.2
    %v3928 = vsel %vm3896, %v3880, %v3912
    %v3929 = vsel %vm3897, %v3881, %v3913
    %v3930 = vsel %vm3898, %v3882, %v3914
    %v3931 = vsel %vm3899, %v3883, %v3915
    %v3932 = vsel %vm3900, %v3884, %v3916
    %v3933 = vsel %vm3901, %v3885, %v3917
    %v3934 = vsel %vm3902, %v3886, %v3918
    %v3935 = vsel %vm3903, %v3887, %v3919
    %v3936 = vsel %vm3904, %v3888, %v3920
    %v3937 = vsel %vm3905, %v3889, %v3921
    %v3938 = vsel %vm3906, %v3890, %v3922
    %v3939 = vsel %vm3907, %v3891, %v3923
    %v3940 = vsel %vm3908, %v3892, %v3924
    %v3941 = vsel %vm3909, %v3893, %v3925
    %v3942 = vsel %vm3910, %v3894, %v3926
    %v3943 = vsel %vm3911, %v3895, %v3927
    %v3944 = vperm.slane %v3800, 0
    %v3945 = vlaneseq
    %v3946 = vshrl.u32 %v3945, 7
    %3948 = vset.pattern.permute.xlu0 %v3946
    %3949 = vperm.xlu0 %3948, %v3944
    %v3950 = vpop.permute.xlu0 %3949
    %v3951 = vperm.slane %v3800, 1
    %v3952 = vlaneseq
    %v3953 = vshrl.u32 %v3952, 7
    %3955 = vset.pattern.permute.xlu0 %v3953
    %3956 = vperm.xlu0 %3955, %v3951
    %v3957 = vpop.permute.xlu0 %3956
    %v3958 = vperm.slane %v3800, 2
    %v3959 = vlaneseq
    %v3960 = vshrl.u32 %v3959, 7
    %3962 = vset.pattern.permute.xlu0 %v3960
    %3963 = vperm.xlu0 %3962, %v3958
    %v3964 = vpop.permute.xlu0 %3963
    %v3965 = vperm.slane %v3800, 3
    %v3966 = vlaneseq
    %v3967 = vshrl.u32 %v3966, 7
    %3969 = vset.pattern.permute.xlu0 %v3967
    %3970 = vperm.xlu0 %3969, %v3965
    %v3971 = vpop.permute.xlu0 %3970
    %v3972 = vperm.slane %v3800, 4
    %v3973 = vlaneseq
    %v3974 = vshrl.u32 %v3973, 7
    %3976 = vset.pattern.permute.xlu0 %v3974
    %3977 = vperm.xlu0 %3976, %v3972
    %v3978 = vpop.permute.xlu0 %3977
    %v3979 = vperm.slane %v3800, 5
    %v3980 = vlaneseq
    %v3981 = vshrl.u32 %v3980, 7
    %3983 = vset.pattern.permute.xlu0 %v3981
    %3984 = vperm.xlu0 %3983, %v3979
    %v3985 = vpop.permute.xlu0 %3984
    %v3986 = vperm.slane %v3800, 6
    %v3987 = vlaneseq
    %v3988 = vshrl.u32 %v3987, 7
    %3990 = vset.pattern.permute.xlu0 %v3988
    %3991 = vperm.xlu0 %3990, %v3986
    %v3992 = vpop.permute.xlu0 %3991
    %v3993 = vperm.slane %v3800, 7
    %v3994 = vlaneseq
    %v3995 = vshrl.u32 %v3994, 7
    %3997 = vset.pattern.permute.xlu0 %v3995
    %3998 = vperm.xlu0 %3997, %v3993
    %v3999 = vpop.permute.xlu0 %3998
    %v4000 = vperm.slane %v3815, 0
    %v4001 = vlaneseq
    %v4002 = vshrl.u32 %v4001, 7
    %4004 = vset.pattern.permute.xlu0 %v4002
    %4005 = vperm.xlu0 %4004, %v4000
    %v4006 = vpop.permute.xlu0 %4005
    %v4007 = vperm.slane %v3815, 1
    %v4008 = vlaneseq
    %v4009 = vshrl.u32 %v4008, 7
    %4011 = vset.pattern.permute.xlu0 %v4009
    %4012 = vperm.xlu0 %4011, %v4007
    %v4013 = vpop.permute.xlu0 %4012
    %v4014 = vperm.slane %v3815, 2
    %v4015 = vlaneseq
    %v4016 = vshrl.u32 %v4015, 7
    %4018 = vset.pattern.permute.xlu0 %v4016
    %4019 = vperm.xlu0 %4018, %v4014
    %v4020 = vpop.permute.xlu0 %4019
    %v4021 = vperm.slane %v3815, 3
    %v4022 = vlaneseq
    %v4023 = vshrl.u32 %v4022, 7
    %4025 = vset.pattern.permute.xlu0 %v4023
    %4026 = vperm.xlu0 %4025, %v4021
    %v4027 = vpop.permute.xlu0 %4026
    %v4028 = vperm.slane %v3815, 4
    %v4029 = vlaneseq
    %v4030 = vshrl.u32 %v4029, 7
    %4032 = vset.pattern.permute.xlu0 %v4030
    %4033 = vperm.xlu0 %4032, %v4028
    %v4034 = vpop.permute.xlu0 %4033
    %v4035 = vperm.slane %v3815, 5
    %v4036 = vlaneseq
    %v4037 = vshrl.u32 %v4036, 7
    %4039 = vset.pattern.permute.xlu0 %v4037
    %4040 = vperm.xlu0 %4039, %v4035
    %v4041 = vpop.permute.xlu0 %4040
    %v4042 = vperm.slane %v3815, 6
    %v4043 = vlaneseq
    %v4044 = vshrl.u32 %v4043, 7
    %4046 = vset.pattern.permute.xlu0 %v4044
    %4047 = vperm.xlu0 %4046, %v4042
    %v4048 = vpop.permute.xlu0 %4047
    %v4049 = vperm.slane %v3815, 7
    %v4050 = vlaneseq
    %v4051 = vshrl.u32 %v4050, 7
    %4053 = vset.pattern.permute.xlu0 %v4051
    %4054 = vperm.xlu0 %4053, %v4049
    %v4055 = vpop.permute.xlu0 %4054
    %v4056 = vmul.f32 %v3950, %v3928
    %v4057 = vmul.f32 %v3957, %v3929
    %v4058 = vmul.f32 %v3964, %v3930
    %v4059 = vmul.f32 %v3971, %v3931
    %v4060 = vmul.f32 %v3978, %v3932
    %v4061 = vmul.f32 %v3985, %v3933
    %v4062 = vmul.f32 %v3992, %v3934
    %v4063 = vmul.f32 %v3999, %v3935
    %v4064 = vmul.f32 %v4006, %v3936
    %v4065 = vmul.f32 %v4013, %v3937
    %v4066 = vmul.f32 %v4020, %v3938
    %v4067 = vmul.f32 %v4027, %v3939
    %v4068 = vmul.f32 %v4034, %v3940
    %v4069 = vmul.f32 %v4041, %v3941
    %v4070 = vmul.f32 %v4048, %v3942
    %v4071 = vmul.f32 %v4055, %v3943
    %v4072 = vsel %vm1205, %v4056, 0.0
    %v4073 = vsel %vm1205, %v4057, 0.0
    %v4074 = vadd.f32 %v4072, %v4073
    %v4075 = vsel %vm1205, %v4058, 0.0
    %v4076 = vadd.f32 %v4074, %v4075
    %v4077 = vsel %vm1205, %v4059, 0.0
    %v4078 = vadd.f32 %v4076, %v4077
    %v4079 = vsel %vm1205, %v4060, 0.0
    %v4080 = vadd.f32 %v4078, %v4079
    %v4081 = vsel %vm1205, %v4061, 0.0
    %v4082 = vadd.f32 %v4080, %v4081
    %v4083 = vsel %vm1205, %v4062, 0.0
    %v4084 = vadd.f32 %v4082, %v4083
    %v4085 = vsel %vm1205, %v4063, 0.0
    %v4086 = vadd.f32 %v4084, %v4085
    %v4087 = vsel %vm1205, %v4064, 0.0
    %v4088 = vsel %vm1205, %v4065, 0.0
    %v4089 = vadd.f32 %v4087, %v4088
    %v4090 = vsel %vm1205, %v4066, 0.0
    %v4091 = vadd.f32 %v4089, %v4090
    %v4092 = vsel %vm1205, %v4067, 0.0
    %v4093 = vadd.f32 %v4091, %v4092
    %v4094 = vsel %vm1205, %v4068, 0.0
    %v4095 = vadd.f32 %v4093, %v4094
    %v4096 = vsel %vm1205, %v4069, 0.0
    %v4097 = vadd.f32 %v4095, %v4096
    %v4098 = vsel %vm1205, %v4070, 0.0
    %v4099 = vadd.f32 %v4097, %v4098
    %v4100 = vsel %vm1205, %v4071, 0.0
    %v4101 = vadd.f32 %v4099, %v4100
    %4104 = vrot.lane.b32.xlu0 %v3490, 64
    %v4105 = vpop.permute.xlu0 %4104
    %4106 = vrot.lane.b32.xlu0 %v3493, 64
    %v4107 = vpop.permute.xlu0 %4106
    %v4110 = vadd.f32 %v4086, %v4105
    %v4111 = vadd.f32 %v4101, %v4107
    %vm4112 = vcmp.ge.f32.partialorder %v4110, 0.0
    %vm4113 = vcmp.ge.f32.partialorder %v4111, 0.0
    %v4114 = vmul.f32 %v4110, 0.2
    %v4115 = vmul.f32 %v4111, 0.2
    %v4116 = vsel %vm4112, %v4110, %v4114
    %v4117 = vsel %vm4113, %v4111, %v4115
    %v4118 = vadd.f32 %v4116, %v1253
    %v4119 = vadd.f32 %v4117, %v1255
    %v4120 = vmax.f32 %v4118, 0.0
    %v4121 = vmax.f32 %v4119, 0.0
    %v4122 = vld [vmem:[#allocation9] sm:$0xff]
    %v4123 = vld [vmem:[#allocation9 + $0x8] sm:$0xff]
    %v4124 = vld [vmem:[#allocation9 + $0x10] sm:$0xff]
    %v4125 = vld [vmem:[#allocation9 + $0x18] sm:$0xff]
    %v4126 = vld [vmem:[#allocation9 + $0x20] sm:$0xff]
    %v4127 = vld [vmem:[#allocation9 + $0x28] sm:$0xff]
    %v4128 = vld [vmem:[#allocation9 + $0x30] sm:$0xff]
    %v4129 = vld [vmem:[#allocation9 + $0x38] sm:$0xff]
    %4132 = vrot.lane.b32.xlu0 %v4120, 64
    %v4133 = vpop.permute.xlu0 %4132
    %4134 = vrot.lane.b32.xlu0 %v4121, 64
    %v4135 = vpop.permute.xlu0 %4134
    %v4136 = vsel %vm564, %v4133, 0
    %v4138 = vsel %vm564, %v4135, 0
    %4140 = vmatpush.msra.mxu0 0.0
    %4141 = vmatpush.msra.mxu0 0.0
    %4142 = vmatpush.msra.mxu0 0.0
    %4143 = vmatpush.msra.mxu0 0.0
    %4144 = vmatpush.msra.mxu0 0.0
    %4145 = vmatpush.msra.mxu0 0.0
    %4146 = vmatpush.msra.mxu0 0.0
    %4147 = vmatpush.msra.mxu0 0.0
    %4148 = vmatpush.msra.mxu0 0.0
    %4149 = vmatpush.msra.mxu0 0.0
    %4150 = vmatpush.msra.mxu0 0.0
    %4151 = vmatpush.msra.mxu0 0.0
    %4152 = vmatpush.msra.mxu0 %v4128
    %4153 = vmatpush.msra.mxu0 %v4126
    %4154 = vmatpush.msra.mxu0 %v4124
    %4155 = vmatpush.msra.mxu0 %v4122
    %4156 = vmatmul.f32.gmra.mxu0 %v4136
    %v4157 = vpop.f32.mrf.mxu0
    %v4158 = vadd.f32 0.0, %v4157
    %4159 = vmatmul.f32.gmra.mxu0 %v4138
    %v4160 = vpop.f32.mrf.mxu0
    %v4161 = vadd.f32 0.0, %v4160
    %4162 = vdwg.mxu0
    %4163 = vmatpush.msra.mxu0 0.0
    %4164 = vmatpush.msra.mxu0 0.0
    %4165 = vmatpush.msra.mxu0 0.0
    %4166 = vmatpush.msra.mxu0 0.0
    %4167 = vmatpush.msra.mxu0 0.0
    %4168 = vmatpush.msra.mxu0 0.0
    %4169 = vmatpush.msra.mxu0 0.0
    %4170 = vmatpush.msra.mxu0 0.0
    %4171 = vmatpush.msra.mxu0 0.0
    %4172 = vmatpush.msra.mxu0 0.0
    %4173 = vmatpush.msra.mxu0 0.0
    %4174 = vmatpush.msra.mxu0 0.0
    %4175 = vmatpush.msra.mxu0 %v4129
    %4176 = vmatpush.msra.mxu0 %v4127
    %4177 = vmatpush.msra.mxu0 %v4125
    %4178 = vmatpush.msra.mxu0 %v4123
    %4179 = vmatmul.f32.gmra.mxu0 %v4136
    %v4180 = vpop.f32.mrf.mxu0
    %v4181 = vadd.f32 0.0, %v4180
    %4182 = vmatmul.f32.gmra.mxu0 %v4138
    %v4183 = vpop.f32.mrf.mxu0
    %v4184 = vadd.f32 0.0, %v4183
    %4185 = vdwg.mxu0
    %4190 = vrot.lane.b32.xlu0 %v4158, 32
    %v4191 = vpop.permute.xlu0 %4190
    %4192 = vrot.lane.b32.xlu0 %v4181, 32
    %v4193 = vpop.permute.xlu0 %4192
    %4194 = vrot.lane.b32.xlu0 %v4161, 32
    %v4195 = vpop.permute.xlu0 %4194
    %4196 = vrot.lane.b32.xlu0 %v4184, 32
    %v4197 = vpop.permute.xlu0 %4196
    %v4198 = vsel %vm564, %v4191, %v4193
    %v4199 = vsel %vm564, %v4195, %v4197
    %v4206 = vadd.f32 %v207, %v4191
    %v4207 = vadd.f32 %v230, %v4198
    %v4208 = vadd.f32 %v253, %v4193
    %v4209 = vadd.f32 %v210, %v4195
    %v4210 = vadd.f32 %v233, %v4199
    %v4211 = vadd.f32 %v256, %v4197
    %v4212 = vld [vmem:[%s12] sm:$0x3]
    %v4214 = vperm.slane %v4212, 0
    %v4215 = vperm.slane %v4212, 1
    %4216 = vrot.lane.b32.xlu0 %v4214, 32
    %v4217 = vpop.permute.xlu0 %4216
    %4218 = vrot.lane.b32.xlu0 %v4215, 32
    %v4219 = vpop.permute.xlu0 %4218
    %v4220 = vsel %vm564, %v4217, %v4219
    %v4224 = vadd.f32 %v4206, %v4217
    %v4225 = vadd.f32 %v4207, %v4220
    %v4226 = vadd.f32 %v4208, %v4219
    %v4227 = vadd.f32 %v4209, %v4217
    %v4228 = vadd.f32 %v4210, %v4220
    %v4229 = vadd.f32 %v4211, %v4219
    %vm4230 = vcmp.ge.f32.partialorder %v4224, 0.0
    %vm4231 = vcmp.ge.f32.partialorder %v4225, 0.0
    %vm4232 = vcmp.ge.f32.partialorder %v4226, 0.0
    %vm4233 = vcmp.ge.f32.partialorder %v4227, 0.0
    %vm4234 = vcmp.ge.f32.partialorder %v4228, 0.0
    %vm4235 = vcmp.ge.f32.partialorder %v4229, 0.0
    %v4236 = vmul.f32 %v4224, 0.2
    %v4237 = vmul.f32 %v4225, 0.2
    %v4238 = vmul.f32 %v4226, 0.2
    %v4239 = vmul.f32 %v4227, 0.2
    %v4240 = vmul.f32 %v4228, 0.2
    %v4241 = vmul.f32 %v4229, 0.2
    %v4242 = vsel %vm4230, %v4224, %v4236
    %v4243 = vsel %vm4231, %v4225, %v4237
    %v4244 = vsel %vm4232, %v4226, %v4238
    %v4245 = vsel %vm4233, %v4227, %v4239
    %v4246 = vsel %vm4234, %v4228, %v4240
    %v4247 = vsel %vm4235, %v4229, %v4241
    %v4248 = vld [vmem:[%s3] sm:$0xff]
    %v4249 = vld [vmem:[%s3 + $0x8] sm:$0xff]
    %4251 = vset.pattern.permute.xlu0 0
    %4252 = vperm.xlu0 %4251, %v4248
    %v4253 = vpop.permute.xlu0 %4252
    %4256 = vset.pattern.permute.xlu0 0
    %4257 = vperm.xlu0 %4256, %v4249
    %v4258 = vpop.permute.xlu0 %4257
    %v4260 = vmul.f32 %v4242, %v4253
    %v4261 = vmul.f32 %v4243, %v4253
    %v4262 = vmul.f32 %v4244, %v4253
    %v4263 = vmul.f32 %v4245, %v4258
    %v4264 = vmul.f32 %v4246, %v4258
    %v4265 = vmul.f32 %v4247, %v4258
    %vm4266 = vcmask 1047808
    %v4267 = vsel %vm4266, %v4260, 0.0
    %v4268 = vrot.slane %v4267, 4
    %v4269 = vadd.f32 %v4267, %v4268
    %v4270 = vrot.slane %v4269, 2
    %v4271 = vadd.f32 %v4269, %v4270
    %v4272 = vrot.slane %v4271, 1
    %v4273 = vadd.f32 %v4271, %v4272
    %v4274 = vrot.slane %v4261, 4
    %v4275 = vadd.f32 %v4261, %v4274
    %v4276 = vrot.slane %v4275, 2
    %v4277 = vadd.f32 %v4275, %v4276
    %v4278 = vrot.slane %v4277, 1
    %v4279 = vadd.f32 %v4277, %v4278
    %v4280 = vsel %vm564, %v4262, 0.0
    %v4281 = vrot.slane %v4280, 4
    %v4282 = vadd.f32 %v4280, %v4281
    %v4283 = vrot.slane %v4282, 2
    %v4284 = vadd.f32 %v4282, %v4283
    %v4285 = vrot.slane %v4284, 1
    %v4286 = vadd.f32 %v4284, %v4285
    %v4287 = vsel %vm4266, %v4263, 0.0
    %v4288 = vrot.slane %v4287, 4
    %v4289 = vadd.f32 %v4287, %v4288
    %v4290 = vrot.slane %v4289, 2
    %v4291 = vadd.f32 %v4289, %v4290
    %v4292 = vrot.slane %v4291, 1
    %v4293 = vadd.f32 %v4291, %v4292
    %v4294 = vrot.slane %v4264, 4
    %v4295 = vadd.f32 %v4264, %v4294
    %v4296 = vrot.slane %v4295, 2
    %v4297 = vadd.f32 %v4295, %v4296
    %v4298 = vrot.slane %v4297, 1
    %v4299 = vadd.f32 %v4297, %v4298
    %v4300 = vsel %vm564, %v4265, 0.0
    %v4301 = vrot.slane %v4300, 4
    %v4302 = vadd.f32 %v4300, %v4301
    %v4303 = vrot.slane %v4302, 2
    %v4304 = vadd.f32 %v4302, %v4303
    %v4305 = vrot.slane %v4304, 1
    %v4306 = vadd.f32 %v4304, %v4305
    %v4307 = vld [vmem:[%s13] sm:$0xff]
    %v4308 = vld [vmem:[%s13 + $0x8] sm:$0xff]
    %v4309 = vld [vmem:[%s13 + $0x10] sm:$0xff]
    %v4310 = vld [vmem:[%s13 + $0x18] sm:$0xff]
    %v4311 = vld [vmem:[%s13 + $0x20] sm:$0xff]
    %v4312 = vld [vmem:[%s13 + $0x28] sm:$0xff]
    %v4313 = vld [vmem:[%s13 + $0x30] sm:$0xff]
    %v4314 = vld [vmem:[%s13 + $0x38] sm:$0xff]
    %v4315 = vld [vmem:[%s13 + $0x40] sm:$0xff]
    %v4316 = vld [vmem:[%s13 + $0x48] sm:$0xff]
    %v4317 = vld [vmem:[%s13 + $0x50] sm:$0xff]
    %v4318 = vld [vmem:[%s13 + $0x58] sm:$0xff]
    %v4319 = vld [vmem:[%s13 + $0x60] sm:$0xff]
    %v4320 = vld [vmem:[%s13 + $0x68] sm:$0xff]
    %v4321 = vld [vmem:[%s13 + $0x70] sm:$0xff]
    %v4322 = vld [vmem:[%s13 + $0x78] sm:$0xff]
    %v4323 = vld [vmem:[%s13 + $0x80] sm:$0xff]
    %v4324 = vld [vmem:[%s13 + $0x88] sm:$0xff]
    %v4325 = vld [vmem:[%s13 + $0x90] sm:$0xff]
    %v4326 = vld [vmem:[%s13 + $0x98] sm:$0xff]
    %v4327 = vld [vmem:[%s13 + $0xa0] sm:$0xff]
    %v4328 = vld [vmem:[%s13 + $0xa8] sm:$0xff]
    %v4329 = vld [vmem:[%s13 + $0xb0] sm:$0xff]
    %v4330 = vld [vmem:[%s13 + $0xb8] sm:$0xff]
    %v4331 = vld [vmem:[%s13 + $0xc0] sm:$0xff]
    %v4332 = vld [vmem:[%s13 + $0xc8] sm:$0xff]
    %v4333 = vld [vmem:[%s13 + $0xd0] sm:$0xff]
    %v4334 = vld [vmem:[%s13 + $0xd8] sm:$0xff]
    %v4335 = vld [vmem:[%s13 + $0xe0] sm:$0xff]
    %v4336 = vld [vmem:[%s13 + $0xe8] sm:$0xff]
    %v4337 = vld [vmem:[%s13 + $0xf0] sm:$0xff]
    %v4338 = vld [vmem:[%s13 + $0xf8] sm:$0xff]
    %v4339 = vld [vmem:[#allocation2] sm:$0x1]
    %v4341 = vperm.slane %v4339, 0
    %v4349 = vsel %vm855, %v4293, %v4273
    %v4350 = vsel %vm855, %v4299, %v4279
    %v4351 = vsel %vm855, %v4306, %v4286
    %4352 = vrot.lane.b32.xlu0 %v4349, 96
    %v4353 = vpop.permute.xlu0 %4352
    %4354 = vrot.lane.b32.xlu0 %v4350, 96
    %v4355 = vpop.permute.xlu0 %4354
    %4356 = vrot.lane.b32.xlu0 %v4351, 96
    %v4357 = vpop.permute.xlu0 %4356
    %vm4358 = vcmask 785408
    %v4359 = vsel %vm4358, %v4353, %v4355
    %v4360 = vsel %vm4358, %v4355, %v4357
    %4363 = vmatpush.msra.mxu0 %v4322
    %4364 = vmatpush.msra.mxu0 %v4321
    %4365 = vmatpush.msra.mxu0 %v4320
    %4366 = vmatpush.msra.mxu0 %v4319
    %4367 = vmatpush.msra.mxu0 %v4318
    %4368 = vmatpush.msra.mxu0 %v4317
    %4369 = vmatpush.msra.mxu0 %v4316
    %4370 = vmatpush.msra.mxu0 %v4315
    %4371 = vmatpush.msra.mxu0 %v4314
    %4372 = vmatpush.msra.mxu0 %v4313
    %4373 = vmatpush.msra.mxu0 %v4312
    %4374 = vmatpush.msra.mxu0 %v4311
    %4375 = vmatpush.msra.mxu0 %v4310
    %4376 = vmatpush.msra.mxu0 %v4309
    %4377 = vmatpush.msra.mxu0 %v4308
    %4378 = vmatpush.msra.mxu0 %v4307
    %4379 = vmatmul.f32.gmra.mxu0 %v4359
    %v4380 = vpop.f32.mrf.mxu0
    %v4381 = vadd.f32 %v4341, %v4380
    %4382 = vdwg.mxu0
    %4383 = vmatpush.msra.mxu0 %v4338
    %4384 = vmatpush.msra.mxu0 %v4337
    %4385 = vmatpush.msra.mxu0 %v4336
    %4386 = vmatpush.msra.mxu0 %v4335
    %4387 = vmatpush.msra.mxu0 %v4334
    %4388 = vmatpush.msra.mxu0 %v4333
    %4389 = vmatpush.msra.mxu0 %v4332
    %4390 = vmatpush.msra.mxu0 %v4331
    %4391 = vmatpush.msra.mxu0 %v4330
    %4392 = vmatpush.msra.mxu0 %v4329
    %4393 = vmatpush.msra.mxu0 %v4328
    %4394 = vmatpush.msra.mxu0 %v4327
    %4395 = vmatpush.msra.mxu0 %v4326
    %4396 = vmatpush.msra.mxu0 %v4325
    %4397 = vmatpush.msra.mxu0 %v4324
    %4398 = vmatpush.msra.mxu0 %v4323
    %4399 = vmatmul.f32.gmra.mxu0 %v4360
    %v4400 = vpop.f32.mrf.mxu0
    %v4401 = vadd.f32 %v4381, %v4400
    %4402 = vdwg.mxu0
    %4404 = vset.pattern.permute.xlu0 0
    %4405 = vperm.xlu0 %4404, %v4401
    %v4406 = vpop.permute.xlu0 %4405
    %v4407 = vperm.slane %v4406, %v838
    %vm4409 = vcmask 8192
    %4410 = vst.msk [vmem:[#allocation11] sm:$0x1] %vm4409, %v4407
    // Predicated region
    $region78: #{tpu_custom_call.1} parent=1 // pred_check
      _
    $region79: #{tpu_custom_call.1} parent=1 // pred_check_branch
      %4412 = sbr.rel (0) target = $region81
    $region80: #{tpu_custom_call.1} parent=1 // pred_region
      %4414 = vsyncadd [#allocation5], 0
      %s4416 = sshll.u32 [#allocation11], 4
      %s4417 = int_to_ptr.vmem [resolvable:$true] %s4416
      %s4418 = sshll.u32 %s15, 4
      %s4419 = int_to_ptr.hbm [resolvable:$true] %s4418
      %4421 = dma.vmem_to_hbm [thread:$0]  %s4417, 16, %s4419, [#allocation5]
    $region81: #{tpu_custom_call.1} parent=1 // pred_fallthru
      _
    // Predicated region
    $region82: #{tpu_custom_call.1} parent=1 // pred_check
      _
    $region83: #{tpu_custom_call.1} parent=1 // pred_check_branch
      %4423 = sbr.rel (0) target = $region85
    $region84: #{tpu_custom_call.1} parent=1 // pred_region
      %4425 = dma.done [#allocation5], 16
    $region85: #{tpu_custom_call.1} parent=1 // pred_fallthru
      _
    %4426 = vsyncpa [#allocation4], 1
    %4427 = vsyncpa [#allocation7], 1
    %4428 = vsyncpa [#allocation10], 1
    %4429 = vsyncpa [#allocation5], 1

</llo_original>
